<compile_context>
chip_gen: v6e
topology: v6e:2x2x1
jax: 0.10.0
libtpu: 0.0.40
codegen_flags: <defaults>
</compile_context>

<pallas_src>
import functools

import jax
import jax.numpy as jnp
from jax.experimental import pallas as pl
from jax.experimental.pallas import tpu as pltpu

EPS = 1e-5
LANE = 128


def _round_up(x, m):
    return ((x + m - 1) // m) * m


def _preferred_tn(cout):
    """Output-channel tile: 256 fills a v6e/v7x MXU pass; 128 is native on v5e."""
    try:
        kind = jax.devices()[0].device_kind.lower()
    except Exception:
        kind = ""
    if "v5" not in kind and cout % 256 == 0:
        return 256
    return LANE


def _row_block(Ho, Wo, TN, budget_bytes=128 * 1024):
    """Largest divisor of Ho whose (rows*Wo, TN) f32 accumulator is <=128KB."""
    rb = Ho
    while rb > 1 and rb * Wo * TN * 4 > budget_bytes:
        nxt = rb - 1
        while nxt > 1 and Ho % nxt:
            nxt -= 1
        rb = nxt
    return max(rb, 1)


# --------------------------------------------------------------------------- #
# Kernel 1: per-channel batch statistics (sum / sum-of-squares) for BN1.
# Grid over batch; outputs are accumulators (same block revisited, init via
# pl.when, axis "arbitrary") -> GLOBAL statistics over (N, H, W).
# --------------------------------------------------------------------------- #
def _bn_stats_kernel(x_ref, sum_ref, sq_ref):
    @pl.when(pl.program_id(0) == 0)
    def _init():
        sum_ref[...] = jnp.zeros_like(sum_ref)
        sq_ref[...] = jnp.zeros_like(sq_ref)

    x = x_ref[0]                                            # (rows, C) f32
    sum_ref[...] += jnp.sum(x, axis=0, keepdims=True)
    sq_ref[...] += jnp.sum(x * x, axis=0, keepdims=True)


def bn_batch_stats(x3d):
    """x3d: (N, rows, C) f32 -> (sum, sumsq), each (1, C) f32."""
    N, R, C = x3d.shape
    return pl.pallas_call(
        _bn_stats_kernel,
        grid=(N,),
        in_specs=[pl.BlockSpec((1, R, C), lambda n: (n, 0, 0))],
        out_specs=(pl.BlockSpec((1, C), lambda n: (0, 0)),
                   pl.BlockSpec((1, C), lambda n: (0, 0))),
        out_shape=(jax.ShapeDtypeStruct((1, C), jnp.float32),
                   jax.ShapeDtypeStruct((1, C), jnp.float32)),
        compiler_params=pltpu.CompilerParams(
            dimension_semantics=("arbitrary",)),
    )(x3d)


def _bn_scale_shift(s, q, count, gamma, beta):
    """O(C) epilogue: batch mean/var (biased, train mode) -> scale/shift."""
    mean = s / count
    var = jnp.maximum(q / count - mean * mean, 0.0)
    scale = gamma * jax.lax.rsqrt(var + EPS)
    shift = beta - mean * scale
    return scale, shift


# --------------------------------------------------------------------------- #
# Kernel 2: fused  relu(bn(x)) -> 3x3 conv (stride S)
#                  [+ 1x1 shortcut conv] [+ residual add] [+ BN stats of conv]
#
# Input is "phase split": x[n, ph*S+pw, i, j, c] = orig[n, S*i+ph, S*j+pw, c],
# so a strided conv becomes 9 unit-stride windowed matmuls over a zero-padded
# VMEM halo scratch built in the prologue.
# --------------------------------------------------------------------------- #
def _make_preact_conv_kernel(S, Hs, Ws, Cin, TN, RB, emit_sc, add_res,
                             emit_stats):
    Ho, Wo = Hs, Ws

    def kernel(*refs):
        it = iter(refs)
        x_ref = next(it)
        scale_ref = next(it)
        shift_ref = next(it)
        w_ref = next(it)
        ws_ref = next(it) if emit_sc else None
        res_ref = next(it) if add_res else None
        out_ref = next(it)
        sc_ref = next(it) if emit_sc else None
        sum_ref = next(it) if emit_stats else None
        sq_ref = next(it) if emit_stats else None
        apad_ref = next(it)

        n = pl.program_id(1)

        if emit_stats:
            @pl.when(n == 0)
            def _init_stats():
                sum_ref[...] = jnp.zeros_like(sum_ref)
                sq_ref[...] = jnp.zeros_like(sq_ref)

        # ---- prologue: fused BatchNorm (precomputed global scale/shift) +
        # ReLU into the halo scratch.  Only the 1-px border is zeroed; the
        # interior is fully overwritten (no full-scratch zero fill).
        scale = scale_ref[...]
        shift = shift_ref[...]
        zrow = jnp.zeros((1, Ws + 2, Cin), jnp.float32)
        zcol = jnp.zeros((Hs, 1, Cin), jnp.float32)
        for p in range(S * S):
            apad_ref[p, 0:1, :, :] = zrow
            apad_ref[p, Hs + 1:Hs + 2, :, :] = zrow
            apad_ref[p, 1:Hs + 1, 0:1, :] = zcol
            apad_ref[p, 1:Hs + 1, Ws + 1:Ws + 2, :] = zcol
            a = x_ref[0, p].astype(jnp.float32)             # (Hs, Ws, Cin)
            a = jnp.maximum(a * scale + shift, 0.0)
            apad_ref[p, 1:Hs + 1, 1:Ws + 1, :] = a

        # ---- 3x3 conv (stride S) = 9 shifted MXU matmuls per spatial row
        # block; bf16 operands, f32 accumulation bounded to <=128KB live.
        for r0 in range(0, Ho, RB):
            acc = jnp.zeros((RB * Wo, TN), jnp.float32)
            for kh in range(3):
                ph, dh = (kh - 1) % S, 1 + (kh - 1) // S
                for kw in range(3):
                    pw, dw = (kw - 1) % S, 1 + (kw - 1) // S
                    win = apad_ref[ph * S + pw,
                                   dh + r0:dh + r0 + RB,
                                   dw:dw + Wo, :]
                    win = win.reshape(RB * Wo, Cin).astype(jnp.bfloat16)
                    t = kh * 3 + kw
                    acc = acc + jnp.dot(
                        win, w_ref[t * Cin:(t + 1) * Cin, :],
                        preferred_element_type=jnp.float32)
                    if emit_sc and kh == 1 and kw == 1:
                        # fused strided 1x1 shortcut conv: its input is exactly
                        # the (1,1) tap window of the same pre-activation.
                        sc = jnp.dot(win, ws_ref[...],
                                     preferred_element_type=jnp.float32)
                        sc_ref[:, r0:r0 + RB, :, :] = sc.reshape(1, RB, Wo, TN)
            if emit_stats:
                # fused BN2 statistics of the conv output (pre-residual),
                # accumulated across the inner "arbitrary" batch axis.
                sum_ref[...] += jnp.sum(acc, axis=0, keepdims=True)
                sq_ref[...] += jnp.sum(acc * acc, axis=0, keepdims=True)
            out = acc
            if add_res:
                out = out + res_ref[:, r0:r0 + RB, :, :].reshape(RB * Wo, TN)
            out_ref[:, r0:r0 + RB, :, :] = (
                out.reshape(1, RB, Wo, TN).astype(out_ref.dtype))

    return kernel


def preact_conv(x_ph, scale, shift, wmat, ws=None, res=None, *,
                out_dtype=jnp.float32, emit_stats=False):
    """x_ph: (N, S*S, H/S, W/S, Cin) phase-split activations (f32 or bf16).

    Returns a tuple (out[, shortcut][, sum, sumsq]).
    """
    N, SS, Hs, Ws, Cin = x_ph.shape
    S = int(round(SS ** 0.5))
    K9, Cout = wmat.shape
    assert K9 == 9 * Cin and S * S == SS
    TN = _preferred_tn(Cout)
    CT = Cout // TN
    Ho, Wo = Hs, Ws
    RB = _row_block(Ho, Wo, TN)
    emit_sc = ws is not None
    add_res = res is not None

    kernel = _make_preact_conv_kernel(S, Hs, Ws, Cin, TN, RB,
                                      emit_sc, add_res, emit_stats)

    # grid = (channel tiles, batch): weight tiles' block index depends only on
    # the outer axis -> VMEM-resident across the whole batch sweep; the fused
    # BN2 statistics accumulate along the inner ("arbitrary") batch axis.
    in_specs = [
        pl.BlockSpec((1, SS, Hs, Ws, Cin), lambda c, n: (n, 0, 0, 0, 0)),
        pl.BlockSpec((1, Cin), lambda c, n: (0, 0)),
        pl.BlockSpec((1, Cin), lambda c, n: (0, 0)),
        pl.BlockSpec((K9, TN), lambda c, n: (0, c)),
    ]
    args = [x_ph, scale, shift, wmat]
    if emit_sc:
        in_specs.append(pl.BlockSpec((Cin, TN), lambda c, n: (0, c)))
        args.append(ws)
    if add_res:
        in_specs.append(pl.BlockSpec((1, Ho, Wo, TN), lambda c, n: (n, 0, 0, c)))
        args.append(res)

    out_block = pl.BlockSpec((1, Ho, Wo, TN), lambda c, n: (n, 0, 0, c))
    out_specs = [out_block]
    out_shapes = [jax.ShapeDtypeStruct((N, Ho, Wo, Cout), out_dtype)]
    if emit_sc:
        out_specs.append(out_block)
        out_shapes.append(jax.ShapeDtypeStruct((N, Ho, Wo, Cout), jnp.float32))
    if emit_stats:
        stat_block = pl.BlockSpec((1, TN), lambda c, n: (0, c))
        out_specs += [stat_block, stat_block]
        out_shapes += [jax.ShapeDtypeStruct((1, Cout), jnp.float32),
                       jax.ShapeDtypeStruct((1, Cout), jnp.float32)]

    semantics = (("parallel", "arbitrary") if emit_stats
                 else ("parallel", "parallel"))

    outs = pl.pallas_call(
        kernel,
        grid=(CT, N),
        in_specs=in_specs,
        out_specs=tuple(out_specs),
        out_shape=tuple(out_shapes),
        scratch_shapes=[pltpu.VMEM((SS, Hs + 2, Ws + 2, Cin), jnp.float32)],
        compiler_params=pltpu.CompilerParams(dimension_semantics=semantics),
    )(*args)
    if not isinstance(outs, (tuple, list)):
        outs = (outs,)
    return tuple(outs)


# --------------------------------- glue ------------------------------------ #

def _phase_split(x_nhwc, s):
    """(N,H,W,C) -> (N, s*s, H/s, W/s, C); x_ph[:, p*s+q, i, j] = x[:, s*i+p, s*j+q]."""
    if s == 1:
        return x_nhwc[:, None]
    N, H, W, C = x_nhwc.shape
    x = x_nhwc.reshape(N, H // s, s, W // s, s, C)
    x = jnp.transpose(x, (0, 2, 4, 1, 3, 5))
    return x.reshape(N, s * s, H // s, W // s, C)


def prepare_params(params, in_planes, planes):
    """One-time conversion of PyTorch-layout weights to lane-padded, tap-major
    bf16 matmul layouts.  NOTE: gamma/beta MUST be zero-padded so BN statistics
    over the padded channel lanes stay inert (scale=shift=0 there)."""
    Cin_p = _round_up(in_planes, LANE)
    Cout_p = _round_up(planes, LANE)

    def vec(v, cp):
        return jnp.pad(v.astype(jnp.float32), (0, cp - v.shape[0])).reshape(1, cp)

    def conv3x3(w, ci_p, co_p):
        # (Cout, Cin, 3, 3) -> (9*Cin_p, Cout_p); row = (kh*3+kw)*Cin_p + cin
        w = jnp.transpose(w, (2, 3, 1, 0))                  # (3, 3, Cin, Cout)
        w = jnp.pad(w, ((0, 0), (0, 0),
                        (0, ci_p - w.shape[2]), (0, co_p - w.shape[3])))
        return w.reshape(9 * ci_p, co_p).astype(jnp.bfloat16)

    prep = {
        "gamma1": vec(params["bn1_gamma"], Cin_p),
        "beta1":  vec(params["bn1_beta"], Cin_p),
        "gamma2": vec(params["bn2_gamma"], Cout_p),
        "beta2":  vec(params["bn2_beta"], Cout_p),
        "w1": conv3x3(params["conv1_w"], Cin_p, Cout_p),
        "w2": conv3x3(params["conv2_w"], Cout_p, Cout_p),
    }
    if "shortcut_w" in params:
        ws = params["shortcut_w"].reshape(planes, in_planes).T
        ws = jnp.pad(ws, ((0, Cin_p - in_planes), (0, Cout_p - planes)))
        prep["ws"] = ws.astype(jnp.bfloat16)
    return prep


@functools.partial(jax.jit, static_argnames=("planes", "stride"))
def basic_block_forward(x_nchw, prep, planes, stride):
    N, in_planes, H, W = x_nchw.shape
    Cin_p = prep["gamma1"].shape[1]
    Cout_p = prep["gamma2"].shape[1]
    has_sc = "ws" in prep
    if not has_sc and not (stride == 1 and in_planes == planes):
        raise ValueError("identity shortcut requires stride==1 and in_planes==planes")
    if H % stride or W % stride:
        # TODO(synk): spatial dims not divisible by stride need edge masking.
        raise ValueError("spatial dims must be divisible by stride")
    Ho, Wo = H // stride, W // stride

    # NCHW -> NHWC, channels zero-padded to a lane-aligned (128) width.
    x = jnp.transpose(x_nchw, (0, 2, 3, 1)).astype(jnp.float32)
    x = jnp.pad(x, ((0, 0), (0, 0), (0, 0), (0, Cin_p - in_planes)))

    # BN1: global batch statistics (train mode, biased var) -> scale/shift.
    s1, q1 = bn_batch_stats(x.reshape(N, H * W, Cin_p))
    scale1, shift1 = _bn_scale_shift(s1, q1, N * H * W,
                                     prep["gamma1"], prep["beta1"])

    # Fused relu(bn1) -> conv1 (3x3, stride) [+ fused 1x1 shortcut conv]
    # [+ fused BN2 statistics].  conv1 output stored bf16; residual stays f32.
    x_ph = _phase_split(x, stride)
    if has_sc:
        out1, res, s2, q2 = preact_conv(x_ph, scale1, shift1, prep["w1"],
                                        ws=prep["ws"],
                                        out_dtype=jnp.bfloat16, emit_stats=True)
    else:
        out1, s2, q2 = preact_conv(x_ph, scale1, shift1, prep["w1"],
                                   out_dtype=jnp.bfloat16, emit_stats=True)
        res = x                                             # identity shortcut
    scale2, shift2 = _bn_scale_shift(s2, q2, N * Ho * Wo,
                                     prep["gamma2"], prep["beta2"])

    # Fused relu(bn2(out1)) -> conv2 (3x3, stride 1) -> + residual.
    (out,) = preact_conv(_phase_split(out1, 1), scale2, shift2, prep["w2"],
                         res=res)

    # Strip channel padding, NHWC -> NCHW.
    return jnp.transpose(out[..., :planes], (0, 3, 1, 2))


# ---------------------------- pure-JAX reference ---------------------------- #

def ref_forward(x, params, stride):
    """f32 reference with exact PyTorch semantics (train-mode BN, biased var)."""
    def bn_relu(t, g, b):
        mean = jnp.mean(t, axis=(0, 2, 3), keepdims=True)
        var = jnp.mean((t - mean) ** 2, axis=(0, 2, 3), keepdims=True)
        y = (t - mean) * jax.lax.rsqrt(var + EPS)
        y = y * g.reshape(1, -1, 1, 1) + b.reshape(1, -1, 1, 1)
        return jnp.maximum(y, 0.0)

    def conv(t, w, s, pad):
        return jax.lax.conv_general_dilated(
            t, w, (s, s), [(pad, pad), (pad, pad)],
            dimension_numbers=("NCHW", "OIHW", "NCHW"))

    pre1 = bn_relu(x, params["bn1_gamma"], params["bn1_beta"])
    shortcut = (conv(pre1, params["shortcut_w"], stride, 0)
                if "shortcut_w" in params else x)
    out = conv(pre1, params["conv1_w"], stride, 1)
    out = conv(bn_relu(out, params["bn2_gamma"], params["bn2_beta"]),
               params["conv2_w"], 1, 1)
    return out + shortcut


# ----------------------------------- main ----------------------------------- #

def _run_case(key, N, H, W, in_planes, planes, stride, with_sc):
    ks = jax.random.split(key, 8)
    params = {
        "bn1_gamma": jax.random.normal(ks[0], (in_planes,), jnp.float32) * 0.1 + 1.0,
        "bn1_beta":  jax.random.normal(ks[1], (in_planes,), jnp.float32) * 0.1,
        "conv1_w":   jax.random.normal(ks[2], (planes, in_planes, 3, 3), jnp.float32) * 0.1,
        "bn2_gamma": jax.random.normal(ks[3], (planes,), jnp.float32) * 0.1 + 1.0,
        "bn2_beta":  jax.random.normal(ks[4], (planes,), jnp.float32) * 0.1,
        "conv2_w":   jax.random.normal(ks[5], (planes, planes, 3, 3), jnp.float32) * 0.1,
    }
    if with_sc:
        params["shortcut_w"] = jax.random.normal(
            ks[6], (planes, in_planes, 1, 1), jnp.float32) * 0.1
    x = jax.random.normal(ks[7], (N, in_planes, H, W), jnp.float32)

    prep = prepare_params(params, in_planes, planes)
    out = jax.block_until_ready(
        basic_block_forward(x, prep, planes=planes, stride=stride))
    ref = jax.block_until_ready(ref_forward(x, params, stride))

    assert out.shape == ref.shape == (N, planes, H // stride, W // stride), \
        (out.shape, ref.shape)
    err = float(jnp.max(jnp.abs(out - ref)))
    # bf16 MXU operands + bf16 intermediate storage, f32 accumulation.
    assert err < 5e-2, f"max abs err {err}"
    return err


if __name__ == "__main__":
    key = jax.random.PRNGKey(0)
    k1, k2 = jax.random.split(key)
    # stride-2 block with fused 1x1-conv shortcut (in_planes != planes)
    _run_case(k1, N=2, H=16, W=16, in_planes=4, planes=8, stride=2, with_sc=True)
    # stride-1 block with identity shortcut (in_planes == planes)
    _run_case(k2, N=2, H=16, W=16, in_planes=8, planes=8, stride=1, with_sc=False)
    print("KERNEL_OK")
</pallas_src>

<mosaic_0001>
module attributes {stable_mosaic.version = 11 : i64} {
  func.func @_bn_stats_kernel(%arg0: i32, %arg1: memref<1x256x128xf32, #tpu.memory_space<vmem>>, %arg2: memref<1x128xf32, #tpu.memory_space<vmem>>, %arg3: memref<1x128xf32, #tpu.memory_space<vmem>>) attributes {dimension_semantics = [#tpu.dimension_semantics<arbitrary>], iteration_bounds = array<i64: 2>, scalar_prefetch = 0 : i64, scratch_operands = 0 : i64, tpu.core_type = #tpu.core_type<tc>, window_params = [{transform_indices = @transform_0, window_bounds = array<i64: 1, 256, 128>}, {pipeline_mode = #tpu.pipeline_mode<synchronous>, transform_indices = @transform_1, window_bounds = array<i64: 1, 128>}, {pipeline_mode = #tpu.pipeline_mode<synchronous>, transform_indices = @transform_2, window_bounds = array<i64: 1, 128>}]} {
    %c0_i32 = arith.constant 0 : i32
    %0 = arith.cmpi eq, %arg0, %c0_i32 : i32
    %1 = arith.extui %0 : i1 to i32
    %c0_i32_0 = arith.constant 0 : i32
    %2 = arith.cmpi ne, %1, %c0_i32_0 : i32
    scf.if %2 {
      %cst_12 = arith.constant 0.000000e+00 : f32
      %16 = vector.broadcast %cst_12 : f32 to vector<1x128xf32>
      %c0_13 = arith.constant 0 : index
      %c0_14 = arith.constant 0 : index
      %17 = vector.load %arg2[%c0_13, %c0_14] : memref<1x128xf32, #tpu.memory_space<vmem>>, vector<1x128xf32>
      tpu.vector_store %arg2[%c0_13, %c0_14], %16 {strides = array<i32>} : memref<1x128xf32, #tpu.memory_space<vmem>>, vector<1x128xf32>,
      %cst_15 = arith.constant 0.000000e+00 : f32
      %18 = vector.broadcast %cst_15 : f32 to vector<1x128xf32>
      %c0_16 = arith.constant 0 : index
      %c0_17 = arith.constant 0 : index
      %19 = vector.load %arg3[%c0_16, %c0_17] : memref<1x128xf32, #tpu.memory_space<vmem>>, vector<1x128xf32>
      tpu.vector_store %arg3[%c0_16, %c0_17], %18 {strides = array<i32>} : memref<1x128xf32, #tpu.memory_space<vmem>>, vector<1x128xf32>,
    } else {
    }
    %c0 = arith.constant 0 : index
    %c0_1 = arith.constant 0 : index
    %c0_2 = arith.constant 0 : index
    %3 = vector.load %arg1[%c0, %c0_1, %c0_2] : memref<1x256x128xf32, #tpu.memory_space<vmem>>, vector<1x256x128xf32>
    %4 = vector.shape_cast %3 : vector<1x256x128xf32> to vector<256x128xf32>
    %c0_3 = arith.constant 0 : index
    %c0_4 = arith.constant 0 : index
    %5 = vector.load %arg2[%c0_3, %c0_4] : memref<1x128xf32, #tpu.memory_space<vmem>>, vector<1x128xf32>
    %cst = arith.constant dense<0.000000e+00> : vector<128xf32>
    %6 = vector.multi_reduction <add>, %4, %cst [0] : vector<256x128xf32> to vector<128xf32>
    %7 = vector.shape_cast %6 : vector<128xf32> to vector<1x128xf32>
    %8 = arith.addf %5, %7 : vector<1x128xf32>
    %c0_5 = arith.constant 0 : index
    %c0_6 = arith.constant 0 : index
    %9 = vector.load %arg2[%c0_5, %c0_6] : memref<1x128xf32, #tpu.memory_space<vmem>>, vector<1x128xf32>
    tpu.vector_store %arg2[%c0_5, %c0_6], %8 {strides = array<i32>} : memref<1x128xf32, #tpu.memory_space<vmem>>, vector<1x128xf32>,
    %c0_7 = arith.constant 0 : index
    %c0_8 = arith.constant 0 : index
    %10 = vector.load %arg3[%c0_7, %c0_8] : memref<1x128xf32, #tpu.memory_space<vmem>>, vector<1x128xf32>
    %11 = arith.mulf %4, %4 : vector<256x128xf32>
    %cst_9 = arith.constant dense<0.000000e+00> : vector<128xf32>
    %12 = vector.multi_reduction <add>, %11, %cst_9 [0] : vector<256x128xf32> to vector<128xf32>
    %13 = vector.shape_cast %12 : vector<128xf32> to vector<1x128xf32>
    %14 = arith.addf %10, %13 : vector<1x128xf32>
    %c0_10 = arith.constant 0 : index
    %c0_11 = arith.constant 0 : index
    %15 = vector.load %arg3[%c0_10, %c0_11] : memref<1x128xf32, #tpu.memory_space<vmem>>, vector<1x128xf32>
    tpu.vector_store %arg3[%c0_10, %c0_11], %14 {strides = array<i32>} : memref<1x128xf32, #tpu.memory_space<vmem>>, vector<1x128xf32>,
    return
  }
  func.func @transform_0(%arg0: i32) -> (i32, i32, i32) {
    %c0_i32 = arith.constant 0 : i32
    %c0_i32_0 = arith.constant 0 : i32
    %c0_i32_1 = arith.constant 0 : i32
    return %arg0, %c0_i32, %c0_i32_0 : i32, i32, i32
  }
  func.func @transform_1(%arg0: i32) -> (i32, i32) {
    %c0_i32 = arith.constant 0 : i32
    %c0_i32_0 = arith.constant 0 : i32
    %c0_i32_1 = arith.constant 0 : i32
    return %c0_i32, %c0_i32_0 : i32, i32
  }
  func.func @transform_2(%arg0: i32) -> (i32, i32) {
    %c0_i32 = arith.constant 0 : i32
    %c0_i32_0 = arith.constant 0 : i32
    %c0_i32_1 = arith.constant 0 : i32
    return %c0_i32, %c0_i32_0 : i32, i32
  }
}

module attributes {stable_mosaic.version = 11 : i64} {
  func.func @kernel(%arg0: i32, %arg1: i32, %arg2: memref<1x1x8x8x128xbf16, #tpu.memory_space<vmem>>, %arg3: memref<1x128xf32, #tpu.memory_space<vmem>>, %arg4: memref<1x128xf32, #tpu.memory_space<vmem>>, %arg5: memref<1152x128xbf16, #tpu.memory_space<vmem>>, %arg6: memref<1x8x8x128xf32, #tpu.memory_space<vmem>>, %arg7: memref<1x8x8x128xf32, #tpu.memory_space<vmem>>, %arg8: memref<1x10x10x128xf32, #tpu.memory_space<vmem>>) attributes {dimension_semantics = [#tpu.dimension_semantics<parallel>, #tpu.dimension_semantics<parallel>], iteration_bounds = array<i64: 1, 2>, scalar_prefetch = 0 : i64, scratch_operands = 1 : i64, tpu.core_type = #tpu.core_type<tc>, window_params = [{transform_indices = @transform_0, window_bounds = array<i64: 1, 1, 8, 8, 128>}, {pipeline_mode = #tpu.pipeline_mode<synchronous>, transform_indices = @transform_1, window_bounds = array<i64: 1, 128>}, {pipeline_mode = #tpu.pipeline_mode<synchronous>, transform_indices = @transform_2, window_bounds = array<i64: 1, 128>}, {transform_indices = @transform_3, window_bounds = array<i64: 1152, 128>}, {transform_indices = @transform_4, window_bounds = array<i64: 1, 8, 8, 128>}, {transform_indices = @transform_5, window_bounds = array<i64: 1, 8, 8, 128>}]} {
    %c0 = arith.constant 0 : index
    %c0_0 = arith.constant 0 : index
    %0 = vector.load %arg3[%c0, %c0_0] : memref<1x128xf32, #tpu.memory_space<vmem>>, vector<1x128xf32>
    %c0_1 = arith.constant 0 : index
    %c0_2 = arith.constant 0 : index
    %1 = vector.load %arg4[%c0_1, %c0_2] : memref<1x128xf32, #tpu.memory_space<vmem>>, vector<1x128xf32>
    %cst = arith.constant 0.000000e+00 : f32
    %2 = vector.broadcast %cst : f32 to vector<1x10x128xf32>
    %cst_3 = arith.constant 0.000000e+00 : f32
    %3 = vector.broadcast %cst_3 : f32 to vector<8x1x128xf32>
    %c0_4 = arith.constant 0 : index
    %c0_5 = arith.constant 0 : index
    %c0_6 = arith.constant 0 : index
    %c0_7 = arith.constant 0 : index
    %4 = vector.load %arg8[%c0_4, %c0_5, %c0_6, %c0_7] : memref<1x10x10x128xf32, #tpu.memory_space<vmem>>, vector<1x1x10x128xf32>
    %5 = vector.shape_cast %4 : vector<1x1x10x128xf32> to vector<1x10x128xf32>
    %6 = vector.shape_cast %2 : vector<1x10x128xf32> to vector<1x1x10x128xf32>
    tpu.vector_store %arg8[%c0_4, %c0_5, %c0_6, %c0_7], %6 {strides = array<i32>} : memref<1x10x10x128xf32, #tpu.memory_space<vmem>>, vector<1x1x10x128xf32>,
    %c0_8 = arith.constant 0 : index
    %c9 = arith.constant 9 : index
    %c0_9 = arith.constant 0 : index
    %c0_10 = arith.constant 0 : index
    %7 = vector.load %arg8[%c0_8, %c9, %c0_9, %c0_10] : memref<1x10x10x128xf32, #tpu.memory_space<vmem>>, vector<1x1x10x128xf32>
    %8 = vector.shape_cast %7 : vector<1x1x10x128xf32> to vector<1x10x128xf32>
    %9 = vector.shape_cast %2 : vector<1x10x128xf32> to vector<1x1x10x128xf32>
    tpu.vector_store %arg8[%c0_8, %c9, %c0_9, %c0_10], %9 {strides = array<i32>} : memref<1x10x10x128xf32, #tpu.memory_space<vmem>>, vector<1x1x10x128xf32>,
    %c0_11 = arith.constant 0 : index
    %c1 = arith.constant 1 : index
    %c0_12 = arith.constant 0 : index
    %c0_13 = arith.constant 0 : index
    %10 = vector.load %arg8[%c0_11, %c1, %c0_12, %c0_13] : memref<1x10x10x128xf32, #tpu.memory_space<vmem>>, vector<1x8x1x128xf32>
    %11 = vector.shape_cast %10 : vector<1x8x1x128xf32> to vector<8x1x128xf32>
    %12 = vector.shape_cast %3 : vector<8x1x128xf32> to vector<1x8x1x128xf32>
    tpu.vector_store %arg8[%c0_11, %c1, %c0_12, %c0_13], %12 {strides = array<i32>} : memref<1x10x10x128xf32, #tpu.memory_space<vmem>>, vector<1x8x1x128xf32>,
    %c0_14 = arith.constant 0 : index
    %c1_15 = arith.constant 1 : index
    %c9_16 = arith.constant 9 : index
    %c0_17 = arith.constant 0 : index
    %13 = vector.load %arg8[%c0_14, %c1_15, %c9_16, %c0_17] : memref<1x10x10x128xf32, #tpu.memory_space<vmem>>, vector<1x8x1x128xf32>
    %14 = vector.shape_cast %13 : vector<1x8x1x128xf32> to vector<8x1x128xf32>
    %15 = vector.shape_cast %3 : vector<8x1x128xf32> to vector<1x8x1x128xf32>
    tpu.vector_store %arg8[%c0_14, %c1_15, %c9_16, %c0_17], %15 {strides = array<i32>} : memref<1x10x10x128xf32, #tpu.memory_space<vmem>>, vector<1x8x1x128xf32>,
    %c0_18 = arith.constant 0 : index
    %c0_19 = arith.constant 0 : index
    %c0_20 = arith.constant 0 : index
    %c0_21 = arith.constant 0 : index
    %c0_22 = arith.constant 0 : index
    %16 = vector.load %arg2[%c0_18, %c0_19, %c0_20, %c0_21, %c0_22] : memref<1x1x8x8x128xbf16, #tpu.memory_space<vmem>>, vector<1x1x8x8x128xbf16>
    %17 = vector.shape_cast %16 : vector<1x1x8x8x128xbf16> to vector<8x8x128xbf16>
    %18 = arith.extf %17 : vector<8x8x128xbf16> to vector<8x8x128xf32>
    %19 = vector.shape_cast %0 : vector<1x128xf32> to vector<1x1x128xf32>
    %20 = vector.broadcast %19 : vector<1x1x128xf32> to vector<8x8x128xf32>
    %21 = arith.mulf %18, %20 : vector<8x8x128xf32>
    %22 = vector.shape_cast %1 : vector<1x128xf32> to vector<1x1x128xf32>
    %23 = vector.broadcast %22 : vector<1x1x128xf32> to vector<8x8x128xf32>
    %24 = arith.addf %21, %23 : vector<8x8x128xf32>
    %cst_23 = arith.constant 0.000000e+00 : f32
    %25 = vector.broadcast %cst_23 : f32 to vector<8x8x128xf32>
    %26 = arith.maximumf %24, %25 : vector<8x8x128xf32>
    %c0_24 = arith.constant 0 : index
    %c1_25 = arith.constant 1 : index
    %c1_26 = arith.constant 1 : index
    %c0_27 = arith.constant 0 : index
    %27 = vector.load %arg8[%c0_24, %c1_25, %c1_26, %c0_27] : memref<1x10x10x128xf32, #tpu.memory_space<vmem>>, vector<1x8x8x128xf32>
    %28 = vector.shape_cast %27 : vector<1x8x8x128xf32> to vector<8x8x128xf32>
    %29 = vector.shape_cast %26 : vector<8x8x128xf32> to vector<1x8x8x128xf32>
    tpu.vector_store %arg8[%c0_24, %c1_25, %c1_26, %c0_27], %29 {strides = array<i32>} : memref<1x10x10x128xf32, #tpu.memory_space<vmem>>, vector<1x8x8x128xf32>,
    %cst_28 = arith.constant 0.000000e+00 : f32
    %30 = vector.broadcast %cst_28 : f32 to vector<64x128xf32>
    %c0_29 = arith.constant 0 : index
    %c0_30 = arith.constant 0 : index
    %c0_31 = arith.constant 0 : index
    %c0_32 = arith.constant 0 : index
    %31 = vector.load %arg8[%c0_29, %c0_30, %c0_31, %c0_32] : memref<1x10x10x128xf32, #tpu.memory_space<vmem>>, vector<1x8x8x128xf32>
    %32 = vector.shape_cast %31 : vector<1x8x8x128xf32> to vector<8x8x128xf32>
    %33 = vector.shape_cast %32 : vector<8x8x128xf32> to vector<64x128xf32>
    %34 = arith.truncf %33 : vector<64x128xf32> to vector<64x128xbf16>
    %c0_33 = arith.constant 0 : index
    %c0_34 = arith.constant 0 : index
    %35 = vector.load %arg5[%c0_33, %c0_34] : memref<1152x128xbf16, #tpu.memory_space<vmem>>, vector<128x128xbf16>
    %cst_35 = arith.constant dense<0.000000e+00> : vector<64x128xf32>
    %36 = tpu.matmul %34, %35, %cst_35 {dimension_numbers = #tpu.dot_dimension_numbers<[1], [0], [0], [1], [0, 0, 1, 1], [], []>} : vector<64x128xbf16>, vector<128x128xbf16>, vector<64x128xf32> -> vector<64x128xf32>
    %37 = arith.addf %30, %36 : vector<64x128xf32>
    %c0_36 = arith.constant 0 : index
    %c0_37 = arith.constant 0 : index
    %c1_38 = arith.constant 1 : index
    %c0_39 = arith.constant 0 : index
    %38 = vector.load %arg8[%c0_36, %c0_37, %c1_38, %c0_39] : memref<1x10x10x128xf32, #tpu.memory_space<vmem>>, vector<1x8x8x128xf32>
    %39 = vector.shape_cast %38 : vector<1x8x8x128xf32> to vector<8x8x128xf32>
    %40 = vector.shape_cast %39 : vector<8x8x128xf32> to vector<64x128xf32>
    %41 = arith.truncf %40 : vector<64x128xf32> to vector<64x128xbf16>
    %c128 = arith.constant 128 : index
    %c0_40 = arith.constant 0 : index
    %42 = vector.load %arg5[%c128, %c0_40] : memref<1152x128xbf16, #tpu.memory_space<vmem>>, vector<128x128xbf16>
    %cst_41 = arith.constant dense<0.000000e+00> : vector<64x128xf32>
    %43 = tpu.matmul %41, %42, %cst_41 {dimension_numbers = #tpu.dot_dimension_numbers<[1], [0], [0], [1], [0, 0, 1, 1], [], []>} : vector<64x128xbf16>, vector<128x128xbf16>, vector<64x128xf32> -> vector<64x128xf32>
    %44 = arith.addf %37, %43 : vector<64x128xf32>
    %c0_42 = arith.constant 0 : index
    %c0_43 = arith.constant 0 : index
    %c2 = arith.constant 2 : index
    %c0_44 = arith.constant 0 : index
    %45 = vector.load %arg8[%c0_42, %c0_43, %c2, %c0_44] : memref<1x10x10x128xf32, #tpu.memory_space<vmem>>, vector<1x8x8x128xf32>
    %46 = vector.shape_cast %45 : vector<1x8x8x128xf32> to vector<8x8x128xf32>
    %47 = vector.shape_cast %46 : vector<8x8x128xf32> to vector<64x128xf32>
    %48 = arith.truncf %47 : vector<64x128xf32> to vector<64x128xbf16>
    %c256 = arith.constant 256 : index
    %c0_45 = arith.constant 0 : index
    %49 = vector.load %arg5[%c256, %c0_45] : memref<1152x128xbf16, #tpu.memory_space<vmem>>, vector<128x128xbf16>
    %cst_46 = arith.constant dense<0.000000e+00> : vector<64x128xf32>
    %50 = tpu.matmul %48, %49, %cst_46 {dimension_numbers = #tpu.dot_dimension_numbers<[1], [0], [0], [1], [0, 0, 1, 1], [], []>} : vector<64x128xbf16>, vector<128x128xbf16>, vector<64x128xf32> -> vector<64x128xf32>
    %51 = arith.addf %44, %50 : vector<64x128xf32>
    %c0_47 = arith.constant 0 : index
    %c1_48 = arith.constant 1 : index
    %c0_49 = arith.constant 0 : index
    %c0_50 = arith.constant 0 : index
    %52 = vector.load %arg8[%c0_47, %c1_48, %c0_49, %c0_50] : memref<1x10x10x128xf32, #tpu.memory_space<vmem>>, vector<1x8x8x128xf32>
    %53 = vector.shape_cast %52 : vector<1x8x8x128xf32> to vector<8x8x128xf32>
    %54 = vector.shape_cast %53 : vector<8x8x128xf32> to vector<64x128xf32>
    %55 = arith.truncf %54 : vector<64x128xf32> to vector<64x128xbf16>
    %c384 = arith.constant 384 : index
    %c0_51 = arith.constant 0 : index
    %56 = vector.load %arg5[%c384, %c0_51] : memref<1152x128xbf16, #tpu.memory_space<vmem>>, vector<128x128xbf16>
    %cst_52 = arith.constant dense<0.000000e+00> : vector<64x128xf32>
    %57 = tpu.matmul %55, %56, %cst_52 {dimension_numbers = #tpu.dot_dimension_numbers<[1], [0], [0], [1], [0, 0, 1, 1], [], []>} : vector<64x128xbf16>, vector<128x128xbf16>, vector<64x128xf32> -> vector<64x128xf32>
    %58 = arith.addf %51, %57 : vector<64x128xf32>
    %c0_53 = arith.constant 0 : index
    %c1_54 = arith.constant 1 : index
    %c1_55 = arith.constant 1 : index
    %c0_56 = arith.constant 0 : index
    %59 = vector.load %arg8[%c0_53, %c1_54, %c1_55, %c0_56] : memref<1x10x10x128xf32, #tpu.memory_space<vmem>>, vector<1x8x8x128xf32>
    %60 = vector.shape_cast %59 : vector<1x8x8x128xf32> to vector<8x8x128xf32>
    %61 = vector.shape_cast %60 : vector<8x8x128xf32> to vector<64x128xf32>
    %62 = arith.truncf %61 : vector<64x128xf32> to vector<64x128xbf16>
    %c512 = arith.constant 512 : index
    %c0_57 = arith.constant 0 : index
    %63 = vector.load %arg5[%c512, %c0_57] : memref<1152x128xbf16, #tpu.memory_space<vmem>>, vector<128x128xbf16>
    %cst_58 = arith.constant dense<0.000000e+00> : vector<64x128xf32>
    %64 = tpu.matmul %62, %63, %cst_58 {dimension_numbers = #tpu.dot_dimension_numbers<[1], [0], [0], [1], [0, 0, 1, 1], [], []>} : vector<64x128xbf16>, vector<128x128xbf16>, vector<64x128xf32> -> vector<64x128xf32>
    %65 = arith.addf %58, %64 : vector<64x128xf32>
    %c0_59 = arith.constant 0 : index
    %c1_60 = arith.constant 1 : index
    %c2_61 = arith.constant 2 : index
    %c0_62 = arith.constant 0 : index
    %66 = vector.load %arg8[%c0_59, %c1_60, %c2_61, %c0_62] : memref<1x10x10x128xf32, #tpu.memory_space<vmem>>, vector<1x8x8x128xf32>
    %67 = vector.shape_cast %66 : vector<1x8x8x128xf32> to vector<8x8x128xf32>
    %68 = vector.shape_cast %67 : vector<8x8x128xf32> to vector<64x128xf32>
    %69 = arith.truncf %68 : vector<64x128xf32> to vector<64x128xbf16>
    %c640 = arith.constant 640 : index
    %c0_63 = arith.constant 0 : index
    %70 = vector.load %arg5[%c640, %c0_63] : memref<1152x128xbf16, #tpu.memory_space<vmem>>, vector<128x128xbf16>
    %cst_64 = arith.constant dense<0.000000e+00> : vector<64x128xf32>
    %71 = tpu.matmul %69, %70, %cst_64 {dimension_numbers = #tpu.dot_dimension_numbers<[1], [0], [0], [1], [0, 0, 1, 1], [], []>} : vector<64x128xbf16>, vector<128x128xbf16>, vector<64x128xf32> -> vector<64x128xf32>
    %72 = arith.addf %65, %71 : vector<64x128xf32>
    %c0_65 = arith.constant 0 : index
    %c2_66 = arith.constant 2 : index
    %c0_67 = arith.constant 0 : index
    %c0_68 = arith.constant 0 : index
    %73 = vector.load %arg8[%c0_65, %c2_66, %c0_67, %c0_68] : memref<1x10x10x128xf32, #tpu.memory_space<vmem>>, vector<1x8x8x128xf32>
    %74 = vector.shape_cast %73 : vector<1x8x8x128xf32> to vector<8x8x128xf32>
    %75 = vector.shape_cast %74 : vector<8x8x128xf32> to vector<64x128xf32>
    %76 = arith.truncf %75 : vector<64x128xf32> to vector<64x128xbf16>
    %c768 = arith.constant 768 : index
    %c0_69 = arith.constant 0 : index
    %77 = vector.load %arg5[%c768, %c0_69] : memref<1152x128xbf16, #tpu.memory_space<vmem>>, vector<128x128xbf16>
    %cst_70 = arith.constant dense<0.000000e+00> : vector<64x128xf32>
    %78 = tpu.matmul %76, %77, %cst_70 {dimension_numbers = #tpu.dot_dimension_numbers<[1], [0], [0], [1], [0, 0, 1, 1], [], []>} : vector<64x128xbf16>, vector<128x128xbf16>, vector<64x128xf32> -> vector<64x128xf32>
    %79 = arith.addf %72, %78 : vector<64x128xf32>
    %c0_71 = arith.constant 0 : index
    %c2_72 = arith.constant 2 : index
    %c1_73 = arith.constant 1 : index
    %c0_74 = arith.constant 0 : index
    %80 = vector.load %arg8[%c0_71, %c2_72, %c1_73, %c0_74] : memref<1x10x10x128xf32, #tpu.memory_space<vmem>>, vector<1x8x8x128xf32>
    %81 = vector.shape_cast %80 : vector<1x8x8x128xf32> to vector<8x8x128xf32>
    %82 = vector.shape_cast %81 : vector<8x8x128xf32> to vector<64x128xf32>
    %83 = arith.truncf %82 : vector<64x128xf32> to vector<64x128xbf16>
    %c896 = arith.constant 896 : index
    %c0_75 = arith.constant 0 : index
    %84 = vector.load %arg5[%c896, %c0_75] : memref<1152x128xbf16, #tpu.memory_space<vmem>>, vector<128x128xbf16>
    %cst_76 = arith.constant dense<0.000000e+00> : vector<64x128xf32>
    %85 = tpu.matmul %83, %84, %cst_76 {dimension_numbers = #tpu.dot_dimension_numbers<[1], [0], [0], [1], [0, 0, 1, 1], [], []>} : vector<64x128xbf16>, vector<128x128xbf16>, vector<64x128xf32> -> vector<64x128xf32>
    %86 = arith.addf %79, %85 : vector<64x128xf32>
    %c0_77 = arith.constant 0 : index
    %c2_78 = arith.constant 2 : index
    %c2_79 = arith.constant 2 : index
    %c0_80 = arith.constant 0 : index
    %87 = vector.load %arg8[%c0_77, %c2_78, %c2_79, %c0_80] : memref<1x10x10x128xf32, #tpu.memory_space<vmem>>, vector<1x8x8x128xf32>
    %88 = vector.shape_cast %87 : vector<1x8x8x128xf32> to vector<8x8x128xf32>
    %89 = vector.shape_cast %88 : vector<8x8x128xf32> to vector<64x128xf32>
    %90 = arith.truncf %89 : vector<64x128xf32> to vector<64x128xbf16>
    %c1024 = arith.constant 1024 : index
    %c0_81 = arith.constant 0 : index
    %91 = vector.load %arg5[%c1024, %c0_81] : memref<1152x128xbf16, #tpu.memory_space<vmem>>, vector<128x128xbf16>
    %cst_82 = arith.constant dense<0.000000e+00> : vector<64x128xf32>
    %92 = tpu.matmul %90, %91, %cst_82 {dimension_numbers = #tpu.dot_dimension_numbers<[1], [0], [0], [1], [0, 0, 1, 1], [], []>} : vector<64x128xbf16>, vector<128x128xbf16>, vector<64x128xf32> -> vector<64x128xf32>
    %93 = arith.addf %86, %92 : vector<64x128xf32>
    %c0_83 = arith.constant 0 : index
    %c0_84 = arith.constant 0 : index
    %c0_85 = arith.constant 0 : index
    %c0_86 = arith.constant 0 : index
    %94 = vector.load %arg6[%c0_83, %c0_84, %c0_85, %c0_86] : memref<1x8x8x128xf32, #tpu.memory_space<vmem>>, vector<1x8x8x128xf32>
    %95 = vector.shape_cast %94 : vector<1x8x8x128xf32> to vector<64x128xf32>
    %96 = arith.addf %93, %95 : vector<64x128xf32>
    %97 = vector.shape_cast %96 : vector<64x128xf32> to vector<1x8x8x128xf32>
    %c0_87 = arith.constant 0 : index
    %c0_88 = arith.constant 0 : index
    %c0_89 = arith.constant 0 : index
    %c0_90 = arith.constant 0 : index
    %98 = vector.load %arg7[%c0_87, %c0_88, %c0_89, %c0_90] : memref<1x8x8x128xf32, #tpu.memory_space<vmem>>, vector<1x8x8x128xf32>
    tpu.vector_store %arg7[%c0_87, %c0_88, %c0_89, %c0_90], %97 {strides = array<i32>} : memref<1x8x8x128xf32, #tpu.memory_space<vmem>>, vector<1x8x8x128xf32>,
    return
  }
  func.func @transform_0(%arg0: i32, %arg1: i32) -> (i32, i32, i32, i32, i32) {
    %c0_i32 = arith.constant 0 : i32
    %c0_i32_0 = arith.constant 0 : i32
    %c0_i32_1 = arith.constant 0 : i32
    %c0_i32_2 = arith.constant 0 : i32
    %c0_i32_3 = arith.constant 0 : i32
    return %arg1, %c0_i32, %c0_i32_0, %c0_i32_1, %c0_i32_2 : i32, i32, i32, i32, i32
  }
  func.func @transform_1(%arg0: i32, %arg1: i32) -> (i32, i32) {
    %c0_i32 = arith.constant 0 : i32
    %c0_i32_0 = arith.constant 0 : i32
    %c0_i32_1 = arith.constant 0 : i32
    return %c0_i32, %c0_i32_0 : i32, i32
  }
  func.func @transform_2(%arg0: i32, %arg1: i32) -> (i32, i32) {
    %c0_i32 = arith.constant 0 : i32
    %c0_i32_0 = arith.constant 0 : i32
    %c0_i32_1 = arith.constant 0 : i32
    return %c0_i32, %c0_i32_0 : i32, i32
  }
  func.func @transform_3(%arg0: i32, %arg1: i32) -> (i32, i32) {
    %c0_i32 = arith.constant 0 : i32
    %c0_i32_0 = arith.constant 0 : i32
    return %c0_i32, %arg0 : i32, i32
  }
  func.func @transform_4(%arg0: i32, %arg1: i32) -> (i32, i32, i32, i32) {
    %c0_i32 = arith.constant 0 : i32
    %c0_i32_0 = arith.constant 0 : i32
    %c0_i32_1 = arith.constant 0 : i32
    return %arg1, %c0_i32, %c0_i32_0, %arg0 : i32, i32, i32, i32
  }
  func.func @transform_5(%arg0: i32, %arg1: i32) -> (i32, i32, i32, i32) {
    %c0_i32 = arith.constant 0 : i32
    %c0_i32_0 = arith.constant 0 : i32
    %c0_i32_1 = arith.constant 0 : i32
    return %arg1, %c0_i32, %c0_i32_0, %arg0 : i32, i32, i32, i32
  }
}

module attributes {stable_mosaic.version = 11 : i64} {
  func.func @kernel(%arg0: i32, %arg1: i32, %arg2: memref<1x4x8x8x128xf32, #tpu.memory_space<vmem>>, %arg3: memref<1x128xf32, #tpu.memory_space<vmem>>, %arg4: memref<1x128xf32, #tpu.memory_space<vmem>>, %arg5: memref<1152x128xbf16, #tpu.memory_space<vmem>>, %arg6: memref<128x128xbf16, #tpu.memory_space<vmem>>, %arg7: memref<1x8x8x128xbf16, #tpu.memory_space<vmem>>, %arg8: memref<1x8x8x128xf32, #tpu.memory_space<vmem>>, %arg9: memref<1x128xf32, #tpu.memory_space<vmem>>, %arg10: memref<1x128xf32, #tpu.memory_space<vmem>>, %arg11: memref<4x10x10x128xf32, #tpu.memory_space<vmem>>) attributes {dimension_semantics = [#tpu.dimension_semantics<parallel>, #tpu.dimension_semantics<arbitrary>], iteration_bounds = array<i64: 1, 2>, scalar_prefetch = 0 : i64, scratch_operands = 1 : i64, tpu.core_type = #tpu.core_type<tc>, window_params = [{transform_indices = @transform_0, window_bounds = array<i64: 1, 4, 8, 8, 128>}, {pipeline_mode = #tpu.pipeline_mode<synchronous>, transform_indices = @transform_1, window_bounds = array<i64: 1, 128>}, {pipeline_mode = #tpu.pipeline_mode<synchronous>, transform_indices = @transform_2, window_bounds = array<i64: 1, 128>}, {transform_indices = @transform_3, window_bounds = array<i64: 1152, 128>}, {transform_indices = @transform_4, window_bounds = array<i64: 128, 128>}, {transform_indices = @transform_5, window_bounds = array<i64: 1, 8, 8, 128>}, {transform_indices = @transform_6, window_bounds = array<i64: 1, 8, 8, 128>}, {transform_indices = @transform_7, window_bounds = array<i64: 1, 128>}, {transform_indices = @transform_8, window_bounds = array<i64: 1, 128>}]} {
    %c0_i32 = arith.constant 0 : i32
    %0 = arith.cmpi eq, %arg1, %c0_i32 : i32
    %1 = arith.extui %0 : i1 to i32
    %c0_i32_0 = arith.constant 0 : i32
    %2 = arith.cmpi ne, %1, %c0_i32_0 : i32
    scf.if %2 {
      %cst_182 = arith.constant 0.000000e+00 : f32
      %189 = vector.broadcast %cst_182 : f32 to vector<1x128xf32>
      %c0_183 = arith.constant 0 : index
      %c0_184 = arith.constant 0 : index
      %190 = vector.load %arg9[%c0_183, %c0_184] : memref<1x128xf32, #tpu.memory_space<vmem>>, vector<1x128xf32>
      tpu.vector_store %arg9[%c0_183, %c0_184], %189 {strides = array<i32>} : memref<1x128xf32, #tpu.memory_space<vmem>>, vector<1x128xf32>,
      %cst_185 = arith.constant 0.000000e+00 : f32
      %191 = vector.broadcast %cst_185 : f32 to vector<1x128xf32>
      %c0_186 = arith.constant 0 : index
      %c0_187 = arith.constant 0 : index
      %192 = vector.load %arg10[%c0_186, %c0_187] : memref<1x128xf32, #tpu.memory_space<vmem>>, vector<1x128xf32>
      tpu.vector_store %arg10[%c0_186, %c0_187], %191 {strides = array<i32>} : memref<1x128xf32, #tpu.memory_space<vmem>>, vector<1x128xf32>,
    } else {
    }
    %c0 = arith.constant 0 : index
    %c0_1 = arith.constant 0 : index
    %3 = vector.load %arg3[%c0, %c0_1] : memref<1x128xf32, #tpu.memory_space<vmem>>, vector<1x128xf32>
    %c0_2 = arith.constant 0 : index
    %c0_3 = arith.constant 0 : index
    %4 = vector.load %arg4[%c0_2, %c0_3] : memref<1x128xf32, #tpu.memory_space<vmem>>, vector<1x128xf32>
    %cst = arith.constant 0.000000e+00 : f32
    %5 = vector.broadcast %cst : f32 to vector<1x10x128xf32>
    %cst_4 = arith.constant 0.000000e+00 : f32
    %6 = vector.broadcast %cst_4 : f32 to vector<8x1x128xf32>
    %c0_5 = arith.constant 0 : index
    %c0_6 = arith.constant 0 : index
    %c0_7 = arith.constant 0 : index
    %c0_8 = arith.constant 0 : index
    %7 = vector.load %arg11[%c0_5, %c0_6, %c0_7, %c0_8] : memref<4x10x10x128xf32, #tpu.memory_space<vmem>>, vector<1x1x10x128xf32>
    %8 = vector.shape_cast %7 : vector<1x1x10x128xf32> to vector<1x10x128xf32>
    %9 = vector.shape_cast %5 : vector<1x10x128xf32> to vector<1x1x10x128xf32>
    tpu.vector_store %arg11[%c0_5, %c0_6, %c0_7, %c0_8], %9 {strides = array<i32>} : memref<4x10x10x128xf32, #tpu.memory_space<vmem>>, vector<1x1x10x128xf32>,
    %c0_9 = arith.constant 0 : index
    %c9 = arith.constant 9 : index
    %c0_10 = arith.constant 0 : index
    %c0_11 = arith.constant 0 : index
    %10 = vector.load %arg11[%c0_9, %c9, %c0_10, %c0_11] : memref<4x10x10x128xf32, #tpu.memory_space<vmem>>, vector<1x1x10x128xf32>
    %11 = vector.shape_cast %10 : vector<1x1x10x128xf32> to vector<1x10x128xf32>
    %12 = vector.shape_cast %5 : vector<1x10x128xf32> to vector<1x1x10x128xf32>
    tpu.vector_store %arg11[%c0_9, %c9, %c0_10, %c0_11], %12 {strides = array<i32>} : memref<4x10x10x128xf32, #tpu.memory_space<vmem>>, vector<1x1x10x128xf32>,
    %c0_12 = arith.constant 0 : index
    %c1 = arith.constant 1 : index
    %c0_13 = arith.constant 0 : index
    %c0_14 = arith.constant 0 : index
    %13 = vector.load %arg11[%c0_12, %c1, %c0_13, %c0_14] : memref<4x10x10x128xf32, #tpu.memory_space<vmem>>, vector<1x8x1x128xf32>
    %14 = vector.shape_cast %13 : vector<1x8x1x128xf32> to vector<8x1x128xf32>
    %15 = vector.shape_cast %6 : vector<8x1x128xf32> to vector<1x8x1x128xf32>
    tpu.vector_store %arg11[%c0_12, %c1, %c0_13, %c0_14], %15 {strides = array<i32>} : memref<4x10x10x128xf32, #tpu.memory_space<vmem>>, vector<1x8x1x128xf32>,
    %c0_15 = arith.constant 0 : index
    %c1_16 = arith.constant 1 : index
    %c9_17 = arith.constant 9 : index
    %c0_18 = arith.constant 0 : index
    %16 = vector.load %arg11[%c0_15, %c1_16, %c9_17, %c0_18] : memref<4x10x10x128xf32, #tpu.memory_space<vmem>>, vector<1x8x1x128xf32>
    %17 = vector.shape_cast %16 : vector<1x8x1x128xf32> to vector<8x1x128xf32>
    %18 = vector.shape_cast %6 : vector<8x1x128xf32> to vector<1x8x1x128xf32>
    tpu.vector_store %arg11[%c0_15, %c1_16, %c9_17, %c0_18], %18 {strides = array<i32>} : memref<4x10x10x128xf32, #tpu.memory_space<vmem>>, vector<1x8x1x128xf32>,
    %c0_19 = arith.constant 0 : index
    %c0_20 = arith.constant 0 : index
    %c0_21 = arith.constant 0 : index
    %c0_22 = arith.constant 0 : index
    %c0_23 = arith.constant 0 : index
    %19 = vector.load %arg2[%c0_19, %c0_20, %c0_21, %c0_22, %c0_23] : memref<1x4x8x8x128xf32, #tpu.memory_space<vmem>>, vector<1x1x8x8x128xf32>
    %20 = vector.shape_cast %19 : vector<1x1x8x8x128xf32> to vector<8x8x128xf32>
    %21 = vector.shape_cast %3 : vector<1x128xf32> to vector<1x1x128xf32>
    %22 = vector.broadcast %21 : vector<1x1x128xf32> to vector<8x8x128xf32>
    %23 = arith.mulf %20, %22 : vector<8x8x128xf32>
    %24 = vector.shape_cast %4 : vector<1x128xf32> to vector<1x1x128xf32>
    %25 = vector.broadcast %24 : vector<1x1x128xf32> to vector<8x8x128xf32>
    %26 = arith.addf %23, %25 : vector<8x8x128xf32>
    %cst_24 = arith.constant 0.000000e+00 : f32
    %27 = vector.broadcast %cst_24 : f32 to vector<8x8x128xf32>
    %28 = arith.maximumf %26, %27 : vector<8x8x128xf32>
    %c0_25 = arith.constant 0 : index
    %c1_26 = arith.constant 1 : index
    %c1_27 = arith.constant 1 : index
    %c0_28 = arith.constant 0 : index
    %29 = vector.load %arg11[%c0_25, %c1_26, %c1_27, %c0_28] : memref<4x10x10x128xf32, #tpu.memory_space<vmem>>, vector<1x8x8x128xf32>
    %30 = vector.shape_cast %29 : vector<1x8x8x128xf32> to vector<8x8x128xf32>
    %31 = vector.shape_cast %28 : vector<8x8x128xf32> to vector<1x8x8x128xf32>
    tpu.vector_store %arg11[%c0_25, %c1_26, %c1_27, %c0_28], %31 {strides = array<i32>} : memref<4x10x10x128xf32, #tpu.memory_space<vmem>>, vector<1x8x8x128xf32>,
    %c1_29 = arith.constant 1 : index
    %c0_30 = arith.constant 0 : index
    %c0_31 = arith.constant 0 : index
    %c0_32 = arith.constant 0 : index
    %32 = vector.load %arg11[%c1_29, %c0_30, %c0_31, %c0_32] : memref<4x10x10x128xf32, #tpu.memory_space<vmem>>, vector<1x1x10x128xf32>
    %33 = vector.shape_cast %32 : vector<1x1x10x128xf32> to vector<1x10x128xf32>
    %34 = vector.shape_cast %5 : vector<1x10x128xf32> to vector<1x1x10x128xf32>
    tpu.vector_store %arg11[%c1_29, %c0_30, %c0_31, %c0_32], %34 {strides = array<i32>} : memref<4x10x10x128xf32, #tpu.memory_space<vmem>>, vector<1x1x10x128xf32>,
    %c1_33 = arith.constant 1 : index
    %c9_34 = arith.constant 9 : index
    %c0_35 = arith.constant 0 : index
    %c0_36 = arith.constant 0 : index
    %35 = vector.load %arg11[%c1_33, %c9_34, %c0_35, %c0_36] : memref<4x10x10x128xf32, #tpu.memory_space<vmem>>, vector<1x1x10x128xf32>
    %36 = vector.shape_cast %35 : vector<1x1x10x128xf32> to vector<1x10x128xf32>
    %37 = vector.shape_cast %5 : vector<1x10x128xf32> to vector<1x1x10x128xf32>
    tpu.vector_store %arg11[%c1_33, %c9_34, %c0_35, %c0_36], %37 {strides = array<i32>} : memref<4x10x10x128xf32, #tpu.memory_space<vmem>>, vector<1x1x10x128xf32>,
    %c1_37 = arith.constant 1 : index
    %c1_38 = arith.constant 1 : index
    %c0_39 = arith.constant 0 : index
    %c0_40 = arith.constant 0 : index
    %38 = vector.load %arg11[%c1_37, %c1_38, %c0_39, %c0_40] : memref<4x10x10x128xf32, #tpu.memory_space<vmem>>, vector<1x8x1x128xf32>
    %39 = vector.shape_cast %38 : vector<1x8x1x128xf32> to vector<8x1x128xf32>
    %40 = vector.shape_cast %6 : vector<8x1x128xf32> to vector<1x8x1x128xf32>
    tpu.vector_store %arg11[%c1_37, %c1_38, %c0_39, %c0_40], %40 {strides = array<i32>} : memref<4x10x10x128xf32, #tpu.memory_space<vmem>>, vector<1x8x1x128xf32>,
    %c1_41 = arith.constant 1 : index
    %c1_42 = arith.constant 1 : index
    %c9_43 = arith.constant 9 : index
    %c0_44 = arith.constant 0 : index
    %41 = vector.load %arg11[%c1_41, %c1_42, %c9_43, %c0_44] : memref<4x10x10x128xf32, #tpu.memory_space<vmem>>, vector<1x8x1x128xf32>
    %42 = vector.shape_cast %41 : vector<1x8x1x128xf32> to vector<8x1x128xf32>
    %43 = vector.shape_cast %6 : vector<8x1x128xf32> to vector<1x8x1x128xf32>
    tpu.vector_store %arg11[%c1_41, %c1_42, %c9_43, %c0_44], %43 {strides = array<i32>} : memref<4x10x10x128xf32, #tpu.memory_space<vmem>>, vector<1x8x1x128xf32>,
    %c0_45 = arith.constant 0 : index
    %c1_46 = arith.constant 1 : index
    %c0_47 = arith.constant 0 : index
    %c0_48 = arith.constant 0 : index
    %c0_49 = arith.constant 0 : index
    %44 = vector.load %arg2[%c0_45, %c1_46, %c0_47, %c0_48, %c0_49] : memref<1x4x8x8x128xf32, #tpu.memory_space<vmem>>, vector<1x1x8x8x128xf32>
    %45 = vector.shape_cast %44 : vector<1x1x8x8x128xf32> to vector<8x8x128xf32>
    %46 = vector.shape_cast %3 : vector<1x128xf32> to vector<1x1x128xf32>
    %47 = vector.broadcast %46 : vector<1x1x128xf32> to vector<8x8x128xf32>
    %48 = arith.mulf %45, %47 : vector<8x8x128xf32>
    %49 = vector.shape_cast %4 : vector<1x128xf32> to vector<1x1x128xf32>
    %50 = vector.broadcast %49 : vector<1x1x128xf32> to vector<8x8x128xf32>
    %51 = arith.addf %48, %50 : vector<8x8x128xf32>
    %cst_50 = arith.constant 0.000000e+00 : f32
    %52 = vector.broadcast %cst_50 : f32 to vector<8x8x128xf32>
    %53 = arith.maximumf %51, %52 : vector<8x8x128xf32>
    %c1_51 = arith.constant 1 : index
    %c1_52 = arith.constant 1 : index
    %c1_53 = arith.constant 1 : index
    %c0_54 = arith.constant 0 : index
    %54 = vector.load %arg11[%c1_51, %c1_52, %c1_53, %c0_54] : memref<4x10x10x128xf32, #tpu.memory_space<vmem>>, vector<1x8x8x128xf32>
    %55 = vector.shape_cast %54 : vector<1x8x8x128xf32> to vector<8x8x128xf32>
    %56 = vector.shape_cast %53 : vector<8x8x128xf32> to vector<1x8x8x128xf32>
    tpu.vector_store %arg11[%c1_51, %c1_52, %c1_53, %c0_54], %56 {strides = array<i32>} : memref<4x10x10x128xf32, #tpu.memory_space<vmem>>, vector<1x8x8x128xf32>,
    %c2 = arith.constant 2 : index
    %c0_55 = arith.constant 0 : index
    %c0_56 = arith.constant 0 : index
    %c0_57 = arith.constant 0 : index
    %57 = vector.load %arg11[%c2, %c0_55, %c0_56, %c0_57] : memref<4x10x10x128xf32, #tpu.memory_space<vmem>>, vector<1x1x10x128xf32>
    %58 = vector.shape_cast %57 : vector<1x1x10x128xf32> to vector<1x10x128xf32>
    %59 = vector.shape_cast %5 : vector<1x10x128xf32> to vector<1x1x10x128xf32>
    tpu.vector_store %arg11[%c2, %c0_55, %c0_56, %c0_57], %59 {strides = array<i32>} : memref<4x10x10x128xf32, #tpu.memory_space<vmem>>, vector<1x1x10x128xf32>,
    %c2_58 = arith.constant 2 : index
    %c9_59 = arith.constant 9 : index
    %c0_60 = arith.constant 0 : index
    %c0_61 = arith.constant 0 : index
    %60 = vector.load %arg11[%c2_58, %c9_59, %c0_60, %c0_61] : memref<4x10x10x128xf32, #tpu.memory_space<vmem>>, vector<1x1x10x128xf32>
    %61 = vector.shape_cast %60 : vector<1x1x10x128xf32> to vector<1x10x128xf32>
    %62 = vector.shape_cast %5 : vector<1x10x128xf32> to vector<1x1x10x128xf32>
    tpu.vector_store %arg11[%c2_58, %c9_59, %c0_60, %c0_61], %62 {strides = array<i32>} : memref<4x10x10x128xf32, #tpu.memory_space<vmem>>, vector<1x1x10x128xf32>,
    %c2_62 = arith.constant 2 : index
    %c1_63 = arith.constant 1 : index
    %c0_64 = arith.constant 0 : index
    %c0_65 = arith.constant 0 : index
    %63 = vector.load %arg11[%c2_62, %c1_63, %c0_64, %c0_65] : memref<4x10x10x128xf32, #tpu.memory_space<vmem>>, vector<1x8x1x128xf32>
    %64 = vector.shape_cast %63 : vector<1x8x1x128xf32> to vector<8x1x128xf32>
    %65 = vector.shape_cast %6 : vector<8x1x128xf32> to vector<1x8x1x128xf32>
    tpu.vector_store %arg11[%c2_62, %c1_63, %c0_64, %c0_65], %65 {strides = array<i32>} : memref<4x10x10x128xf32, #tpu.memory_space<vmem>>, vector<1x8x1x128xf32>,
    %c2_66 = arith.constant 2 : index
    %c1_67 = arith.constant 1 : index
    %c9_68 = arith.constant 9 : index
    %c0_69 = arith.constant 0 : index
    %66 = vector.load %arg11[%c2_66, %c1_67, %c9_68, %c0_69] : memref<4x10x10x128xf32, #tpu.memory_space<vmem>>, vector<1x8x1x128xf32>
    %67 = vector.shape_cast %66 : vector<1x8x1x128xf32> to vector<8x1x128xf32>
    %68 = vector.shape_cast %6 : vector<8x1x128xf32> to vector<1x8x1x128xf32>
    tpu.vector_store %arg11[%c2_66, %c1_67, %c9_68, %c0_69], %68 {strides = array<i32>} : memref<4x10x10x128xf32, #tpu.memory_space<vmem>>, vector<1x8x1x128xf32>,
    %c0_70 = arith.constant 0 : index
    %c2_71 = arith.constant 2 : index
    %c0_72 = arith.constant 0 : index
    %c0_73 = arith.constant 0 : index
    %c0_74 = arith.constant 0 : index
    %69 = vector.load %arg2[%c0_70, %c2_71, %c0_72, %c0_73, %c0_74] : memref<1x4x8x8x128xf32, #tpu.memory_space<vmem>>, vector<1x1x8x8x128xf32>
    %70 = vector.shape_cast %69 : vector<1x1x8x8x128xf32> to vector<8x8x128xf32>
    %71 = vector.shape_cast %3 : vector<1x128xf32> to vector<1x1x128xf32>
    %72 = vector.broadcast %71 : vector<1x1x128xf32> to vector<8x8x128xf32>
    %73 = arith.mulf %70, %72 : vector<8x8x128xf32>
    %74 = vector.shape_cast %4 : vector<1x128xf32> to vector<1x1x128xf32>
    %75 = vector.broadcast %74 : vector<1x1x128xf32> to vector<8x8x128xf32>
    %76 = arith.addf %73, %75 : vector<8x8x128xf32>
    %cst_75 = arith.constant 0.000000e+00 : f32
    %77 = vector.broadcast %cst_75 : f32 to vector<8x8x128xf32>
    %78 = arith.maximumf %76, %77 : vector<8x8x128xf32>
    %c2_76 = arith.constant 2 : index
    %c1_77 = arith.constant 1 : index
    %c1_78 = arith.constant 1 : index
    %c0_79 = arith.constant 0 : index
    %79 = vector.load %arg11[%c2_76, %c1_77, %c1_78, %c0_79] : memref<4x10x10x128xf32, #tpu.memory_space<vmem>>, vector<1x8x8x128xf32>
    %80 = vector.shape_cast %79 : vector<1x8x8x128xf32> to vector<8x8x128xf32>
    %81 = vector.shape_cast %78 : vector<8x8x128xf32> to vector<1x8x8x128xf32>
    tpu.vector_store %arg11[%c2_76, %c1_77, %c1_78, %c0_79], %81 {strides = array<i32>} : memref<4x10x10x128xf32, #tpu.memory_space<vmem>>, vector<1x8x8x128xf32>,
    %c3 = arith.constant 3 : index
    %c0_80 = arith.constant 0 : index
    %c0_81 = arith.constant 0 : index
    %c0_82 = arith.constant 0 : index
    %82 = vector.load %arg11[%c3, %c0_80, %c0_81, %c0_82] : memref<4x10x10x128xf32, #tpu.memory_space<vmem>>, vector<1x1x10x128xf32>
    %83 = vector.shape_cast %82 : vector<1x1x10x128xf32> to vector<1x10x128xf32>
    %84 = vector.shape_cast %5 : vector<1x10x128xf32> to vector<1x1x10x128xf32>
    tpu.vector_store %arg11[%c3, %c0_80, %c0_81, %c0_82], %84 {strides = array<i32>} : memref<4x10x10x128xf32, #tpu.memory_space<vmem>>, vector<1x1x10x128xf32>,
    %c3_83 = arith.constant 3 : index
    %c9_84 = arith.constant 9 : index
    %c0_85 = arith.constant 0 : index
    %c0_86 = arith.constant 0 : index
    %85 = vector.load %arg11[%c3_83, %c9_84, %c0_85, %c0_86] : memref<4x10x10x128xf32, #tpu.memory_space<vmem>>, vector<1x1x10x128xf32>
    %86 = vector.shape_cast %85 : vector<1x1x10x128xf32> to vector<1x10x128xf32>
    %87 = vector.shape_cast %5 : vector<1x10x128xf32> to vector<1x1x10x128xf32>
    tpu.vector_store %arg11[%c3_83, %c9_84, %c0_85, %c0_86], %87 {strides = array<i32>} : memref<4x10x10x128xf32, #tpu.memory_space<vmem>>, vector<1x1x10x128xf32>,
    %c3_87 = arith.constant 3 : index
    %c1_88 = arith.constant 1 : index
    %c0_89 = arith.constant 0 : index
    %c0_90 = arith.constant 0 : index
    %88 = vector.load %arg11[%c3_87, %c1_88, %c0_89, %c0_90] : memref<4x10x10x128xf32, #tpu.memory_space<vmem>>, vector<1x8x1x128xf32>
    %89 = vector.shape_cast %88 : vector<1x8x1x128xf32> to vector<8x1x128xf32>
    %90 = vector.shape_cast %6 : vector<8x1x128xf32> to vector<1x8x1x128xf32>
    tpu.vector_store %arg11[%c3_87, %c1_88, %c0_89, %c0_90], %90 {strides = array<i32>} : memref<4x10x10x128xf32, #tpu.memory_space<vmem>>, vector<1x8x1x128xf32>,
    %c3_91 = arith.constant 3 : index
    %c1_92 = arith.constant 1 : index
    %c9_93 = arith.constant 9 : index
    %c0_94 = arith.constant 0 : index
    %91 = vector.load %arg11[%c3_91, %c1_92, %c9_93, %c0_94] : memref<4x10x10x128xf32, #tpu.memory_space<vmem>>, vector<1x8x1x128xf32>
    %92 = vector.shape_cast %91 : vector<1x8x1x128xf32> to vector<8x1x128xf32>
    %93 = vector.shape_cast %6 : vector<8x1x128xf32> to vector<1x8x1x128xf32>
    tpu.vector_store %arg11[%c3_91, %c1_92, %c9_93, %c0_94], %93 {strides = array<i32>} : memref<4x10x10x128xf32, #tpu.memory_space<vmem>>, vector<1x8x1x128xf32>,
    %c0_95 = arith.constant 0 : index
    %c3_96 = arith.constant 3 : index
    %c0_97 = arith.constant 0 : index
    %c0_98 = arith.constant 0 : index
    %c0_99 = arith.constant 0 : index
    %94 = vector.load %arg2[%c0_95, %c3_96, %c0_97, %c0_98, %c0_99] : memref<1x4x8x8x128xf32, #tpu.memory_space<vmem>>, vector<1x1x8x8x128xf32>
    %95 = vector.shape_cast %94 : vector<1x1x8x8x128xf32> to vector<8x8x128xf32>
    %96 = vector.shape_cast %3 : vector<1x128xf32> to vector<1x1x128xf32>
    %97 = vector.broadcast %96 : vector<1x1x128xf32> to vector<8x8x128xf32>
    %98 = arith.mulf %95, %97 : vector<8x8x128xf32>
    %99 = vector.shape_cast %4 : vector<1x128xf32> to vector<1x1x128xf32>
    %100 = vector.broadcast %99 : vector<1x1x128xf32> to vector<8x8x128xf32>
    %101 = arith.addf %98, %100 : vector<8x8x128xf32>
    %cst_100 = arith.constant 0.000000e+00 : f32
    %102 = vector.broadcast %cst_100 : f32 to vector<8x8x128xf32>
    %103 = arith.maximumf %101, %102 : vector<8x8x128xf32>
    %c3_101 = arith.constant 3 : index
    %c1_102 = arith.constant 1 : index
    %c1_103 = arith.constant 1 : index
    %c0_104 = arith.constant 0 : index
    %104 = vector.load %arg11[%c3_101, %c1_102, %c1_103, %c0_104] : memref<4x10x10x128xf32, #tpu.memory_space<vmem>>, vector<1x8x8x128xf32>
    %105 = vector.shape_cast %104 : vector<1x8x8x128xf32> to vector<8x8x128xf32>
    %106 = vector.shape_cast %103 : vector<8x8x128xf32> to vector<1x8x8x128xf32>
    tpu.vector_store %arg11[%c3_101, %c1_102, %c1_103, %c0_104], %106 {strides = array<i32>} : memref<4x10x10x128xf32, #tpu.memory_space<vmem>>, vector<1x8x8x128xf32>,
    %cst_105 = arith.constant 0.000000e+00 : f32
    %107 = vector.broadcast %cst_105 : f32 to vector<64x128xf32>
    %c3_106 = arith.constant 3 : index
    %c0_107 = arith.constant 0 : index
    %c0_108 = arith.constant 0 : index
    %c0_109 = arith.constant 0 : index
    %108 = vector.load %arg11[%c3_106, %c0_107, %c0_108, %c0_109] : memref<4x10x10x128xf32, #tpu.memory_space<vmem>>, vector<1x8x8x128xf32>
    %109 = vector.shape_cast %108 : vector<1x8x8x128xf32> to vector<8x8x128xf32>
    %110 = vector.shape_cast %109 : vector<8x8x128xf32> to vector<64x128xf32>
    %111 = arith.truncf %110 : vector<64x128xf32> to vector<64x128xbf16>
    %c0_110 = arith.constant 0 : index
    %c0_111 = arith.constant 0 : index
    %112 = vector.load %arg5[%c0_110, %c0_111] : memref<1152x128xbf16, #tpu.memory_space<vmem>>, vector<128x128xbf16>
    %cst_112 = arith.constant dense<0.000000e+00> : vector<64x128xf32>
    %113 = tpu.matmul %111, %112, %cst_112 {dimension_numbers = #tpu.dot_dimension_numbers<[1], [0], [0], [1], [0, 0, 1, 1], [], []>} : vector<64x128xbf16>, vector<128x128xbf16>, vector<64x128xf32> -> vector<64x128xf32>
    %114 = arith.addf %107, %113 : vector<64x128xf32>
    %c2_113 = arith.constant 2 : index
    %c0_114 = arith.constant 0 : index
    %c1_115 = arith.constant 1 : index
    %c0_116 = arith.constant 0 : index
    %115 = vector.load %arg11[%c2_113, %c0_114, %c1_115, %c0_116] : memref<4x10x10x128xf32, #tpu.memory_space<vmem>>, vector<1x8x8x128xf32>
    %116 = vector.shape_cast %115 : vector<1x8x8x128xf32> to vector<8x8x128xf32>
    %117 = vector.shape_cast %116 : vector<8x8x128xf32> to vector<64x128xf32>
    %118 = arith.truncf %117 : vector<64x128xf32> to vector<64x128xbf16>
    %c128 = arith.constant 128 : index
    %c0_117 = arith.constant 0 : index
    %119 = vector.load %arg5[%c128, %c0_117] : memref<1152x128xbf16, #tpu.memory_space<vmem>>, vector<128x128xbf16>
    %cst_118 = arith.constant dense<0.000000e+00> : vector<64x128xf32>
    %120 = tpu.matmul %118, %119, %cst_118 {dimension_numbers = #tpu.dot_dimension_numbers<[1], [0], [0], [1], [0, 0, 1, 1], [], []>} : vector<64x128xbf16>, vector<128x128xbf16>, vector<64x128xf32> -> vector<64x128xf32>
    %121 = arith.addf %114, %120 : vector<64x128xf32>
    %c3_119 = arith.constant 3 : index
    %c0_120 = arith.constant 0 : index
    %c1_121 = arith.constant 1 : index
    %c0_122 = arith.constant 0 : index
    %122 = vector.load %arg11[%c3_119, %c0_120, %c1_121, %c0_122] : memref<4x10x10x128xf32, #tpu.memory_space<vmem>>, vector<1x8x8x128xf32>
    %123 = vector.shape_cast %122 : vector<1x8x8x128xf32> to vector<8x8x128xf32>
    %124 = vector.shape_cast %123 : vector<8x8x128xf32> to vector<64x128xf32>
    %125 = arith.truncf %124 : vector<64x128xf32> to vector<64x128xbf16>
    %c256 = arith.constant 256 : index
    %c0_123 = arith.constant 0 : index
    %126 = vector.load %arg5[%c256, %c0_123] : memref<1152x128xbf16, #tpu.memory_space<vmem>>, vector<128x128xbf16>
    %cst_124 = arith.constant dense<0.000000e+00> : vector<64x128xf32>
    %127 = tpu.matmul %125, %126, %cst_124 {dimension_numbers = #tpu.dot_dimension_numbers<[1], [0], [0], [1], [0, 0, 1, 1], [], []>} : vector<64x128xbf16>, vector<128x128xbf16>, vector<64x128xf32> -> vector<64x128xf32>
    %128 = arith.addf %121, %127 : vector<64x128xf32>
    %c1_125 = arith.constant 1 : index
    %c1_126 = arith.constant 1 : index
    %c0_127 = arith.constant 0 : index
    %c0_128 = arith.constant 0 : index
    %129 = vector.load %arg11[%c1_125, %c1_126, %c0_127, %c0_128] : memref<4x10x10x128xf32, #tpu.memory_space<vmem>>, vector<1x8x8x128xf32>
    %130 = vector.shape_cast %129 : vector<1x8x8x128xf32> to vector<8x8x128xf32>
    %131 = vector.shape_cast %130 : vector<8x8x128xf32> to vector<64x128xf32>
    %132 = arith.truncf %131 : vector<64x128xf32> to vector<64x128xbf16>
    %c384 = arith.constant 384 : index
    %c0_129 = arith.constant 0 : index
    %133 = vector.load %arg5[%c384, %c0_129] : memref<1152x128xbf16, #tpu.memory_space<vmem>>, vector<128x128xbf16>
    %cst_130 = arith.constant dense<0.000000e+00> : vector<64x128xf32>
    %134 = tpu.matmul %132, %133, %cst_130 {dimension_numbers = #tpu.dot_dimension_numbers<[1], [0], [0], [1], [0, 0, 1, 1], [], []>} : vector<64x128xbf16>, vector<128x128xbf16>, vector<64x128xf32> -> vector<64x128xf32>
    %135 = arith.addf %128, %134 : vector<64x128xf32>
    %c0_131 = arith.constant 0 : index
    %c1_132 = arith.constant 1 : index
    %c1_133 = arith.constant 1 : index
    %c0_134 = arith.constant 0 : index
    %136 = vector.load %arg11[%c0_131, %c1_132, %c1_133, %c0_134] : memref<4x10x10x128xf32, #tpu.memory_space<vmem>>, vector<1x8x8x128xf32>
    %137 = vector.shape_cast %136 : vector<1x8x8x128xf32> to vector<8x8x128xf32>
    %138 = vector.shape_cast %137 : vector<8x8x128xf32> to vector<64x128xf32>
    %139 = arith.truncf %138 : vector<64x128xf32> to vector<64x128xbf16>
    %c512 = arith.constant 512 : index
    %c0_135 = arith.constant 0 : index
    %140 = vector.load %arg5[%c512, %c0_135] : memref<1152x128xbf16, #tpu.memory_space<vmem>>, vector<128x128xbf16>
    %cst_136 = arith.constant dense<0.000000e+00> : vector<64x128xf32>
    %141 = tpu.matmul %139, %140, %cst_136 {dimension_numbers = #tpu.dot_dimension_numbers<[1], [0], [0], [1], [0, 0, 1, 1], [], []>} : vector<64x128xbf16>, vector<128x128xbf16>, vector<64x128xf32> -> vector<64x128xf32>
    %142 = arith.addf %135, %141 : vector<64x128xf32>
    %c0_137 = arith.constant 0 : index
    %c0_138 = arith.constant 0 : index
    %143 = vector.load %arg6[%c0_137, %c0_138] : memref<128x128xbf16, #tpu.memory_space<vmem>>, vector<128x128xbf16>
    %cst_139 = arith.constant dense<0.000000e+00> : vector<64x128xf32>
    %144 = tpu.matmul %139, %143, %cst_139 {dimension_numbers = #tpu.dot_dimension_numbers<[1], [0], [0], [1], [0, 0, 1, 1], [], []>} : vector<64x128xbf16>, vector<128x128xbf16>, vector<64x128xf32> -> vector<64x128xf32>
    %145 = vector.shape_cast %144 : vector<64x128xf32> to vector<1x8x8x128xf32>
    %c0_140 = arith.constant 0 : index
    %c0_141 = arith.constant 0 : index
    %c0_142 = arith.constant 0 : index
    %c0_143 = arith.constant 0 : index
    %146 = vector.load %arg8[%c0_140, %c0_141, %c0_142, %c0_143] : memref<1x8x8x128xf32, #tpu.memory_space<vmem>>, vector<1x8x8x128xf32>
    tpu.vector_store %arg8[%c0_140, %c0_141, %c0_142, %c0_143], %145 {strides = array<i32>} : memref<1x8x8x128xf32, #tpu.memory_space<vmem>>, vector<1x8x8x128xf32>,
    %c1_144 = arith.constant 1 : index
    %c1_145 = arith.constant 1 : index
    %c1_146 = arith.constant 1 : index
    %c0_147 = arith.constant 0 : index
    %147 = vector.load %arg11[%c1_144, %c1_145, %c1_146, %c0_147] : memref<4x10x10x128xf32, #tpu.memory_space<vmem>>, vector<1x8x8x128xf32>
    %148 = vector.shape_cast %147 : vector<1x8x8x128xf32> to vector<8x8x128xf32>
    %149 = vector.shape_cast %148 : vector<8x8x128xf32> to vector<64x128xf32>
    %150 = arith.truncf %149 : vector<64x128xf32> to vector<64x128xbf16>
    %c640 = arith.constant 640 : index
    %c0_148 = arith.constant 0 : index
    %151 = vector.load %arg5[%c640, %c0_148] : memref<1152x128xbf16, #tpu.memory_space<vmem>>, vector<128x128xbf16>
    %cst_149 = arith.constant dense<0.000000e+00> : vector<64x128xf32>
    %152 = tpu.matmul %150, %151, %cst_149 {dimension_numbers = #tpu.dot_dimension_numbers<[1], [0], [0], [1], [0, 0, 1, 1], [], []>} : vector<64x128xbf16>, vector<128x128xbf16>, vector<64x128xf32> -> vector<64x128xf32>
    %153 = arith.addf %142, %152 : vector<64x128xf32>
    %c3_150 = arith.constant 3 : index
    %c1_151 = arith.constant 1 : index
    %c0_152 = arith.constant 0 : index
    %c0_153 = arith.constant 0 : index
    %154 = vector.load %arg11[%c3_150, %c1_151, %c0_152, %c0_153] : memref<4x10x10x128xf32, #tpu.memory_space<vmem>>, vector<1x8x8x128xf32>
    %155 = vector.shape_cast %154 : vector<1x8x8x128xf32> to vector<8x8x128xf32>
    %156 = vector.shape_cast %155 : vector<8x8x128xf32> to vector<64x128xf32>
    %157 = arith.truncf %156 : vector<64x128xf32> to vector<64x128xbf16>
    %c768 = arith.constant 768 : index
    %c0_154 = arith.constant 0 : index
    %158 = vector.load %arg5[%c768, %c0_154] : memref<1152x128xbf16, #tpu.memory_space<vmem>>, vector<128x128xbf16>
    %cst_155 = arith.constant dense<0.000000e+00> : vector<64x128xf32>
    %159 = tpu.matmul %157, %158, %cst_155 {dimension_numbers = #tpu.dot_dimension_numbers<[1], [0], [0], [1], [0, 0, 1, 1], [], []>} : vector<64x128xbf16>, vector<128x128xbf16>, vector<64x128xf32> -> vector<64x128xf32>
    %160 = arith.addf %153, %159 : vector<64x128xf32>
    %c2_156 = arith.constant 2 : index
    %c1_157 = arith.constant 1 : index
    %c1_158 = arith.constant 1 : index
    %c0_159 = arith.constant 0 : index
    %161 = vector.load %arg11[%c2_156, %c1_157, %c1_158, %c0_159] : memref<4x10x10x128xf32, #tpu.memory_space<vmem>>, vector<1x8x8x128xf32>
    %162 = vector.shape_cast %161 : vector<1x8x8x128xf32> to vector<8x8x128xf32>
    %163 = vector.shape_cast %162 : vector<8x8x128xf32> to vector<64x128xf32>
    %164 = arith.truncf %163 : vector<64x128xf32> to vector<64x128xbf16>
    %c896 = arith.constant 896 : index
    %c0_160 = arith.constant 0 : index
    %165 = vector.load %arg5[%c896, %c0_160] : memref<1152x128xbf16, #tpu.memory_space<vmem>>, vector<128x128xbf16>
    %cst_161 = arith.constant dense<0.000000e+00> : vector<64x128xf32>
    %166 = tpu.matmul %164, %165, %cst_161 {dimension_numbers = #tpu.dot_dimension_numbers<[1], [0], [0], [1], [0, 0, 1, 1], [], []>} : vector<64x128xbf16>, vector<128x128xbf16>, vector<64x128xf32> -> vector<64x128xf32>
    %167 = arith.addf %160, %166 : vector<64x128xf32>
    %c3_162 = arith.constant 3 : index
    %c1_163 = arith.constant 1 : index
    %c1_164 = arith.constant 1 : index
    %c0_165 = arith.constant 0 : index
    %168 = vector.load %arg11[%c3_162, %c1_163, %c1_164, %c0_165] : memref<4x10x10x128xf32, #tpu.memory_space<vmem>>, vector<1x8x8x128xf32>
    %169 = vector.shape_cast %168 : vector<1x8x8x128xf32> to vector<8x8x128xf32>
    %170 = vector.shape_cast %169 : vector<8x8x128xf32> to vector<64x128xf32>
    %171 = arith.truncf %170 : vector<64x128xf32> to vector<64x128xbf16>
    %c1024 = arith.constant 1024 : index
    %c0_166 = arith.constant 0 : index
    %172 = vector.load %arg5[%c1024, %c0_166] : memref<1152x128xbf16, #tpu.memory_space<vmem>>, vector<128x128xbf16>
    %cst_167 = arith.constant dense<0.000000e+00> : vector<64x128xf32>
    %173 = tpu.matmul %171, %172, %cst_167 {dimension_numbers = #tpu.dot_dimension_numbers<[1], [0], [0], [1], [0, 0, 1, 1], [], []>} : vector<64x128xbf16>, vector<128x128xbf16>, vector<64x128xf32> -> vector<64x128xf32>
    %174 = arith.addf %167, %173 : vector<64x128xf32>
    %c0_168 = arith.constant 0 : index
    %c0_169 = arith.constant 0 : index
    %175 = vector.load %arg9[%c0_168, %c0_169] : memref<1x128xf32, #tpu.memory_space<vmem>>, vector<1x128xf32>
    %cst_170 = arith.constant dense<0.000000e+00> : vector<128xf32>
    %176 = vector.multi_reduction <add>, %174, %cst_170 [0] : vector<64x128xf32> to vector<128xf32>
    %177 = vector.shape_cast %176 : vector<128xf32> to vector<1x128xf32>
    %178 = arith.addf %175, %177 : vector<1x128xf32>
    %c0_171 = arith.constant 0 : index
    %c0_172 = arith.constant 0 : index
    %179 = vector.load %arg9[%c0_171, %c0_172] : memref<1x128xf32, #tpu.memory_space<vmem>>, vector<1x128xf32>
    tpu.vector_store %arg9[%c0_171, %c0_172], %178 {strides = array<i32>} : memref<1x128xf32, #tpu.memory_space<vmem>>, vector<1x128xf32>,
    %c0_173 = arith.constant 0 : index
    %c0_174 = arith.constant 0 : index
    %180 = vector.load %arg10[%c0_173, %c0_174] : memref<1x128xf32, #tpu.memory_space<vmem>>, vector<1x128xf32>
    %181 = arith.mulf %174, %174 : vector<64x128xf32>
    %cst_175 = arith.constant dense<0.000000e+00> : vector<128xf32>
    %182 = vector.multi_reduction <add>, %181, %cst_175 [0] : vector<64x128xf32> to vector<128xf32>
    %183 = vector.shape_cast %182 : vector<128xf32> to vector<1x128xf32>
    %184 = arith.addf %180, %183 : vector<1x128xf32>
    %c0_176 = arith.constant 0 : index
    %c0_177 = arith.constant 0 : index
    %185 = vector.load %arg10[%c0_176, %c0_177] : memref<1x128xf32, #tpu.memory_space<vmem>>, vector<1x128xf32>
    tpu.vector_store %arg10[%c0_176, %c0_177], %184 {strides = array<i32>} : memref<1x128xf32, #tpu.memory_space<vmem>>, vector<1x128xf32>,
    %186 = vector.shape_cast %174 : vector<64x128xf32> to vector<1x8x8x128xf32>
    %187 = arith.truncf %186 : vector<1x8x8x128xf32> to vector<1x8x8x128xbf16>
    %c0_178 = arith.constant 0 : index
    %c0_179 = arith.constant 0 : index
    %c0_180 = arith.constant 0 : index
    %c0_181 = arith.constant 0 : index
    %188 = vector.load %arg7[%c0_178, %c0_179, %c0_180, %c0_181] : memref<1x8x8x128xbf16, #tpu.memory_space<vmem>>, vector<1x8x8x128xbf16>
    tpu.vector_store %arg7[%c0_178, %c0_179, %c0_180, %c0_181], %187 {strides = array<i32>} : memref<1x8x8x128xbf16, #tpu.memory_space<vmem>>, vector<1x8x8x128xbf16>,
    return
  }
  func.func @transform_0(%arg0: i32, %arg1: i32) -> (i32, i32, i32, i32, i32) {
    %c0_i32 = arith.constant 0 : i32
    %c0_i32_0 = arith.constant 0 : i32
    %c0_i32_1 = arith.constant 0 : i32
    %c0_i32_2 = arith.constant 0 : i32
    %c0_i32_3 = arith.constant 0 : i32
    return %arg1, %c0_i32, %c0_i32_0, %c0_i32_1, %c0_i32_2 : i32, i32, i32, i32, i32
  }
  func.func @transform_1(%arg0: i32, %arg1: i32) -> (i32, i32) {
    %c0_i32 = arith.constant 0 : i32
    %c0_i32_0 = arith.constant 0 : i32
    %c0_i32_1 = arith.constant 0 : i32
    return %c0_i32, %c0_i32_0 : i32, i32
  }
  func.func @transform_2(%arg0: i32, %arg1: i32) -> (i32, i32) {
    %c0_i32 = arith.constant 0 : i32
    %c0_i32_0 = arith.constant 0 : i32
    %c0_i32_1 = arith.constant 0 : i32
    return %c0_i32, %c0_i32_0 : i32, i32
  }
  func.func @transform_3(%arg0: i32, %arg1: i32) -> (i32, i32) {
    %c0_i32 = arith.constant 0 : i32
    %c0_i32_0 = arith.constant 0 : i32
    return %c0_i32, %arg0 : i32, i32
  }
  func.func @transform_4(%arg0: i32, %arg1: i32) -> (i32, i32) {
    %c0_i32 = arith.constant 0 : i32
    %c0_i32_0 = arith.constant 0 : i32
    return %c0_i32, %arg0 : i32, i32
  }
  func.func @transform_5(%arg0: i32, %arg1: i32) -> (i32, i32, i32, i32) {
    %c0_i32 = arith.constant 0 : i32
    %c0_i32_0 = arith.constant 0 : i32
    %c0_i32_1 = arith.constant 0 : i32
    return %arg1, %c0_i32, %c0_i32_0, %arg0 : i32, i32, i32, i32
  }
  func.func @transform_6(%arg0: i32, %arg1: i32) -> (i32, i32, i32, i32) {
    %c0_i32 = arith.constant 0 : i32
    %c0_i32_0 = arith.constant 0 : i32
    %c0_i32_1 = arith.constant 0 : i32
    return %arg1, %c0_i32, %c0_i32_0, %arg0 : i32, i32, i32, i32
  }
  func.func @transform_7(%arg0: i32, %arg1: i32) -> (i32, i32) {
    %c0_i32 = arith.constant 0 : i32
    %c0_i32_0 = arith.constant 0 : i32
    return %c0_i32, %arg0 : i32, i32
  }
  func.func @transform_8(%arg0: i32, %arg1: i32) -> (i32, i32) {
    %c0_i32 = arith.constant 0 : i32
    %c0_i32_0 = arith.constant 0 : i32
    return %c0_i32, %arg0 : i32, i32
  }
}

</mosaic_0001>

<llo_original>
// kernel: basic_block_forward.3
$region0: #{basic_block_forward.3}
  #allocation0 [shape = 'u32[]', space=smem, size = 0x4, offset = 0x4, fixed_abs, tag = 'smem constant byte address 0x4 - core index']
  #allocation1 [shape = 'u32[144,128]{1,0:T(1,128)}', space=vmem, size = 0x12000, scoped, tag = 'internal scratch']
  %s0 = inlined_call_operand.vmem [shape: f32[2,256,128], index: 0, kind: input, shape index: {}]
  %s1 = inlined_call_operand.vmem [shape: f32[1,128], index: 1, kind: output, shape index: {0}]
  %s2 = inlined_call_operand.vmem [shape: f32[1,128], index: 2, kind: output, shape index: {1}]
  %3 = xla_tuple %s1, %s2
  %s4 = sld [smem:[#allocation0]]
  $region49: #{basic_block_forward.3} parent=0
    _
  %s6 = ssub.s32 1, %s4
  %s7 = scalar_select 0, %s6, %s4
  loop: start=0, step=1, limit=4
  $region2: #{basic_block_forward.3} parent=0 // loop_pre_header
    _
  $region3: #{basic_block_forward.3} parent=0 // loop_header
    %s9 = sphi 0, %s13
    %p10 = scmp.ge.s32.totalorder %s9, 4
    %s19 = sphi 0, %s21
    %s22 = sphi 0, %s19
    %s23 = sphi 0, %s22
    %s39 = sphi 0, %s23
    %s43 = sphi 0, %s43
    %s45 = sphi 0, %s43
    %s46 = sphi 0, %s45
    %s60 = sphi 0, %s46
    %s64 = sphi 0, %s64
    %s66 = sphi 0, %s64
    %s67 = sphi 0, %s66
    %s81 = sphi 0, %s67
  $region4: #{basic_block_forward.3} parent=0 // loop_header_branch
    %12 = sbr.rel (%p10) target = $region8
  $region5: #{basic_block_forward.3} parent=0 // loop_body
    %s14 = ssub.s32 %s9, 1
    %s15 = ssub.s32 %s9, 2
    %s16 = sadd.s32 %s9, 1
    %s17 = ssub.s32 %s9, %s16
    %p18 = scmp.eq.s32.totalorder %s17, 0
    %s20 = sadd.s32 %s19, 1
    %s21 = scalar_select %p18, %s19, %s20
    %p24 = pneg %p18
    %p25 = scmp.eq.s32.totalorder %s9, 1
    %p26 = por %p24, %p25
    %p27 = scmp.ne.s32.totalorder %s19, %s22
    %p28 = scmp.eq.s32.totalorder %s9, 0
    %p29 = por %p27, %p28
    %p30 = scmp.ne.s32.totalorder %s19, %s22
    %p31 = scmp.eq.s32.totalorder %s14, 1
    %p32 = por %p30, %p31
    %p33 = scmp.ne.s32.totalorder %s22, %s23
    %p34 = scmp.eq.s32.totalorder %s14, 0
    %p35 = por %p33, %p34
    %p36 = scmp.ne.s32.totalorder %s22, %s23
    %p37 = scmp.eq.s32.totalorder %s15, 1
    %p38 = por %p36, %p37
    %p40 = scmp.ne.s32.totalorder %s23, %s39
    %p41 = scmp.eq.s32.totalorder %s15, 0
    %p42 = por %p40, %p41
    %s44 = sadd.s32 %s43, 1
    %p47 = scmp.eq.s32.totalorder %s9, 1
    %p48 = scmp.ne.s32.totalorder %s43, %s45
    %p49 = scmp.eq.s32.totalorder %s9, 0
    %p50 = por %p48, %p49
    %p51 = scmp.ne.s32.totalorder %s43, %s45
    %p52 = scmp.eq.s32.totalorder %s14, 1
    %p53 = por %p51, %p52
    %p54 = scmp.ne.s32.totalorder %s45, %s46
    %p55 = scmp.eq.s32.totalorder %s14, 0
    %p56 = por %p54, %p55
    %p57 = scmp.ne.s32.totalorder %s45, %s46
    %p58 = scmp.eq.s32.totalorder %s15, 1
    %p59 = por %p57, %p58
    %p61 = scmp.ne.s32.totalorder %s46, %s60
    %p62 = scmp.eq.s32.totalorder %s15, 0
    %p63 = por %p61, %p62
    %s65 = sadd.s32 %s64, 1
    %p68 = scmp.eq.s32.totalorder %s9, 1
    %p69 = scmp.ne.s32.totalorder %s64, %s66
    %p70 = scmp.eq.s32.totalorder %s9, 0
    %p71 = por %p69, %p70
    %p72 = scmp.ne.s32.totalorder %s64, %s66
    %p73 = scmp.eq.s32.totalorder %s14, 1
    %p74 = por %p72, %p73
    %p75 = scmp.ne.s32.totalorder %s66, %s67
    %p76 = scmp.eq.s32.totalorder %s14, 0
    %p77 = por %p75, %p76
    %p78 = scmp.ne.s32.totalorder %s66, %s67
    %p79 = scmp.eq.s32.totalorder %s15, 1
    %p80 = por %p78, %p79
    %p82 = scmp.ne.s32.totalorder %s67, %s81
    %p83 = scmp.eq.s32.totalorder %s15, 0
    %p84 = por %p82, %p83
    %p85 = scmp.le.s32.totalorder 1, %s9
    %p86 = scmp.lt.s32.totalorder %s9, 3
    %p87 = pnand %p85, %p86
    %p88 = pneg %p87
    // Predicated region
    $region9: #{basic_block_forward.3} parent=5 // pred_check
      _
    $region10: #{basic_block_forward.3} parent=5 // pred_check_branch
      %90 = sbr.rel (%p87) target = $region12
    $region11: #{basic_block_forward.3} parent=5 // pred_region
      %s91 = ssub.s32 %s9, 1
    $region12: #{basic_block_forward.3} parent=5 // pred_fallthru
      _
    %p92 = scmp.lt.s32.totalorder %s9, 2
    // Predicated region
    $region13: #{basic_block_forward.3} parent=5 // pred_check
      %p93 = pneg %p92
    $region14: #{basic_block_forward.3} parent=5 // pred_check_branch
      %95 = sbr.rel (%p93) target = $region16
    $region15: #{basic_block_forward.3} parent=5 // pred_region
      // Predicated region
      $region17: #{basic_block_forward.3} parent=15 // pred_check
        %p96 = pneg %p29
      $region18: #{basic_block_forward.3} parent=15 // pred_check_branch
        %98 = sbr.rel (%p96) target = $region20
      $region19: #{basic_block_forward.3} parent=15 // pred_region
        %p99 = scmp.lt.s32.totalorder %s9, 1
        %s100 = scalar_select %p99, %s9, 1
        %s101 = smul.addr %s100, 32
        %s102 = smul.addr %s101, 8
        %s103 = scalar_lea.vmem %s0, %s102
      $region20: #{basic_block_forward.3} parent=15 // pred_fallthru
        _
    $region16: #{basic_block_forward.3} parent=5 // pred_fallthru
      _
    %p104 = scmp.le.s32.totalorder 1, %s9
    %p105 = scmp.lt.s32.totalorder %s9, 3
    %p106 = pnand %p104, %p105
    %p107 = pneg %p106
    // Predicated region
    $region21: #{basic_block_forward.3} parent=5 // pred_check
      _
    $region22: #{basic_block_forward.3} parent=5 // pred_check_branch
      %109 = sbr.rel (%p106) target = $region24
    $region23: #{basic_block_forward.3} parent=5 // pred_region
      %s110 = ssub.s32 %s9, 1
      %p111 = scmp.lt.s32.totalorder %s14, 1
      %s112 = scalar_select %p111, %s14, 1
      %s113 = smul.addr %s112, 32
      %s114 = smul.addr %s113, 8
      %s115 = scalar_lea.vmem %s0, %s114
      %p116 = pneg %p35
      %p117 = pneg %p32
      %p118 = pneg %p56
      %p119 = pneg %p53
      %p120 = pneg %p77
      %p121 = pneg %p74
      %p122 = scmp.lt.s32.totalorder %s14, 1
      %s123 = scalar_select %p122, %s14, 1
      %s124 = smul.addr %s123, 32
      %s125 = smul.addr %s124, 8
      %s126 = scalar_lea.vmem %s0, %s125
      %p127 = scmp.eq.s32.totalorder %s14, 0
      // Predicated region
      $region25: #{basic_block_forward.3} parent=23 // pred_check
        %p128 = pneg %p127
      $region26: #{basic_block_forward.3} parent=23 // pred_check_branch
        %130 = sbr.rel (%p128) target = $region28
      $region27: #{basic_block_forward.3} parent=23 // pred_region
        %131 = vst [vmem:[%s1] sm:$0x1] 0.0
        %132 = vst [vmem:[%s2] sm:$0x1] 0.0
      $region28: #{basic_block_forward.3} parent=23 // pred_fallthru
        _
      %v133 = vld [vmem:[%s126] sm:$0xff]
      %v134 = vld [vmem:[%s126 + $0x8] sm:$0xff]
      %v135 = vld [vmem:[%s126 + $0x10] sm:$0xff]
      %v136 = vld [vmem:[%s126 + $0x18] sm:$0xff]
      %v137 = vld [vmem:[%s126 + $0x20] sm:$0xff]
      %v138 = vld [vmem:[%s126 + $0x28] sm:$0xff]
      %v139 = vld [vmem:[%s126 + $0x30] sm:$0xff]
      %v140 = vld [vmem:[%s126 + $0x38] sm:$0xff]
      %v141 = vld [vmem:[%s126 + $0x40] sm:$0xff]
      %v142 = vld [vmem:[%s126 + $0x48] sm:$0xff]
      %v143 = vld [vmem:[%s126 + $0x50] sm:$0xff]
      %v144 = vld [vmem:[%s126 + $0x58] sm:$0xff]
      %v145 = vld [vmem:[%s126 + $0x60] sm:$0xff]
      %v146 = vld [vmem:[%s126 + $0x68] sm:$0xff]
      %v147 = vld [vmem:[%s126 + $0x70] sm:$0xff]
      %v148 = vld [vmem:[%s126 + $0x78] sm:$0xff]
      %v149 = vld [vmem:[%s126 + $0x80] sm:$0xff]
      %v150 = vld [vmem:[%s126 + $0x88] sm:$0xff]
      %v151 = vld [vmem:[%s126 + $0x90] sm:$0xff]
      %v152 = vld [vmem:[%s126 + $0x98] sm:$0xff]
      %v153 = vld [vmem:[%s126 + $0xa0] sm:$0xff]
      %v154 = vld [vmem:[%s126 + $0xa8] sm:$0xff]
      %v155 = vld [vmem:[%s126 + $0xb0] sm:$0xff]
      %v156 = vld [vmem:[%s126 + $0xb8] sm:$0xff]
      %v157 = vld [vmem:[%s126 + $0xc0] sm:$0xff]
      %v158 = vld [vmem:[%s126 + $0xc8] sm:$0xff]
      %v159 = vld [vmem:[%s126 + $0xd0] sm:$0xff]
      %v160 = vld [vmem:[%s126 + $0xd8] sm:$0xff]
      %v161 = vld [vmem:[%s126 + $0xe0] sm:$0xff]
      %v162 = vld [vmem:[%s126 + $0xe8] sm:$0xff]
      %v163 = vld [vmem:[%s126 + $0xf0] sm:$0xff]
      %v164 = vld [vmem:[%s126 + $0xf8] sm:$0xff]
      %v165 = vld [vmem:[%s1] sm:$0x1]
      %v166 = vadd.f32 %v133, %v134
      %v167 = vadd.f32 %v166, %v135
      %v168 = vadd.f32 %v167, %v136
      %v169 = vadd.f32 %v168, %v137
      %v170 = vadd.f32 %v169, %v138
      %v171 = vadd.f32 %v170, %v139
      %v172 = vadd.f32 %v171, %v140
      %v173 = vadd.f32 %v172, %v141
      %v174 = vadd.f32 %v173, %v142
      %v175 = vadd.f32 %v174, %v143
      %v176 = vadd.f32 %v175, %v144
      %v177 = vadd.f32 %v176, %v145
      %v178 = vadd.f32 %v177, %v146
      %v179 = vadd.f32 %v178, %v147
      %v180 = vadd.f32 %v179, %v148
      %v181 = vadd.f32 %v180, %v149
      %v182 = vadd.f32 %v181, %v150
      %v183 = vadd.f32 %v182, %v151
      %v184 = vadd.f32 %v183, %v152
      %v185 = vadd.f32 %v184, %v153
      %v186 = vadd.f32 %v185, %v154
      %v187 = vadd.f32 %v186, %v155
      %v188 = vadd.f32 %v187, %v156
      %v189 = vadd.f32 %v188, %v157
      %v190 = vadd.f32 %v189, %v158
      %v191 = vadd.f32 %v190, %v159
      %v192 = vadd.f32 %v191, %v160
      %v193 = vadd.f32 %v192, %v161
      %v194 = vadd.f32 %v193, %v162
      %v195 = vadd.f32 %v194, %v163
      %v196 = vadd.f32 %v195, %v164
      %v197 = vrot.slane %v196, 4
      %v198 = vadd.f32 %v196, %v197
      %v199 = vrot.slane %v198, 2
      %v200 = vadd.f32 %v198, %v199
      %v201 = vrot.slane %v200, 1
      %v202 = vadd.f32 %v200, %v201
      %v203 = vadd.f32 %v165, %v202
      %204 = vst [vmem:[%s1] sm:$0x1] %v203
      %v205 = vld [vmem:[%s2] sm:$0x1]
      %v206 = vmul.f32 %v133, %v133
      %v207 = vmul.f32 %v134, %v134
      %v208 = vmul.f32 %v135, %v135
      %v209 = vmul.f32 %v136, %v136
      %v210 = vmul.f32 %v137, %v137
      %v211 = vmul.f32 %v138, %v138
      %v212 = vmul.f32 %v139, %v139
      %v213 = vmul.f32 %v140, %v140
      %v214 = vmul.f32 %v141, %v141
      %v215 = vmul.f32 %v142, %v142
      %v216 = vmul.f32 %v143, %v143
      %v217 = vmul.f32 %v144, %v144
      %v218 = vmul.f32 %v145, %v145
      %v219 = vmul.f32 %v146, %v146
      %v220 = vmul.f32 %v147, %v147
      %v221 = vmul.f32 %v148, %v148
      %v222 = vmul.f32 %v149, %v149
      %v223 = vmul.f32 %v150, %v150
      %v224 = vmul.f32 %v151, %v151
      %v225 = vmul.f32 %v152, %v152
      %v226 = vmul.f32 %v153, %v153
      %v227 = vmul.f32 %v154, %v154
      %v228 = vmul.f32 %v155, %v155
      %v229 = vmul.f32 %v156, %v156
      %v230 = vmul.f32 %v157, %v157
      %v231 = vmul.f32 %v158, %v158
      %v232 = vmul.f32 %v159, %v159
      %v233 = vmul.f32 %v160, %v160
      %v234 = vmul.f32 %v161, %v161
      %v235 = vmul.f32 %v162, %v162
      %v236 = vmul.f32 %v163, %v163
      %v237 = vmul.f32 %v164, %v164
      %v238 = vadd.f32 %v206, %v207
      %v239 = vadd.f32 %v238, %v208
      %v240 = vadd.f32 %v239, %v209
      %v241 = vadd.f32 %v240, %v210
      %v242 = vadd.f32 %v241, %v211
      %v243 = vadd.f32 %v242, %v212
      %v244 = vadd.f32 %v243, %v213
      %v245 = vadd.f32 %v244, %v214
      %v246 = vadd.f32 %v245, %v215
      %v247 = vadd.f32 %v246, %v216
      %v248 = vadd.f32 %v247, %v217
      %v249 = vadd.f32 %v248, %v218
      %v250 = vadd.f32 %v249, %v219
      %v251 = vadd.f32 %v250, %v220
      %v252 = vadd.f32 %v251, %v221
      %v253 = vadd.f32 %v252, %v222
      %v254 = vadd.f32 %v253, %v223
      %v255 = vadd.f32 %v254, %v224
      %v256 = vadd.f32 %v255, %v225
      %v257 = vadd.f32 %v256, %v226
      %v258 = vadd.f32 %v257, %v227
      %v259 = vadd.f32 %v258, %v228
      %v260 = vadd.f32 %v259, %v229
      %v261 = vadd.f32 %v260, %v230
      %v262 = vadd.f32 %v261, %v231
      %v263 = vadd.f32 %v262, %v232
      %v264 = vadd.f32 %v263, %v233
      %v265 = vadd.f32 %v264, %v234
      %v266 = vadd.f32 %v265, %v235
      %v267 = vadd.f32 %v266, %v236
      %v268 = vadd.f32 %v267, %v237
      %v269 = vrot.slane %v268, 4
      %v270 = vadd.f32 %v268, %v269
      %v271 = vrot.slane %v270, 2
      %v272 = vadd.f32 %v270, %v271
      %v273 = vrot.slane %v272, 1
      %v274 = vadd.f32 %v272, %v273
      %v275 = vadd.f32 %v205, %v274
      %276 = vst [vmem:[%s2] sm:$0x1] %v275
      // Predicated region
      $region29: #{basic_block_forward.3} parent=23 // pred_check
        %p277 = pneg %p53
      $region30: #{basic_block_forward.3} parent=23 // pred_check_branch
        %279 = sbr.rel (%p277) target = $region32
      $region31: #{basic_block_forward.3} parent=23 // pred_region
        _
      $region32: #{basic_block_forward.3} parent=23 // pred_fallthru
        _
      // Predicated region
      $region33: #{basic_block_forward.3} parent=23 // pred_check
        %p280 = pneg %p74
      $region34: #{basic_block_forward.3} parent=23 // pred_check_branch
        %282 = sbr.rel (%p280) target = $region36
      $region35: #{basic_block_forward.3} parent=23 // pred_region
        _
      $region36: #{basic_block_forward.3} parent=23 // pred_fallthru
        _
      // Predicated region
      $region37: #{basic_block_forward.3} parent=23 // pred_check
        %p283 = pneg %p53
      $region38: #{basic_block_forward.3} parent=23 // pred_check_branch
        %285 = sbr.rel (%p283) target = $region40
      $region39: #{basic_block_forward.3} parent=23 // pred_region
        _
      $region40: #{basic_block_forward.3} parent=23 // pred_fallthru
        _
      // Predicated region
      $region41: #{basic_block_forward.3} parent=23 // pred_check
        %p286 = pneg %p74
      $region42: #{basic_block_forward.3} parent=23 // pred_check_branch
        %288 = sbr.rel (%p286) target = $region44
      $region43: #{basic_block_forward.3} parent=23 // pred_region
        _
      $region44: #{basic_block_forward.3} parent=23 // pred_fallthru
        _
    $region24: #{basic_block_forward.3} parent=5 // pred_fallthru
      _
    %p289 = scmp.le.s32.totalorder 2, %s9
    // Predicated region
    $region45: #{basic_block_forward.3} parent=5 // pred_check
      %p290 = pneg %p289
    $region46: #{basic_block_forward.3} parent=5 // pred_check_branch
      %292 = sbr.rel (%p290) target = $region48
    $region47: #{basic_block_forward.3} parent=5 // pred_region
      %s293 = ssub.s32 %s9, 2
    $region48: #{basic_block_forward.3} parent=5 // pred_fallthru
      _
  $region6: #{basic_block_forward.3} parent=0 // loop_footer
    %s13 = sadd.s32 1, %s9
  $region7: #{basic_block_forward.3} parent=0 // loop_footer_branch
    %8 = sbr.rel target = $region3
  $region8: #{basic_block_forward.3} parent=0 // loop_exit
    _

// kernel: basic_block_forward.5
$region0: #{basic_block_forward.5}
  #allocation0 [shape = 'u32[]', space=smem, size = 0x4, offset = 0x4, fixed_abs, tag = 'smem constant byte address 0x4 - core index']
  #allocation1 [shape = 'u32[144,128]{1,0:T(1,128)}', space=vmem, size = 0x12000, scoped, tag = 'internal scratch']
  #allocation2 [shape = 'f32[1,10,10,128]{3,2,1,0:T(8,128)}', space=vmem, size = 0x14000, scoped, tag = 'scratch operand']
  %s0 = inlined_call_operand.vmem [shape: bf16[2,1,8,8,128], index: 0, kind: input, shape index: {}]
  %s1 = inlined_call_operand.vmem [shape: f32[1,128], index: 1, kind: input, shape index: {}]
  %s2 = inlined_call_operand.vmem [shape: f32[1,128], index: 2, kind: input, shape index: {}]
  %s3 = inlined_call_operand.vmem [shape: bf16[1152,128], index: 3, kind: input, shape index: {}]
  %s4 = inlined_call_operand.vmem [shape: f32[2,8,8,128], index: 4, kind: input, shape index: {}]
  %s5 = inlined_call_operand.vmem [shape: f32[2,8,8,128], index: 5, kind: output, shape index: {}]
  %s6 = sld [smem:[#allocation0]]
  $region53: #{basic_block_forward.5} parent=0
    _
  %s8 = ssub.s32 1, %s6
  %s9 = scalar_select 0, %s8, %s6
  loop: start=0, step=1, limit=4
  $region2: #{basic_block_forward.5} parent=0 // loop_pre_header
    _
  $region3: #{basic_block_forward.5} parent=0 // loop_header
    %s11 = sphi 0, %s15
    %p12 = scmp.ge.s32.totalorder %s11, 4
    %s18 = sphi 0, %s30
    %s19 = sphi 0, %s26
    %s20 = sphi 0, %s18
    %s21 = sphi 0, %s19
    %s22 = sphi 0, %s20
    %s23 = sphi 0, %s21
    %s33 = sphi 0, %s35
    %s36 = sphi 0, %s33
    %s37 = sphi 0, %s36
    %s53 = sphi 0, %s37
    %s57 = sphi 0, %s57
    %s59 = sphi 0, %s57
    %s60 = sphi 0, %s59
    %s74 = sphi 0, %s60
    %s78 = sphi 0, %s78
    %s80 = sphi 0, %s78
    %s81 = sphi 0, %s80
    %s95 = sphi 0, %s81
    %s101 = sphi 0, %s103
    %s104 = sphi 0, %s101
    %s105 = sphi 0, %s104
    %s121 = sphi 0, %s105
    %s129 = sphi 0, %s131
    %s132 = sphi 0, %s129
    %s133 = sphi 0, %s132
    %s149 = sphi 0, %s133
    %s157 = sphi 0, %s159
    %s160 = sphi 0, %s157
    %s161 = sphi 0, %s160
    %s177 = sphi 0, %s161
  $region4: #{basic_block_forward.5} parent=0 // loop_header_branch
    %14 = sbr.rel (%p12) target = $region8
  $region5: #{basic_block_forward.5} parent=0 // loop_body
    %s16 = ssub.s32 %s11, 1
    %s17 = ssub.s32 %s11, 2
    %s24 = sadd.s32 1, %s19
    %p25 = scmp.ge.s32.totalorder %s24, 2
    %s26 = scalar_select %p25, 0, %s24
    %s27 = sadd.s32 1, %s18
    %s28 = scalar_select %p25, %s27, %s18
    %p29 = scmp.ge.s32.totalorder %s28, 1
    %s30 = scalar_select %p29, 0, %s28
    %s31 = ssub.s32 %s19, %s26
    %p32 = scmp.eq.s32.totalorder %s31, 0
    %s34 = sadd.s32 %s33, 1
    %s35 = scalar_select %p32, %s33, %s34
    %p38 = pneg %p32
    %p39 = scmp.eq.s32.totalorder %s11, 1
    %p40 = por %p38, %p39
    %p41 = scmp.ne.s32.totalorder %s33, %s36
    %p42 = scmp.eq.s32.totalorder %s11, 0
    %p43 = por %p41, %p42
    %p44 = scmp.ne.s32.totalorder %s33, %s36
    %p45 = scmp.eq.s32.totalorder %s16, 1
    %p46 = por %p44, %p45
    %p47 = scmp.ne.s32.totalorder %s36, %s37
    %p48 = scmp.eq.s32.totalorder %s16, 0
    %p49 = por %p47, %p48
    %p50 = scmp.ne.s32.totalorder %s36, %s37
    %p51 = scmp.eq.s32.totalorder %s17, 1
    %p52 = por %p50, %p51
    %p54 = scmp.ne.s32.totalorder %s37, %s53
    %p55 = scmp.eq.s32.totalorder %s17, 0
    %p56 = por %p54, %p55
    %s58 = sadd.s32 %s57, 1
    %p61 = scmp.eq.s32.totalorder %s11, 1
    %p62 = scmp.ne.s32.totalorder %s57, %s59
    %p63 = scmp.eq.s32.totalorder %s11, 0
    %p64 = por %p62, %p63
    %p65 = scmp.ne.s32.totalorder %s57, %s59
    %p66 = scmp.eq.s32.totalorder %s16, 1
    %p67 = por %p65, %p66
    %p68 = scmp.ne.s32.totalorder %s59, %s60
    %p69 = scmp.eq.s32.totalorder %s16, 0
    %p70 = por %p68, %p69
    %p71 = scmp.ne.s32.totalorder %s59, %s60
    %p72 = scmp.eq.s32.totalorder %s17, 1
    %p73 = por %p71, %p72
    %p75 = scmp.ne.s32.totalorder %s60, %s74
    %p76 = scmp.eq.s32.totalorder %s17, 0
    %p77 = por %p75, %p76
    %s79 = sadd.s32 %s78, 1
    %p82 = scmp.eq.s32.totalorder %s11, 1
    %p83 = scmp.ne.s32.totalorder %s78, %s80
    %p84 = scmp.eq.s32.totalorder %s11, 0
    %p85 = por %p83, %p84
    %p86 = scmp.ne.s32.totalorder %s78, %s80
    %p87 = scmp.eq.s32.totalorder %s16, 1
    %p88 = por %p86, %p87
    %p89 = scmp.ne.s32.totalorder %s80, %s81
    %p90 = scmp.eq.s32.totalorder %s16, 0
    %p91 = por %p89, %p90
    %p92 = scmp.ne.s32.totalorder %s80, %s81
    %p93 = scmp.eq.s32.totalorder %s17, 1
    %p94 = por %p92, %p93
    %p96 = scmp.ne.s32.totalorder %s81, %s95
    %p97 = scmp.eq.s32.totalorder %s17, 0
    %p98 = por %p96, %p97
    %s99 = ssub.s32 %s18, %s30
    %p100 = scmp.eq.s32.totalorder %s99, 0
    %s102 = sadd.s32 %s101, 1
    %s103 = scalar_select %p100, %s101, %s102
    %p106 = pneg %p100
    %p107 = scmp.eq.s32.totalorder %s11, 1
    %p108 = por %p106, %p107
    %p109 = scmp.ne.s32.totalorder %s101, %s104
    %p110 = scmp.eq.s32.totalorder %s11, 0
    %p111 = por %p109, %p110
    %p112 = scmp.ne.s32.totalorder %s101, %s104
    %p113 = scmp.eq.s32.totalorder %s16, 1
    %p114 = por %p112, %p113
    %p115 = scmp.ne.s32.totalorder %s104, %s105
    %p116 = scmp.eq.s32.totalorder %s16, 0
    %p117 = por %p115, %p116
    %p118 = scmp.ne.s32.totalorder %s104, %s105
    %p119 = scmp.eq.s32.totalorder %s17, 1
    %p120 = por %p118, %p119
    %p122 = scmp.ne.s32.totalorder %s105, %s121
    %p123 = scmp.eq.s32.totalorder %s17, 0
    %p124 = por %p122, %p123
    %s125 = ssub.s32 %s19, %s26
    %s126 = ssub.s32 %s18, %s30
    %s127 = sor.u32 %s125, %s126
    %p128 = scmp.eq.s32.totalorder %s127, 0
    %s130 = sadd.s32 %s129, 1
    %s131 = scalar_select %p128, %s129, %s130
    %p134 = pneg %p128
    %p135 = scmp.eq.s32.totalorder %s11, 1
    %p136 = por %p134, %p135
    %p137 = scmp.ne.s32.totalorder %s129, %s132
    %p138 = scmp.eq.s32.totalorder %s11, 0
    %p139 = por %p137, %p138
    %p140 = scmp.ne.s32.totalorder %s129, %s132
    %p141 = scmp.eq.s32.totalorder %s16, 1
    %p142 = por %p140, %p141
    %p143 = scmp.ne.s32.totalorder %s132, %s133
    %p144 = scmp.eq.s32.totalorder %s16, 0
    %p145 = por %p143, %p144
    %p146 = scmp.ne.s32.totalorder %s132, %s133
    %p147 = scmp.eq.s32.totalorder %s17, 1
    %p148 = por %p146, %p147
    %p150 = scmp.ne.s32.totalorder %s133, %s149
    %p151 = scmp.eq.s32.totalorder %s17, 0
    %p152 = por %p150, %p151
    %s153 = ssub.s32 %s19, %s26
    %s154 = ssub.s32 %s18, %s30
    %s155 = sor.u32 %s153, %s154
    %p156 = scmp.eq.s32.totalorder %s155, 0
    %s158 = sadd.s32 %s157, 1
    %s159 = scalar_select %p156, %s157, %s158
    %p162 = pneg %p156
    %p163 = scmp.eq.s32.totalorder %s11, 1
    %p164 = por %p162, %p163
    %p165 = scmp.ne.s32.totalorder %s157, %s160
    %p166 = scmp.eq.s32.totalorder %s11, 0
    %p167 = por %p165, %p166
    %p168 = scmp.ne.s32.totalorder %s157, %s160
    %p169 = scmp.eq.s32.totalorder %s16, 1
    %p170 = por %p168, %p169
    %p171 = scmp.ne.s32.totalorder %s160, %s161
    %p172 = scmp.eq.s32.totalorder %s16, 0
    %p173 = por %p171, %p172
    %p174 = scmp.ne.s32.totalorder %s160, %s161
    %p175 = scmp.eq.s32.totalorder %s17, 1
    %p176 = por %p174, %p175
    %p178 = scmp.ne.s32.totalorder %s161, %s177
    %p179 = scmp.eq.s32.totalorder %s17, 0
    %p180 = por %p178, %p179
    %p181 = scmp.le.s32.totalorder 1, %s11
    %p182 = scmp.lt.s32.totalorder %s11, 3
    %p183 = pnand %p181, %p182
    %p184 = pneg %p183
    // Predicated region
    $region9: #{basic_block_forward.5} parent=5 // pred_check
      _
    $region10: #{basic_block_forward.5} parent=5 // pred_check_branch
      %186 = sbr.rel (%p183) target = $region12
    $region11: #{basic_block_forward.5} parent=5 // pred_region
      %s187 = ssub.s32 %s11, 1
      // Predicated region
      $region13: #{basic_block_forward.5} parent=11 // pred_check
        %p188 = pneg %p70
      $region14: #{basic_block_forward.5} parent=11 // pred_check_branch
        %190 = sbr.rel (%p188) target = $region16
      $region15: #{basic_block_forward.5} parent=11 // pred_region
        _
      $region16: #{basic_block_forward.5} parent=11 // pred_fallthru
        _
      // Predicated region
      $region17: #{basic_block_forward.5} parent=11 // pred_check
        %p191 = pneg %p91
      $region18: #{basic_block_forward.5} parent=11 // pred_check_branch
        %193 = sbr.rel (%p191) target = $region20
      $region19: #{basic_block_forward.5} parent=11 // pred_region
        _
      $region20: #{basic_block_forward.5} parent=11 // pred_fallthru
        _
      // Predicated region
      $region21: #{basic_block_forward.5} parent=11 // pred_check
        %p194 = pneg %p117
      $region22: #{basic_block_forward.5} parent=11 // pred_check_branch
        %196 = sbr.rel (%p194) target = $region24
      $region23: #{basic_block_forward.5} parent=11 // pred_region
        %p197 = scmp.lt.s32.totalorder %s20, 0
        %s198 = scalar_select %p197, %s20, 0
        %s199 = smul.addr %s198, 4
        %s200 = scalar_lea.vmem %s3, %s199
      $region24: #{basic_block_forward.5} parent=11 // pred_fallthru
        _
    $region12: #{basic_block_forward.5} parent=5 // pred_fallthru
      _
    %p201 = scmp.lt.s32.totalorder %s11, 2
    // Predicated region
    $region25: #{basic_block_forward.5} parent=5 // pred_check
      %p202 = pneg %p201
    $region26: #{basic_block_forward.5} parent=5 // pred_check_branch
      %204 = sbr.rel (%p202) target = $region28
    $region27: #{basic_block_forward.5} parent=5 // pred_region
      // Predicated region
      $region29: #{basic_block_forward.5} parent=27 // pred_check
        %p205 = pneg %p43
      $region30: #{basic_block_forward.5} parent=27 // pred_check_branch
        %207 = sbr.rel (%p205) target = $region32
      $region31: #{basic_block_forward.5} parent=27 // pred_region
        %p208 = scmp.lt.s32.totalorder %s19, 1
        %s209 = scalar_select %p208, %s19, 1
        %s210 = smul.addr %s209, 8
        %s211 = smul.addr %s210, 4
        %s212 = scalar_lea.vmem %s0, %s211
      $region32: #{basic_block_forward.5} parent=27 // pred_fallthru
        _
      // Predicated region
      $region33: #{basic_block_forward.5} parent=27 // pred_check
        %p213 = pneg %p139
      $region34: #{basic_block_forward.5} parent=27 // pred_check_branch
        %215 = sbr.rel (%p213) target = $region36
      $region35: #{basic_block_forward.5} parent=27 // pred_region
        %p216 = scmp.lt.s32.totalorder %s19, 1
        %s217 = scalar_select %p216, %s19, 1
        %p218 = scmp.lt.s32.totalorder %s18, 0
        %s219 = scalar_select %p218, %s18, 0
        %s220 = smul.addr %s217, 8
        %s221 = sadd.s32 %s219, %s220
        %s222 = smul.addr %s221, 8
        %s223 = scalar_lea.vmem %s4, %s222
      $region36: #{basic_block_forward.5} parent=27 // pred_fallthru
        _
    $region28: #{basic_block_forward.5} parent=5 // pred_fallthru
      _
    %p224 = scmp.le.s32.totalorder 1, %s11
    %p225 = scmp.lt.s32.totalorder %s11, 3
    %p226 = pnand %p224, %p225
    %p227 = pneg %p226
    // Predicated region
    $region37: #{basic_block_forward.5} parent=5 // pred_check
      _
    $region38: #{basic_block_forward.5} parent=5 // pred_check_branch
      %229 = sbr.rel (%p226) target = $region40
    $region39: #{basic_block_forward.5} parent=5 // pred_region
      %s230 = ssub.s32 %s11, 1
      %p231 = scmp.lt.s32.totalorder %s21, 1
      %s232 = scalar_select %p231, %s21, 1
      %s233 = smul.addr %s232, 8
      %s234 = smul.addr %s233, 4
      %s235 = scalar_lea.vmem %s0, %s234
      %p236 = pneg %p49
      %p237 = pneg %p46
      %p238 = pneg %p70
      %p239 = pneg %p67
      %p240 = pneg %p91
      %p241 = pneg %p88
      %p242 = scmp.lt.s32.totalorder %s20, 0
      %s243 = scalar_select %p242, %s20, 0
      %s244 = smul.addr %s243, 4
      %s245 = scalar_lea.vmem %s3, %s244
      %p246 = pneg %p117
      %p247 = pneg %p114
      %p248 = scmp.lt.s32.totalorder %s21, 1
      %s249 = scalar_select %p248, %s21, 1
      %p250 = scmp.lt.s32.totalorder %s20, 0
      %s251 = scalar_select %p250, %s20, 0
      %s252 = smul.addr %s249, 8
      %s253 = sadd.s32 %s251, %s252
      %s254 = smul.addr %s253, 8
      %s255 = scalar_lea.vmem %s4, %s254
      %p256 = pneg %p145
      %p257 = pneg %p142
      %p258 = pneg %p173
      %p259 = pneg %p170
      %p260 = scmp.lt.s32.totalorder %s21, 1
      %s261 = scalar_select %p260, %s21, 1
      %p262 = scmp.lt.s32.totalorder %s20, 0
      %s263 = scalar_select %p262, %s20, 0
      %s264 = smul.addr %s261, 8
      %s265 = sadd.s32 %s263, %s264
      %s266 = smul.addr %s265, 8
      %s267 = scalar_lea.vmem %s5, %s266
      %p268 = scmp.lt.s32.totalorder %s21, 1
      %s269 = scalar_select %p268, %s21, 1
      %s270 = smul.addr %s269, 8
      %s271 = smul.addr %s270, 4
      %s272 = scalar_lea.vmem %s0, %s271
      %p273 = scmp.lt.s32.totalorder %s20, 0
      %s274 = scalar_select %p273, %s20, 0
      %s275 = smul.addr %s274, 4
      %s276 = scalar_lea.vmem %s3, %s275
      %p277 = scmp.lt.s32.totalorder %s21, 1
      %s278 = scalar_select %p277, %s21, 1
      %p279 = scmp.lt.s32.totalorder %s20, 0
      %s280 = scalar_select %p279, %s20, 0
      %s281 = smul.addr %s278, 8
      %s282 = sadd.s32 %s280, %s281
      %s283 = smul.addr %s282, 8
      %s284 = scalar_lea.vmem %s4, %s283
      %p285 = scmp.lt.s32.totalorder %s21, 1
      %s286 = scalar_select %p285, %s21, 1
      %p287 = scmp.lt.s32.totalorder %s20, 0
      %s288 = scalar_select %p287, %s20, 0
      %s289 = smul.addr %s286, 8
      %s290 = sadd.s32 %s288, %s289
      %s291 = smul.addr %s290, 8
      %s292 = scalar_lea.vmem %s5, %s291
      %v294 = vld [vmem:[%s1] sm:$0x1]
      %v295 = vld [vmem:[%s2] sm:$0x1]
      %296 = vst [vmem:[#allocation2] sm:$0xff] 0.0
      %297 = vst [vmem:[#allocation2 + $0x8] sm:$0x3] 0.0
      %s298 = scalar_lea.vmem [#allocation2], 144
      %299 = vst [vmem:[%s298] sm:$0xff] 0.0
      %300 = vst [vmem:[%s298 + $0x8] sm:$0x3] 0.0
      %s301 = scalar_lea.vmem [#allocation2], 16
      %302 = vst [vmem:[%s301] sm:$0x1] 0.0
      %303 = vst [vmem:[%s301 + $0x10] sm:$0x1] 0.0
      %304 = vst [vmem:[%s301 + $0x20] sm:$0x1] 0.0
      %305 = vst [vmem:[%s301 + $0x30] sm:$0x1] 0.0
      %306 = vst [vmem:[%s301 + $0x40] sm:$0x1] 0.0
      %307 = vst [vmem:[%s301 + $0x50] sm:$0x1] 0.0
      %308 = vst [vmem:[%s301 + $0x60] sm:$0x1] 0.0
      %309 = vst [vmem:[%s301 + $0x70] sm:$0x1] 0.0
      %310 = vst [vmem:[%s301 + $0x9] sm:$0x1] 0.0
      %311 = vst [vmem:[%s301 + $0x19] sm:$0x1] 0.0
      %312 = vst [vmem:[%s301 + $0x29] sm:$0x1] 0.0
      %313 = vst [vmem:[%s301 + $0x39] sm:$0x1] 0.0
      %314 = vst [vmem:[%s301 + $0x49] sm:$0x1] 0.0
      %315 = vst [vmem:[%s301 + $0x59] sm:$0x1] 0.0
      %316 = vst [vmem:[%s301 + $0x69] sm:$0x1] 0.0
      %317 = vst [vmem:[%s301 + $0x79] sm:$0x1] 0.0
      %v318 = vld [vmem:[%s272] sm:$0xf]
      %v319 = vld [vmem:[%s272 + $0x4] sm:$0xf]
      %v320 = vld [vmem:[%s272 + $0x8] sm:$0xf]
      %v321 = vld [vmem:[%s272 + $0xc] sm:$0xf]
      %v322 = vld [vmem:[%s272 + $0x10] sm:$0xf]
      %v323 = vld [vmem:[%s272 + $0x14] sm:$0xf]
      %v324 = vld [vmem:[%s272 + $0x18] sm:$0xf]
      %v325 = vld [vmem:[%s272 + $0x1c] sm:$0xf]
      %v326 = vunpack.c.l.bf16 %v318
      %v327 = vunpack.c.l.bf16 %v319
      %v328 = vunpack.c.l.bf16 %v320
      %v329 = vunpack.c.l.bf16 %v321
      %v330 = vunpack.c.l.bf16 %v322
      %v331 = vunpack.c.l.bf16 %v323
      %v332 = vunpack.c.l.bf16 %v324
      %v333 = vunpack.c.l.bf16 %v325
      %v335 = vlaneseq
      %v336 = vshrl.u32 %v335, 7
      %v337 = vsub.s32 0, %v336
      %v338 = vrot.slane %v294, %v337
      %v340 = vmul.f32 %v326, %v338
      %v341 = vmul.f32 %v327, %v338
      %v342 = vmul.f32 %v328, %v338
      %v343 = vmul.f32 %v329, %v338
      %v344 = vmul.f32 %v330, %v338
      %v345 = vmul.f32 %v331, %v338
      %v346 = vmul.f32 %v332, %v338
      %v347 = vmul.f32 %v333, %v338
      %v349 = vlaneseq
      %v350 = vshrl.u32 %v349, 7
      %v351 = vsub.s32 0, %v350
      %v352 = vrot.slane %v295, %v351
      %v354 = vadd.f32 %v340, %v352
      %v355 = vadd.f32 %v341, %v352
      %v356 = vadd.f32 %v342, %v352
      %v357 = vadd.f32 %v343, %v352
      %v358 = vadd.f32 %v344, %v352
      %v359 = vadd.f32 %v345, %v352
      %v360 = vadd.f32 %v346, %v352
      %v361 = vadd.f32 %v347, %v352
      %v362 = vmax.f32 %v354, 0.0
      %v363 = vmax.f32 %v355, 0.0
      %v364 = vmax.f32 %v356, 0.0
      %v365 = vmax.f32 %v357, 0.0
      %v366 = vmax.f32 %v358, 0.0
      %v367 = vmax.f32 %v359, 0.0
      %v368 = vmax.f32 %v360, 0.0
      %v369 = vmax.f32 %v361, 0.0
      %370 = vst [vmem:[%s301 + $0x1] sm:$0xff] %v362
      %371 = vst [vmem:[%s301 + $0x11] sm:$0xff] %v363
      %372 = vst [vmem:[%s301 + $0x21] sm:$0xff] %v364
      %373 = vst [vmem:[%s301 + $0x31] sm:$0xff] %v365
      %374 = vst [vmem:[%s301 + $0x41] sm:$0xff] %v366
      %375 = vst [vmem:[%s301 + $0x51] sm:$0xff] %v367
      %376 = vst [vmem:[%s301 + $0x61] sm:$0xff] %v368
      %377 = vst [vmem:[%s301 + $0x71] sm:$0xff] %v369
      %v378 = vld [vmem:[#allocation2] sm:$0xff]
      %v379 = vld [vmem:[#allocation2 + $0x10] sm:$0xff]
      %v380 = vld [vmem:[#allocation2 + $0x20] sm:$0xff]
      %v381 = vld [vmem:[#allocation2 + $0x30] sm:$0xff]
      %v382 = vld [vmem:[#allocation2 + $0x40] sm:$0xff]
      %v383 = vld [vmem:[#allocation2 + $0x50] sm:$0xff]
      %v384 = vld [vmem:[#allocation2 + $0x60] sm:$0xff]
      %v385 = vld [vmem:[#allocation2 + $0x70] sm:$0xff]
      %v386 = vpack.c.bf16 %v379, %v378
      %v387 = vpack.c.bf16 %v381, %v380
      %v388 = vpack.c.bf16 %v383, %v382
      %v389 = vpack.c.bf16 %v385, %v384
      %v390 = vld [vmem:[%s276] sm:$0xf]
      %v391 = vld [vmem:[%s276 + $0x4] sm:$0xf]
      %v392 = vld [vmem:[%s276 + $0x8] sm:$0xf]
      %v393 = vld [vmem:[%s276 + $0xc] sm:$0xf]
      %v394 = vld [vmem:[%s276 + $0x10] sm:$0xf]
      %v395 = vld [vmem:[%s276 + $0x14] sm:$0xf]
      %v396 = vld [vmem:[%s276 + $0x18] sm:$0xf]
      %v397 = vld [vmem:[%s276 + $0x1c] sm:$0xf]
      %v398 = vld [vmem:[%s276 + $0x20] sm:$0xf]
      %v399 = vld [vmem:[%s276 + $0x24] sm:$0xf]
      %v400 = vld [vmem:[%s276 + $0x28] sm:$0xf]
      %v401 = vld [vmem:[%s276 + $0x2c] sm:$0xf]
      %v402 = vld [vmem:[%s276 + $0x30] sm:$0xf]
      %v403 = vld [vmem:[%s276 + $0x34] sm:$0xf]
      %v404 = vld [vmem:[%s276 + $0x38] sm:$0xf]
      %v405 = vld [vmem:[%s276 + $0x3c] sm:$0xf]
      %v406 = vld [vmem:[#allocation2 + $0x1] sm:$0xff]
      %v407 = vld [vmem:[#allocation2 + $0x11] sm:$0xff]
      %v408 = vld [vmem:[#allocation2 + $0x21] sm:$0xff]
      %v409 = vld [vmem:[#allocation2 + $0x31] sm:$0xff]
      %v410 = vld [vmem:[#allocation2 + $0x41] sm:$0xff]
      %v411 = vld [vmem:[#allocation2 + $0x51] sm:$0xff]
      %v412 = vld [vmem:[#allocation2 + $0x61] sm:$0xff]
      %v413 = vld [vmem:[#allocation2 + $0x71] sm:$0xff]
      %v414 = vpack.c.bf16 %v407, %v406
      %v415 = vpack.c.bf16 %v409, %v408
      %v416 = vpack.c.bf16 %v411, %v410
      %v417 = vpack.c.bf16 %v413, %v412
      %v418 = vld [vmem:[%s276 + $0x40] sm:$0xf]
      %v419 = vld [vmem:[%s276 + $0x44] sm:$0xf]
      %v420 = vld [vmem:[%s276 + $0x48] sm:$0xf]
      %v421 = vld [vmem:[%s276 + $0x4c] sm:$0xf]
      %v422 = vld [vmem:[%s276 + $0x50] sm:$0xf]
      %v423 = vld [vmem:[%s276 + $0x54] sm:$0xf]
      %v424 = vld [vmem:[%s276 + $0x58] sm:$0xf]
      %v425 = vld [vmem:[%s276 + $0x5c] sm:$0xf]
      %v426 = vld [vmem:[%s276 + $0x60] sm:$0xf]
      %v427 = vld [vmem:[%s276 + $0x64] sm:$0xf]
      %v428 = vld [vmem:[%s276 + $0x68] sm:$0xf]
      %v429 = vld [vmem:[%s276 + $0x6c] sm:$0xf]
      %v430 = vld [vmem:[%s276 + $0x70] sm:$0xf]
      %v431 = vld [vmem:[%s276 + $0x74] sm:$0xf]
      %v432 = vld [vmem:[%s276 + $0x78] sm:$0xf]
      %v433 = vld [vmem:[%s276 + $0x7c] sm:$0xf]
      %v450 = vunpack.c.l.b16 %v418
      %v451 = vunpack.c.l.b16 %v419
      %v452 = vunpack.c.l.b16 %v420
      %v453 = vunpack.c.l.b16 %v421
      %v454 = vunpack.c.l.b16 %v422
      %v455 = vunpack.c.l.b16 %v423
      %v456 = vunpack.c.l.b16 %v424
      %v457 = vunpack.c.l.b16 %v425
      %v458 = vunpack.c.l.b16 %v426
      %v459 = vunpack.c.l.b16 %v427
      %v460 = vunpack.c.l.b16 %v428
      %v461 = vunpack.c.l.b16 %v429
      %v462 = vunpack.c.l.b16 %v430
      %v463 = vunpack.c.l.b16 %v431
      %v464 = vunpack.c.l.b16 %v432
      %v465 = vunpack.c.l.b16 %v433
      %v466 = vpack.c.b16 %v451, %v450
      %v467 = vpack.c.b16 %v453, %v452
      %v468 = vpack.c.b16 %v455, %v454
      %v469 = vpack.c.b16 %v457, %v456
      %v470 = vpack.c.b16 %v459, %v458
      %v471 = vpack.c.b16 %v461, %v460
      %v472 = vpack.c.b16 %v463, %v462
      %v473 = vpack.c.b16 %v465, %v464
      %482 = vmatprep.subr.bf16.mxu0 0
      %483 = vmatpush1.bf16.msra.mxu0 %v473
      %484 = vmatprep.subr.bf16.mxu0 0
      %485 = vmatpush1.bf16.msra.mxu0 %v472
      %486 = vmatprep.subr.bf16.mxu0 0
      %487 = vmatpush1.bf16.msra.mxu0 %v471
      %488 = vmatprep.subr.bf16.mxu0 0
      %489 = vmatpush1.bf16.msra.mxu0 %v470
      %490 = vmatprep.subr.bf16.mxu0 0
      %491 = vmatpush1.bf16.msra.mxu0 %v469
      %492 = vmatprep.subr.bf16.mxu0 0
      %493 = vmatpush1.bf16.msra.mxu0 %v468
      %494 = vmatprep.subr.bf16.mxu0 0
      %495 = vmatpush1.bf16.msra.mxu0 %v467
      %496 = vmatprep.subr.bf16.mxu0 0
      %497 = vmatpush1.bf16.msra.mxu0 %v466
      %498 = vmatprep.subr.bf16.mxu0 0
      %499 = vmatpush2.bf16.msra.mxu0 0
      %500 = vmatprep.subr.bf16.mxu0 0
      %501 = vmatpush2.bf16.msra.mxu0 0
      %502 = vmatprep.subr.bf16.mxu0 0
      %503 = vmatpush2.bf16.msra.mxu0 0
      %504 = vmatprep.subr.bf16.mxu0 0
      %505 = vmatpush2.bf16.msra.mxu0 0
      %506 = vmatprep.subr.bf16.mxu0 0
      %507 = vmatpush2.bf16.msra.mxu0 0
      %508 = vmatprep.subr.bf16.mxu0 0
      %509 = vmatpush2.bf16.msra.mxu0 0
      %510 = vmatprep.subr.bf16.mxu0 0
      %511 = vmatpush2.bf16.msra.mxu0 0
      %512 = vmatprep.subr.bf16.mxu0 0
      %513 = vmatpush2.bf16.msra.mxu0 0
      %514 = vmatprep.mubr.bf16.mxu0 0
      %515 = vmatmul.mubr.bf16.gmra.mxu0 %v414
      %v516 = vpop.f32.mrf.mxu0
      %v517 = vadd.f32 0.0, %v516
      %v518 = vpop.f32.mrf.mxu0
      %v519 = vpop.f32.mrf.mxu0
      %v520 = vadd.f32 0.0, %v519
      %v521 = vpop.f32.mrf.mxu0
      %522 = vmatprep.mubr.bf16.mxu0 0
      %523 = vmatmul.mubr.bf16.gmra.mxu0 %v415
      %v524 = vpop.f32.mrf.mxu0
      %v525 = vadd.f32 0.0, %v524
      %v526 = vpop.f32.mrf.mxu0
      %v527 = vpop.f32.mrf.mxu0
      %v528 = vadd.f32 0.0, %v527
      %v529 = vpop.f32.mrf.mxu0
      %530 = vmatprep.mubr.bf16.mxu0 0
      %531 = vmatmul.mubr.bf16.gmra.mxu0 %v416
      %v532 = vpop.f32.mrf.mxu0
      %v533 = vadd.f32 0.0, %v532
      %v534 = vpop.f32.mrf.mxu0
      %v535 = vpop.f32.mrf.mxu0
      %v536 = vadd.f32 0.0, %v535
      %v537 = vpop.f32.mrf.mxu0
      %538 = vmatprep.mubr.bf16.mxu0 0
      %539 = vmatmul.mubr.bf16.gmra.mxu0 %v417
      %v540 = vpop.f32.mrf.mxu0
      %v541 = vadd.f32 0.0, %v540
      %v542 = vpop.f32.mrf.mxu0
      %v543 = vpop.f32.mrf.mxu0
      %v544 = vadd.f32 0.0, %v543
      %v545 = vpop.f32.mrf.mxu0
      %546 = vdwg.mxu0
      %v563 = vunpack.c.l.b16 %v390
      %v564 = vunpack.c.l.b16 %v391
      %v565 = vunpack.c.l.b16 %v392
      %v566 = vunpack.c.l.b16 %v393
      %v567 = vunpack.c.l.b16 %v394
      %v568 = vunpack.c.l.b16 %v395
      %v569 = vunpack.c.l.b16 %v396
      %v570 = vunpack.c.l.b16 %v397
      %v571 = vunpack.c.l.b16 %v398
      %v572 = vunpack.c.l.b16 %v399
      %v573 = vunpack.c.l.b16 %v400
      %v574 = vunpack.c.l.b16 %v401
      %v575 = vunpack.c.l.b16 %v402
      %v576 = vunpack.c.l.b16 %v403
      %v577 = vunpack.c.l.b16 %v404
      %v578 = vunpack.c.l.b16 %v405
      %v579 = vpack.c.b16 %v564, %v563
      %v580 = vpack.c.b16 %v566, %v565
      %v581 = vpack.c.b16 %v568, %v567
      %v582 = vpack.c.b16 %v570, %v569
      %v583 = vpack.c.b16 %v572, %v571
      %v584 = vpack.c.b16 %v574, %v573
      %v585 = vpack.c.b16 %v576, %v575
      %v586 = vpack.c.b16 %v578, %v577
      %595 = vmatprep.subr.bf16.mxu0 0
      %596 = vmatpush1.bf16.msra.mxu0 %v586
      %597 = vmatprep.subr.bf16.mxu0 0
      %598 = vmatpush1.bf16.msra.mxu0 %v585
      %599 = vmatprep.subr.bf16.mxu0 0
      %600 = vmatpush1.bf16.msra.mxu0 %v584
      %601 = vmatprep.subr.bf16.mxu0 0
      %602 = vmatpush1.bf16.msra.mxu0 %v583
      %603 = vmatprep.subr.bf16.mxu0 0
      %604 = vmatpush1.bf16.msra.mxu0 %v582
      %605 = vmatprep.subr.bf16.mxu0 0
      %606 = vmatpush1.bf16.msra.mxu0 %v581
      %607 = vmatprep.subr.bf16.mxu0 0
      %608 = vmatpush1.bf16.msra.mxu0 %v580
      %609 = vmatprep.subr.bf16.mxu0 0
      %610 = vmatpush1.bf16.msra.mxu0 %v579
      %611 = vmatprep.subr.bf16.mxu0 0
      %612 = vmatpush2.bf16.msra.mxu0 0
      %613 = vmatprep.subr.bf16.mxu0 0
      %614 = vmatpush2.bf16.msra.mxu0 0
      %615 = vmatprep.subr.bf16.mxu0 0
      %616 = vmatpush2.bf16.msra.mxu0 0
      %617 = vmatprep.subr.bf16.mxu0 0
      %618 = vmatpush2.bf16.msra.mxu0 0
      %619 = vmatprep.subr.bf16.mxu0 0
      %620 = vmatpush2.bf16.msra.mxu0 0
      %621 = vmatprep.subr.bf16.mxu0 0
      %622 = vmatpush2.bf16.msra.mxu0 0
      %623 = vmatprep.subr.bf16.mxu0 0
      %624 = vmatpush2.bf16.msra.mxu0 0
      %625 = vmatprep.subr.bf16.mxu0 0
      %626 = vmatpush2.bf16.msra.mxu0 0
      %627 = vmatprep.mubr.bf16.mxu0 0
      %628 = vmatmul.mubr.bf16.gmra.mxu0 %v386
      %v629 = vpop.f32.mrf.mxu0
      %v630 = vadd.f32 %v517, %v629
      %v631 = vpop.f32.mrf.mxu0
      %v632 = vpop.f32.mrf.mxu0
      %v633 = vadd.f32 %v520, %v632
      %v634 = vpop.f32.mrf.mxu0
      %635 = vmatprep.mubr.bf16.mxu0 0
      %636 = vmatmul.mubr.bf16.gmra.mxu0 %v387
      %v637 = vpop.f32.mrf.mxu0
      %v638 = vadd.f32 %v525, %v637
      %v639 = vpop.f32.mrf.mxu0
      %v640 = vpop.f32.mrf.mxu0
      %v641 = vadd.f32 %v528, %v640
      %v642 = vpop.f32.mrf.mxu0
      %643 = vmatprep.mubr.bf16.mxu0 0
      %644 = vmatmul.mubr.bf16.gmra.mxu0 %v388
      %v645 = vpop.f32.mrf.mxu0
      %v646 = vadd.f32 %v533, %v645
      %v647 = vpop.f32.mrf.mxu0
      %v648 = vpop.f32.mrf.mxu0
      %v649 = vadd.f32 %v536, %v648
      %v650 = vpop.f32.mrf.mxu0
      %651 = vmatprep.mubr.bf16.mxu0 0
      %652 = vmatmul.mubr.bf16.gmra.mxu0 %v389
      %v653 = vpop.f32.mrf.mxu0
      %v654 = vadd.f32 %v541, %v653
      %v655 = vpop.f32.mrf.mxu0
      %v656 = vpop.f32.mrf.mxu0
      %v657 = vadd.f32 %v544, %v656
      %v658 = vpop.f32.mrf.mxu0
      %659 = vdwg.mxu0
      %v660 = vld [vmem:[#allocation2 + $0x2] sm:$0xff]
      %v661 = vld [vmem:[#allocation2 + $0x12] sm:$0xff]
      %v662 = vld [vmem:[#allocation2 + $0x22] sm:$0xff]
      %v663 = vld [vmem:[#allocation2 + $0x32] sm:$0xff]
      %v664 = vld [vmem:[#allocation2 + $0x42] sm:$0xff]
      %v665 = vld [vmem:[#allocation2 + $0x52] sm:$0xff]
      %v666 = vld [vmem:[#allocation2 + $0x62] sm:$0xff]
      %v667 = vld [vmem:[#allocation2 + $0x72] sm:$0xff]
      %v668 = vpack.c.bf16 %v661, %v660
      %v669 = vpack.c.bf16 %v663, %v662
      %v670 = vpack.c.bf16 %v665, %v664
      %v671 = vpack.c.bf16 %v667, %v666
      %v672 = vld [vmem:[%s276 + $0x80] sm:$0xf]
      %v673 = vld [vmem:[%s276 + $0x84] sm:$0xf]
      %v674 = vld [vmem:[%s276 + $0x88] sm:$0xf]
      %v675 = vld [vmem:[%s276 + $0x8c] sm:$0xf]
      %v676 = vld [vmem:[%s276 + $0x90] sm:$0xf]
      %v677 = vld [vmem:[%s276 + $0x94] sm:$0xf]
      %v678 = vld [vmem:[%s276 + $0x98] sm:$0xf]
      %v679 = vld [vmem:[%s276 + $0x9c] sm:$0xf]
      %v680 = vld [vmem:[%s276 + $0xa0] sm:$0xf]
      %v681 = vld [vmem:[%s276 + $0xa4] sm:$0xf]
      %v682 = vld [vmem:[%s276 + $0xa8] sm:$0xf]
      %v683 = vld [vmem:[%s276 + $0xac] sm:$0xf]
      %v684 = vld [vmem:[%s276 + $0xb0] sm:$0xf]
      %v685 = vld [vmem:[%s276 + $0xb4] sm:$0xf]
      %v686 = vld [vmem:[%s276 + $0xb8] sm:$0xf]
      %v687 = vld [vmem:[%s276 + $0xbc] sm:$0xf]
      %v704 = vunpack.c.l.b16 %v672
      %v705 = vunpack.c.l.b16 %v673
      %v706 = vunpack.c.l.b16 %v674
      %v707 = vunpack.c.l.b16 %v675
      %v708 = vunpack.c.l.b16 %v676
      %v709 = vunpack.c.l.b16 %v677
      %v710 = vunpack.c.l.b16 %v678
      %v711 = vunpack.c.l.b16 %v679
      %v712 = vunpack.c.l.b16 %v680
      %v713 = vunpack.c.l.b16 %v681
      %v714 = vunpack.c.l.b16 %v682
      %v715 = vunpack.c.l.b16 %v683
      %v716 = vunpack.c.l.b16 %v684
      %v717 = vunpack.c.l.b16 %v685
      %v718 = vunpack.c.l.b16 %v686
      %v719 = vunpack.c.l.b16 %v687
      %v720 = vpack.c.b16 %v705, %v704
      %v721 = vpack.c.b16 %v707, %v706
      %v722 = vpack.c.b16 %v709, %v708
      %v723 = vpack.c.b16 %v711, %v710
      %v724 = vpack.c.b16 %v713, %v712
      %v725 = vpack.c.b16 %v715, %v714
      %v726 = vpack.c.b16 %v717, %v716
      %v727 = vpack.c.b16 %v719, %v718
      %736 = vmatprep.subr.bf16.mxu0 0
      %737 = vmatpush1.bf16.msra.mxu0 %v727
      %738 = vmatprep.subr.bf16.mxu0 0
      %739 = vmatpush1.bf16.msra.mxu0 %v726
      %740 = vmatprep.subr.bf16.mxu0 0
      %741 = vmatpush1.bf16.msra.mxu0 %v725
      %742 = vmatprep.subr.bf16.mxu0 0
      %743 = vmatpush1.bf16.msra.mxu0 %v724
      %744 = vmatprep.subr.bf16.mxu0 0
      %745 = vmatpush1.bf16.msra.mxu0 %v723
      %746 = vmatprep.subr.bf16.mxu0 0
      %747 = vmatpush1.bf16.msra.mxu0 %v722
      %748 = vmatprep.subr.bf16.mxu0 0
      %749 = vmatpush1.bf16.msra.mxu0 %v721
      %750 = vmatprep.subr.bf16.mxu0 0
      %751 = vmatpush1.bf16.msra.mxu0 %v720
      %752 = vmatprep.subr.bf16.mxu0 0
      %753 = vmatpush2.bf16.msra.mxu0 0
      %754 = vmatprep.subr.bf16.mxu0 0
      %755 = vmatpush2.bf16.msra.mxu0 0
      %756 = vmatprep.subr.bf16.mxu0 0
      %757 = vmatpush2.bf16.msra.mxu0 0
      %758 = vmatprep.subr.bf16.mxu0 0
      %759 = vmatpush2.bf16.msra.mxu0 0
      %760 = vmatprep.subr.bf16.mxu0 0
      %761 = vmatpush2.bf16.msra.mxu0 0
      %762 = vmatprep.subr.bf16.mxu0 0
      %763 = vmatpush2.bf16.msra.mxu0 0
      %764 = vmatprep.subr.bf16.mxu0 0
      %765 = vmatpush2.bf16.msra.mxu0 0
      %766 = vmatprep.subr.bf16.mxu0 0
      %767 = vmatpush2.bf16.msra.mxu0 0
      %768 = vmatprep.mubr.bf16.mxu0 0
      %769 = vmatmul.mubr.bf16.gmra.mxu0 %v668
      %v770 = vpop.f32.mrf.mxu0
      %v771 = vadd.f32 0.0, %v770
      %v772 = vpop.f32.mrf.mxu0
      %v773 = vpop.f32.mrf.mxu0
      %v774 = vadd.f32 0.0, %v773
      %v775 = vpop.f32.mrf.mxu0
      %776 = vmatprep.mubr.bf16.mxu0 0
      %777 = vmatmul.mubr.bf16.gmra.mxu0 %v669
      %v778 = vpop.f32.mrf.mxu0
      %v779 = vadd.f32 0.0, %v778
      %v780 = vpop.f32.mrf.mxu0
      %v781 = vpop.f32.mrf.mxu0
      %v782 = vadd.f32 0.0, %v781
      %v783 = vpop.f32.mrf.mxu0
      %784 = vmatprep.mubr.bf16.mxu0 0
      %785 = vmatmul.mubr.bf16.gmra.mxu0 %v670
      %v786 = vpop.f32.mrf.mxu0
      %v787 = vadd.f32 0.0, %v786
      %v788 = vpop.f32.mrf.mxu0
      %v789 = vpop.f32.mrf.mxu0
      %v790 = vadd.f32 0.0, %v789
      %v791 = vpop.f32.mrf.mxu0
      %792 = vmatprep.mubr.bf16.mxu0 0
      %793 = vmatmul.mubr.bf16.gmra.mxu0 %v671
      %v794 = vpop.f32.mrf.mxu0
      %v795 = vadd.f32 0.0, %v794
      %v796 = vpop.f32.mrf.mxu0
      %v797 = vpop.f32.mrf.mxu0
      %v798 = vadd.f32 0.0, %v797
      %v799 = vpop.f32.mrf.mxu0
      %800 = vdwg.mxu0
      %v801 = vadd.f32 %v630, %v771
      %v802 = vadd.f32 %v633, %v774
      %v803 = vadd.f32 %v638, %v779
      %v804 = vadd.f32 %v641, %v782
      %v805 = vadd.f32 %v646, %v787
      %v806 = vadd.f32 %v649, %v790
      %v807 = vadd.f32 %v654, %v795
      %v808 = vadd.f32 %v657, %v798
      %v809 = vld [vmem:[%s301] sm:$0xff]
      %v810 = vld [vmem:[%s301 + $0x10] sm:$0xff]
      %v811 = vld [vmem:[%s301 + $0x20] sm:$0xff]
      %v812 = vld [vmem:[%s301 + $0x30] sm:$0xff]
      %v813 = vld [vmem:[%s301 + $0x40] sm:$0xff]
      %v814 = vld [vmem:[%s301 + $0x50] sm:$0xff]
      %v815 = vld [vmem:[%s301 + $0x60] sm:$0xff]
      %v816 = vld [vmem:[%s301 + $0x70] sm:$0xff]
      %v817 = vpack.c.bf16 %v810, %v809
      %v818 = vpack.c.bf16 %v812, %v811
      %v819 = vpack.c.bf16 %v814, %v813
      %v820 = vpack.c.bf16 %v816, %v815
      %v821 = vld [vmem:[%s276 + $0xc0] sm:$0xf]
      %v822 = vld [vmem:[%s276 + $0xc4] sm:$0xf]
      %v823 = vld [vmem:[%s276 + $0xc8] sm:$0xf]
      %v824 = vld [vmem:[%s276 + $0xcc] sm:$0xf]
      %v825 = vld [vmem:[%s276 + $0xd0] sm:$0xf]
      %v826 = vld [vmem:[%s276 + $0xd4] sm:$0xf]
      %v827 = vld [vmem:[%s276 + $0xd8] sm:$0xf]
      %v828 = vld [vmem:[%s276 + $0xdc] sm:$0xf]
      %v829 = vld [vmem:[%s276 + $0xe0] sm:$0xf]
      %v830 = vld [vmem:[%s276 + $0xe4] sm:$0xf]
      %v831 = vld [vmem:[%s276 + $0xe8] sm:$0xf]
      %v832 = vld [vmem:[%s276 + $0xec] sm:$0xf]
      %v833 = vld [vmem:[%s276 + $0xf0] sm:$0xf]
      %v834 = vld [vmem:[%s276 + $0xf4] sm:$0xf]
      %v835 = vld [vmem:[%s276 + $0xf8] sm:$0xf]
      %v836 = vld [vmem:[%s276 + $0xfc] sm:$0xf]
      %v853 = vunpack.c.l.b16 %v821
      %v854 = vunpack.c.l.b16 %v822
      %v855 = vunpack.c.l.b16 %v823
      %v856 = vunpack.c.l.b16 %v824
      %v857 = vunpack.c.l.b16 %v825
      %v858 = vunpack.c.l.b16 %v826
      %v859 = vunpack.c.l.b16 %v827
      %v860 = vunpack.c.l.b16 %v828
      %v861 = vunpack.c.l.b16 %v829
      %v862 = vunpack.c.l.b16 %v830
      %v863 = vunpack.c.l.b16 %v831
      %v864 = vunpack.c.l.b16 %v832
      %v865 = vunpack.c.l.b16 %v833
      %v866 = vunpack.c.l.b16 %v834
      %v867 = vunpack.c.l.b16 %v835
      %v868 = vunpack.c.l.b16 %v836
      %v869 = vpack.c.b16 %v854, %v853
      %v870 = vpack.c.b16 %v856, %v855
      %v871 = vpack.c.b16 %v858, %v857
      %v872 = vpack.c.b16 %v860, %v859
      %v873 = vpack.c.b16 %v862, %v861
      %v874 = vpack.c.b16 %v864, %v863
      %v875 = vpack.c.b16 %v866, %v865
      %v876 = vpack.c.b16 %v868, %v867
      %885 = vmatprep.subr.bf16.mxu0 0
      %886 = vmatpush1.bf16.msra.mxu0 %v876
      %887 = vmatprep.subr.bf16.mxu0 0
      %888 = vmatpush1.bf16.msra.mxu0 %v875
      %889 = vmatprep.subr.bf16.mxu0 0
      %890 = vmatpush1.bf16.msra.mxu0 %v874
      %891 = vmatprep.subr.bf16.mxu0 0
      %892 = vmatpush1.bf16.msra.mxu0 %v873
      %893 = vmatprep.subr.bf16.mxu0 0
      %894 = vmatpush1.bf16.msra.mxu0 %v872
      %895 = vmatprep.subr.bf16.mxu0 0
      %896 = vmatpush1.bf16.msra.mxu0 %v871
      %897 = vmatprep.subr.bf16.mxu0 0
      %898 = vmatpush1.bf16.msra.mxu0 %v870
      %899 = vmatprep.subr.bf16.mxu0 0
      %900 = vmatpush1.bf16.msra.mxu0 %v869
      %901 = vmatprep.subr.bf16.mxu0 0
      %902 = vmatpush2.bf16.msra.mxu0 0
      %903 = vmatprep.subr.bf16.mxu0 0
      %904 = vmatpush2.bf16.msra.mxu0 0
      %905 = vmatprep.subr.bf16.mxu0 0
      %906 = vmatpush2.bf16.msra.mxu0 0
      %907 = vmatprep.subr.bf16.mxu0 0
      %908 = vmatpush2.bf16.msra.mxu0 0
      %909 = vmatprep.subr.bf16.mxu0 0
      %910 = vmatpush2.bf16.msra.mxu0 0
      %911 = vmatprep.subr.bf16.mxu0 0
      %912 = vmatpush2.bf16.msra.mxu0 0
      %913 = vmatprep.subr.bf16.mxu0 0
      %914 = vmatpush2.bf16.msra.mxu0 0
      %915 = vmatprep.subr.bf16.mxu0 0
      %916 = vmatpush2.bf16.msra.mxu0 0
      %917 = vmatprep.mubr.bf16.mxu0 0
      %918 = vmatmul.mubr.bf16.gmra.mxu0 %v817
      %v919 = vpop.f32.mrf.mxu0
      %v920 = vadd.f32 0.0, %v919
      %v921 = vpop.f32.mrf.mxu0
      %v922 = vpop.f32.mrf.mxu0
      %v923 = vadd.f32 0.0, %v922
      %v924 = vpop.f32.mrf.mxu0
      %925 = vmatprep.mubr.bf16.mxu0 0
      %926 = vmatmul.mubr.bf16.gmra.mxu0 %v818
      %v927 = vpop.f32.mrf.mxu0
      %v928 = vadd.f32 0.0, %v927
      %v929 = vpop.f32.mrf.mxu0
      %v930 = vpop.f32.mrf.mxu0
      %v931 = vadd.f32 0.0, %v930
      %v932 = vpop.f32.mrf.mxu0
      %933 = vmatprep.mubr.bf16.mxu0 0
      %934 = vmatmul.mubr.bf16.gmra.mxu0 %v819
      %v935 = vpop.f32.mrf.mxu0
      %v936 = vadd.f32 0.0, %v935
      %v937 = vpop.f32.mrf.mxu0
      %v938 = vpop.f32.mrf.mxu0
      %v939 = vadd.f32 0.0, %v938
      %v940 = vpop.f32.mrf.mxu0
      %941 = vmatprep.mubr.bf16.mxu0 0
      %942 = vmatmul.mubr.bf16.gmra.mxu0 %v820
      %v943 = vpop.f32.mrf.mxu0
      %v944 = vadd.f32 0.0, %v943
      %v945 = vpop.f32.mrf.mxu0
      %v946 = vpop.f32.mrf.mxu0
      %v947 = vadd.f32 0.0, %v946
      %v948 = vpop.f32.mrf.mxu0
      %949 = vdwg.mxu0
      %v950 = vadd.f32 %v801, %v920
      %v951 = vadd.f32 %v802, %v923
      %v952 = vadd.f32 %v803, %v928
      %v953 = vadd.f32 %v804, %v931
      %v954 = vadd.f32 %v805, %v936
      %v955 = vadd.f32 %v806, %v939
      %v956 = vadd.f32 %v807, %v944
      %v957 = vadd.f32 %v808, %v947
      %v958 = vld [vmem:[%s301 + $0x1] sm:$0xff]
      %v959 = vld [vmem:[%s301 + $0x11] sm:$0xff]
      %v960 = vld [vmem:[%s301 + $0x21] sm:$0xff]
      %v961 = vld [vmem:[%s301 + $0x31] sm:$0xff]
      %v962 = vld [vmem:[%s301 + $0x41] sm:$0xff]
      %v963 = vld [vmem:[%s301 + $0x51] sm:$0xff]
      %v964 = vld [vmem:[%s301 + $0x61] sm:$0xff]
      %v965 = vld [vmem:[%s301 + $0x71] sm:$0xff]
      %v966 = vpack.c.bf16 %v959, %v958
      %v967 = vpack.c.bf16 %v961, %v960
      %v968 = vpack.c.bf16 %v963, %v962
      %v969 = vpack.c.bf16 %v965, %v964
      %v970 = vld [vmem:[%s276 + $0x100] sm:$0xf]
      %v971 = vld [vmem:[%s276 + $0x104] sm:$0xf]
      %v972 = vld [vmem:[%s276 + $0x108] sm:$0xf]
      %v973 = vld [vmem:[%s276 + $0x10c] sm:$0xf]
      %v974 = vld [vmem:[%s276 + $0x110] sm:$0xf]
      %v975 = vld [vmem:[%s276 + $0x114] sm:$0xf]
      %v976 = vld [vmem:[%s276 + $0x118] sm:$0xf]
      %v977 = vld [vmem:[%s276 + $0x11c] sm:$0xf]
      %v978 = vld [vmem:[%s276 + $0x120] sm:$0xf]
      %v979 = vld [vmem:[%s276 + $0x124] sm:$0xf]
      %v980 = vld [vmem:[%s276 + $0x128] sm:$0xf]
      %v981 = vld [vmem:[%s276 + $0x12c] sm:$0xf]
      %v982 = vld [vmem:[%s276 + $0x130] sm:$0xf]
      %v983 = vld [vmem:[%s276 + $0x134] sm:$0xf]
      %v984 = vld [vmem:[%s276 + $0x138] sm:$0xf]
      %v985 = vld [vmem:[%s276 + $0x13c] sm:$0xf]
      %v1002 = vunpack.c.l.b16 %v970
      %v1003 = vunpack.c.l.b16 %v971
      %v1004 = vunpack.c.l.b16 %v972
      %v1005 = vunpack.c.l.b16 %v973
      %v1006 = vunpack.c.l.b16 %v974
      %v1007 = vunpack.c.l.b16 %v975
      %v1008 = vunpack.c.l.b16 %v976
      %v1009 = vunpack.c.l.b16 %v977
      %v1010 = vunpack.c.l.b16 %v978
      %v1011 = vunpack.c.l.b16 %v979
      %v1012 = vunpack.c.l.b16 %v980
      %v1013 = vunpack.c.l.b16 %v981
      %v1014 = vunpack.c.l.b16 %v982
      %v1015 = vunpack.c.l.b16 %v983
      %v1016 = vunpack.c.l.b16 %v984
      %v1017 = vunpack.c.l.b16 %v985
      %v1018 = vpack.c.b16 %v1003, %v1002
      %v1019 = vpack.c.b16 %v1005, %v1004
      %v1020 = vpack.c.b16 %v1007, %v1006
      %v1021 = vpack.c.b16 %v1009, %v1008
      %v1022 = vpack.c.b16 %v1011, %v1010
      %v1023 = vpack.c.b16 %v1013, %v1012
      %v1024 = vpack.c.b16 %v1015, %v1014
      %v1025 = vpack.c.b16 %v1017, %v1016
      %1034 = vmatprep.subr.bf16.mxu0 0
      %1035 = vmatpush1.bf16.msra.mxu0 %v1025
      %1036 = vmatprep.subr.bf16.mxu0 0
      %1037 = vmatpush1.bf16.msra.mxu0 %v1024
      %1038 = vmatprep.subr.bf16.mxu0 0
      %1039 = vmatpush1.bf16.msra.mxu0 %v1023
      %1040 = vmatprep.subr.bf16.mxu0 0
      %1041 = vmatpush1.bf16.msra.mxu0 %v1022
      %1042 = vmatprep.subr.bf16.mxu0 0
      %1043 = vmatpush1.bf16.msra.mxu0 %v1021
      %1044 = vmatprep.subr.bf16.mxu0 0
      %1045 = vmatpush1.bf16.msra.mxu0 %v1020
      %1046 = vmatprep.subr.bf16.mxu0 0
      %1047 = vmatpush1.bf16.msra.mxu0 %v1019
      %1048 = vmatprep.subr.bf16.mxu0 0
      %1049 = vmatpush1.bf16.msra.mxu0 %v1018
      %1050 = vmatprep.subr.bf16.mxu0 0
      %1051 = vmatpush2.bf16.msra.mxu0 0
      %1052 = vmatprep.subr.bf16.mxu0 0
      %1053 = vmatpush2.bf16.msra.mxu0 0
      %1054 = vmatprep.subr.bf16.mxu0 0
      %1055 = vmatpush2.bf16.msra.mxu0 0
      %1056 = vmatprep.subr.bf16.mxu0 0
      %1057 = vmatpush2.bf16.msra.mxu0 0
      %1058 = vmatprep.subr.bf16.mxu0 0
      %1059 = vmatpush2.bf16.msra.mxu0 0
      %1060 = vmatprep.subr.bf16.mxu0 0
      %1061 = vmatpush2.bf16.msra.mxu0 0
      %1062 = vmatprep.subr.bf16.mxu0 0
      %1063 = vmatpush2.bf16.msra.mxu0 0
      %1064 = vmatprep.subr.bf16.mxu0 0
      %1065 = vmatpush2.bf16.msra.mxu0 0
      %1066 = vmatprep.mubr.bf16.mxu0 0
      %1067 = vmatmul.mubr.bf16.gmra.mxu0 %v966
      %v1068 = vpop.f32.mrf.mxu0
      %v1069 = vadd.f32 0.0, %v1068
      %v1070 = vpop.f32.mrf.mxu0
      %v1071 = vpop.f32.mrf.mxu0
      %v1072 = vadd.f32 0.0, %v1071
      %v1073 = vpop.f32.mrf.mxu0
      %1074 = vmatprep.mubr.bf16.mxu0 0
      %1075 = vmatmul.mubr.bf16.gmra.mxu0 %v967
      %v1076 = vpop.f32.mrf.mxu0
      %v1077 = vadd.f32 0.0, %v1076
      %v1078 = vpop.f32.mrf.mxu0
      %v1079 = vpop.f32.mrf.mxu0
      %v1080 = vadd.f32 0.0, %v1079
      %v1081 = vpop.f32.mrf.mxu0
      %1082 = vmatprep.mubr.bf16.mxu0 0
      %1083 = vmatmul.mubr.bf16.gmra.mxu0 %v968
      %v1084 = vpop.f32.mrf.mxu0
      %v1085 = vadd.f32 0.0, %v1084
      %v1086 = vpop.f32.mrf.mxu0
      %v1087 = vpop.f32.mrf.mxu0
      %v1088 = vadd.f32 0.0, %v1087
      %v1089 = vpop.f32.mrf.mxu0
      %1090 = vmatprep.mubr.bf16.mxu0 0
      %1091 = vmatmul.mubr.bf16.gmra.mxu0 %v969
      %v1092 = vpop.f32.mrf.mxu0
      %v1093 = vadd.f32 0.0, %v1092
      %v1094 = vpop.f32.mrf.mxu0
      %v1095 = vpop.f32.mrf.mxu0
      %v1096 = vadd.f32 0.0, %v1095
      %v1097 = vpop.f32.mrf.mxu0
      %1098 = vdwg.mxu0
      %v1099 = vadd.f32 %v950, %v1069
      %v1100 = vadd.f32 %v951, %v1072
      %v1101 = vadd.f32 %v952, %v1077
      %v1102 = vadd.f32 %v953, %v1080
      %v1103 = vadd.f32 %v954, %v1085
      %v1104 = vadd.f32 %v955, %v1088
      %v1105 = vadd.f32 %v956, %v1093
      %v1106 = vadd.f32 %v957, %v1096
      %v1107 = vld [vmem:[%s301 + $0x2] sm:$0xff]
      %v1108 = vld [vmem:[%s301 + $0x12] sm:$0xff]
      %v1109 = vld [vmem:[%s301 + $0x22] sm:$0xff]
      %v1110 = vld [vmem:[%s301 + $0x32] sm:$0xff]
      %v1111 = vld [vmem:[%s301 + $0x42] sm:$0xff]
      %v1112 = vld [vmem:[%s301 + $0x52] sm:$0xff]
      %v1113 = vld [vmem:[%s301 + $0x62] sm:$0xff]
      %v1114 = vld [vmem:[%s301 + $0x72] sm:$0xff]
      %v1115 = vpack.c.bf16 %v1108, %v1107
      %v1116 = vpack.c.bf16 %v1110, %v1109
      %v1117 = vpack.c.bf16 %v1112, %v1111
      %v1118 = vpack.c.bf16 %v1114, %v1113
      %v1119 = vld [vmem:[%s276 + $0x140] sm:$0xf]
      %v1120 = vld [vmem:[%s276 + $0x144] sm:$0xf]
      %v1121 = vld [vmem:[%s276 + $0x148] sm:$0xf]
      %v1122 = vld [vmem:[%s276 + $0x14c] sm:$0xf]
      %v1123 = vld [vmem:[%s276 + $0x150] sm:$0xf]
      %v1124 = vld [vmem:[%s276 + $0x154] sm:$0xf]
      %v1125 = vld [vmem:[%s276 + $0x158] sm:$0xf]
      %v1126 = vld [vmem:[%s276 + $0x15c] sm:$0xf]
      %v1127 = vld [vmem:[%s276 + $0x160] sm:$0xf]
      %v1128 = vld [vmem:[%s276 + $0x164] sm:$0xf]
      %v1129 = vld [vmem:[%s276 + $0x168] sm:$0xf]
      %v1130 = vld [vmem:[%s276 + $0x16c] sm:$0xf]
      %v1131 = vld [vmem:[%s276 + $0x170] sm:$0xf]
      %v1132 = vld [vmem:[%s276 + $0x174] sm:$0xf]
      %v1133 = vld [vmem:[%s276 + $0x178] sm:$0xf]
      %v1134 = vld [vmem:[%s276 + $0x17c] sm:$0xf]
      %v1151 = vunpack.c.l.b16 %v1119
      %v1152 = vunpack.c.l.b16 %v1120
      %v1153 = vunpack.c.l.b16 %v1121
      %v1154 = vunpack.c.l.b16 %v1122
      %v1155 = vunpack.c.l.b16 %v1123
      %v1156 = vunpack.c.l.b16 %v1124
      %v1157 = vunpack.c.l.b16 %v1125
      %v1158 = vunpack.c.l.b16 %v1126
      %v1159 = vunpack.c.l.b16 %v1127
      %v1160 = vunpack.c.l.b16 %v1128
      %v1161 = vunpack.c.l.b16 %v1129
      %v1162 = vunpack.c.l.b16 %v1130
      %v1163 = vunpack.c.l.b16 %v1131
      %v1164 = vunpack.c.l.b16 %v1132
      %v1165 = vunpack.c.l.b16 %v1133
      %v1166 = vunpack.c.l.b16 %v1134
      %v1167 = vpack.c.b16 %v1152, %v1151
      %v1168 = vpack.c.b16 %v1154, %v1153
      %v1169 = vpack.c.b16 %v1156, %v1155
      %v1170 = vpack.c.b16 %v1158, %v1157
      %v1171 = vpack.c.b16 %v1160, %v1159
      %v1172 = vpack.c.b16 %v1162, %v1161
      %v1173 = vpack.c.b16 %v1164, %v1163
      %v1174 = vpack.c.b16 %v1166, %v1165
      %1183 = vmatprep.subr.bf16.mxu0 0
      %1184 = vmatpush1.bf16.msra.mxu0 %v1174
      %1185 = vmatprep.subr.bf16.mxu0 0
      %1186 = vmatpush1.bf16.msra.mxu0 %v1173
      %1187 = vmatprep.subr.bf16.mxu0 0
      %1188 = vmatpush1.bf16.msra.mxu0 %v1172
      %1189 = vmatprep.subr.bf16.mxu0 0
      %1190 = vmatpush1.bf16.msra.mxu0 %v1171
      %1191 = vmatprep.subr.bf16.mxu0 0
      %1192 = vmatpush1.bf16.msra.mxu0 %v1170
      %1193 = vmatprep.subr.bf16.mxu0 0
      %1194 = vmatpush1.bf16.msra.mxu0 %v1169
      %1195 = vmatprep.subr.bf16.mxu0 0
      %1196 = vmatpush1.bf16.msra.mxu0 %v1168
      %1197 = vmatprep.subr.bf16.mxu0 0
      %1198 = vmatpush1.bf16.msra.mxu0 %v1167
      %1199 = vmatprep.subr.bf16.mxu0 0
      %1200 = vmatpush2.bf16.msra.mxu0 0
      %1201 = vmatprep.subr.bf16.mxu0 0
      %1202 = vmatpush2.bf16.msra.mxu0 0
      %1203 = vmatprep.subr.bf16.mxu0 0
      %1204 = vmatpush2.bf16.msra.mxu0 0
      %1205 = vmatprep.subr.bf16.mxu0 0
      %1206 = vmatpush2.bf16.msra.mxu0 0
      %1207 = vmatprep.subr.bf16.mxu0 0
      %1208 = vmatpush2.bf16.msra.mxu0 0
      %1209 = vmatprep.subr.bf16.mxu0 0
      %1210 = vmatpush2.bf16.msra.mxu0 0
      %1211 = vmatprep.subr.bf16.mxu0 0
      %1212 = vmatpush2.bf16.msra.mxu0 0
      %1213 = vmatprep.subr.bf16.mxu0 0
      %1214 = vmatpush2.bf16.msra.mxu0 0
      %1215 = vmatprep.mubr.bf16.mxu0 0
      %1216 = vmatmul.mubr.bf16.gmra.mxu0 %v1115
      %v1217 = vpop.f32.mrf.mxu0
      %v1218 = vadd.f32 0.0, %v1217
      %v1219 = vpop.f32.mrf.mxu0
      %v1220 = vpop.f32.mrf.mxu0
      %v1221 = vadd.f32 0.0, %v1220
      %v1222 = vpop.f32.mrf.mxu0
      %1223 = vmatprep.mubr.bf16.mxu0 0
      %1224 = vmatmul.mubr.bf16.gmra.mxu0 %v1116
      %v1225 = vpop.f32.mrf.mxu0
      %v1226 = vadd.f32 0.0, %v1225
      %v1227 = vpop.f32.mrf.mxu0
      %v1228 = vpop.f32.mrf.mxu0
      %v1229 = vadd.f32 0.0, %v1228
      %v1230 = vpop.f32.mrf.mxu0
      %1231 = vmatprep.mubr.bf16.mxu0 0
      %1232 = vmatmul.mubr.bf16.gmra.mxu0 %v1117
      %v1233 = vpop.f32.mrf.mxu0
      %v1234 = vadd.f32 0.0, %v1233
      %v1235 = vpop.f32.mrf.mxu0
      %v1236 = vpop.f32.mrf.mxu0
      %v1237 = vadd.f32 0.0, %v1236
      %v1238 = vpop.f32.mrf.mxu0
      %1239 = vmatprep.mubr.bf16.mxu0 0
      %1240 = vmatmul.mubr.bf16.gmra.mxu0 %v1118
      %v1241 = vpop.f32.mrf.mxu0
      %v1242 = vadd.f32 0.0, %v1241
      %v1243 = vpop.f32.mrf.mxu0
      %v1244 = vpop.f32.mrf.mxu0
      %v1245 = vadd.f32 0.0, %v1244
      %v1246 = vpop.f32.mrf.mxu0
      %1247 = vdwg.mxu0
      %v1248 = vadd.f32 %v1099, %v1218
      %v1249 = vadd.f32 %v1100, %v1221
      %v1250 = vadd.f32 %v1101, %v1226
      %v1251 = vadd.f32 %v1102, %v1229
      %v1252 = vadd.f32 %v1103, %v1234
      %v1253 = vadd.f32 %v1104, %v1237
      %v1254 = vadd.f32 %v1105, %v1242
      %v1255 = vadd.f32 %v1106, %v1245
      %s1256 = scalar_lea.vmem [#allocation2], 32
      %v1257 = vld [vmem:[%s1256] sm:$0xff]
      %v1258 = vld [vmem:[%s1256 + $0x10] sm:$0xff]
      %v1259 = vld [vmem:[%s1256 + $0x20] sm:$0xff]
      %v1260 = vld [vmem:[%s1256 + $0x30] sm:$0xff]
      %v1261 = vld [vmem:[%s1256 + $0x40] sm:$0xff]
      %v1262 = vld [vmem:[%s1256 + $0x50] sm:$0xff]
      %v1263 = vld [vmem:[%s1256 + $0x60] sm:$0xff]
      %v1264 = vld [vmem:[%s1256 + $0x70] sm:$0xff]
      %v1265 = vpack.c.bf16 %v1258, %v1257
      %v1266 = vpack.c.bf16 %v1260, %v1259
      %v1267 = vpack.c.bf16 %v1262, %v1261
      %v1268 = vpack.c.bf16 %v1264, %v1263
      %v1269 = vld [vmem:[%s276 + $0x180] sm:$0xf]
      %v1270 = vld [vmem:[%s276 + $0x184] sm:$0xf]
      %v1271 = vld [vmem:[%s276 + $0x188] sm:$0xf]
      %v1272 = vld [vmem:[%s276 + $0x18c] sm:$0xf]
      %v1273 = vld [vmem:[%s276 + $0x190] sm:$0xf]
      %v1274 = vld [vmem:[%s276 + $0x194] sm:$0xf]
      %v1275 = vld [vmem:[%s276 + $0x198] sm:$0xf]
      %v1276 = vld [vmem:[%s276 + $0x19c] sm:$0xf]
      %v1277 = vld [vmem:[%s276 + $0x1a0] sm:$0xf]
      %v1278 = vld [vmem:[%s276 + $0x1a4] sm:$0xf]
      %v1279 = vld [vmem:[%s276 + $0x1a8] sm:$0xf]
      %v1280 = vld [vmem:[%s276 + $0x1ac] sm:$0xf]
      %v1281 = vld [vmem:[%s276 + $0x1b0] sm:$0xf]
      %v1282 = vld [vmem:[%s276 + $0x1b4] sm:$0xf]
      %v1283 = vld [vmem:[%s276 + $0x1b8] sm:$0xf]
      %v1284 = vld [vmem:[%s276 + $0x1bc] sm:$0xf]
      %v1301 = vunpack.c.l.b16 %v1269
      %v1302 = vunpack.c.l.b16 %v1270
      %v1303 = vunpack.c.l.b16 %v1271
      %v1304 = vunpack.c.l.b16 %v1272
      %v1305 = vunpack.c.l.b16 %v1273
      %v1306 = vunpack.c.l.b16 %v1274
      %v1307 = vunpack.c.l.b16 %v1275
      %v1308 = vunpack.c.l.b16 %v1276
      %v1309 = vunpack.c.l.b16 %v1277
      %v1310 = vunpack.c.l.b16 %v1278
      %v1311 = vunpack.c.l.b16 %v1279
      %v1312 = vunpack.c.l.b16 %v1280
      %v1313 = vunpack.c.l.b16 %v1281
      %v1314 = vunpack.c.l.b16 %v1282
      %v1315 = vunpack.c.l.b16 %v1283
      %v1316 = vunpack.c.l.b16 %v1284
      %v1317 = vpack.c.b16 %v1302, %v1301
      %v1318 = vpack.c.b16 %v1304, %v1303
      %v1319 = vpack.c.b16 %v1306, %v1305
      %v1320 = vpack.c.b16 %v1308, %v1307
      %v1321 = vpack.c.b16 %v1310, %v1309
      %v1322 = vpack.c.b16 %v1312, %v1311
      %v1323 = vpack.c.b16 %v1314, %v1313
      %v1324 = vpack.c.b16 %v1316, %v1315
      %1333 = vmatprep.subr.bf16.mxu0 0
      %1334 = vmatpush1.bf16.msra.mxu0 %v1324
      %1335 = vmatprep.subr.bf16.mxu0 0
      %1336 = vmatpush1.bf16.msra.mxu0 %v1323
      %1337 = vmatprep.subr.bf16.mxu0 0
      %1338 = vmatpush1.bf16.msra.mxu0 %v1322
      %1339 = vmatprep.subr.bf16.mxu0 0
      %1340 = vmatpush1.bf16.msra.mxu0 %v1321
      %1341 = vmatprep.subr.bf16.mxu0 0
      %1342 = vmatpush1.bf16.msra.mxu0 %v1320
      %1343 = vmatprep.subr.bf16.mxu0 0
      %1344 = vmatpush1.bf16.msra.mxu0 %v1319
      %1345 = vmatprep.subr.bf16.mxu0 0
      %1346 = vmatpush1.bf16.msra.mxu0 %v1318
      %1347 = vmatprep.subr.bf16.mxu0 0
      %1348 = vmatpush1.bf16.msra.mxu0 %v1317
      %1349 = vmatprep.subr.bf16.mxu0 0
      %1350 = vmatpush2.bf16.msra.mxu0 0
      %1351 = vmatprep.subr.bf16.mxu0 0
      %1352 = vmatpush2.bf16.msra.mxu0 0
      %1353 = vmatprep.subr.bf16.mxu0 0
      %1354 = vmatpush2.bf16.msra.mxu0 0
      %1355 = vmatprep.subr.bf16.mxu0 0
      %1356 = vmatpush2.bf16.msra.mxu0 0
      %1357 = vmatprep.subr.bf16.mxu0 0
      %1358 = vmatpush2.bf16.msra.mxu0 0
      %1359 = vmatprep.subr.bf16.mxu0 0
      %1360 = vmatpush2.bf16.msra.mxu0 0
      %1361 = vmatprep.subr.bf16.mxu0 0
      %1362 = vmatpush2.bf16.msra.mxu0 0
      %1363 = vmatprep.subr.bf16.mxu0 0
      %1364 = vmatpush2.bf16.msra.mxu0 0
      %1365 = vmatprep.mubr.bf16.mxu0 0
      %1366 = vmatmul.mubr.bf16.gmra.mxu0 %v1265
      %v1367 = vpop.f32.mrf.mxu0
      %v1368 = vadd.f32 0.0, %v1367
      %v1369 = vpop.f32.mrf.mxu0
      %v1370 = vpop.f32.mrf.mxu0
      %v1371 = vadd.f32 0.0, %v1370
      %v1372 = vpop.f32.mrf.mxu0
      %1373 = vmatprep.mubr.bf16.mxu0 0
      %1374 = vmatmul.mubr.bf16.gmra.mxu0 %v1266
      %v1375 = vpop.f32.mrf.mxu0
      %v1376 = vadd.f32 0.0, %v1375
      %v1377 = vpop.f32.mrf.mxu0
      %v1378 = vpop.f32.mrf.mxu0
      %v1379 = vadd.f32 0.0, %v1378
      %v1380 = vpop.f32.mrf.mxu0
      %1381 = vmatprep.mubr.bf16.mxu0 0
      %1382 = vmatmul.mubr.bf16.gmra.mxu0 %v1267
      %v1383 = vpop.f32.mrf.mxu0
      %v1384 = vadd.f32 0.0, %v1383
      %v1385 = vpop.f32.mrf.mxu0
      %v1386 = vpop.f32.mrf.mxu0
      %v1387 = vadd.f32 0.0, %v1386
      %v1388 = vpop.f32.mrf.mxu0
      %1389 = vmatprep.mubr.bf16.mxu0 0
      %1390 = vmatmul.mubr.bf16.gmra.mxu0 %v1268
      %v1391 = vpop.f32.mrf.mxu0
      %v1392 = vadd.f32 0.0, %v1391
      %v1393 = vpop.f32.mrf.mxu0
      %v1394 = vpop.f32.mrf.mxu0
      %v1395 = vadd.f32 0.0, %v1394
      %v1396 = vpop.f32.mrf.mxu0
      %1397 = vdwg.mxu0
      %v1398 = vadd.f32 %v1248, %v1368
      %v1399 = vadd.f32 %v1249, %v1371
      %v1400 = vadd.f32 %v1250, %v1376
      %v1401 = vadd.f32 %v1251, %v1379
      %v1402 = vadd.f32 %v1252, %v1384
      %v1403 = vadd.f32 %v1253, %v1387
      %v1404 = vadd.f32 %v1254, %v1392
      %v1405 = vadd.f32 %v1255, %v1395
      %v1406 = vld [vmem:[%s1256 + $0x1] sm:$0xff]
      %v1407 = vld [vmem:[%s1256 + $0x11] sm:$0xff]
      %v1408 = vld [vmem:[%s1256 + $0x21] sm:$0xff]
      %v1409 = vld [vmem:[%s1256 + $0x31] sm:$0xff]
      %v1410 = vld [vmem:[%s1256 + $0x41] sm:$0xff]
      %v1411 = vld [vmem:[%s1256 + $0x51] sm:$0xff]
      %v1412 = vld [vmem:[%s1256 + $0x61] sm:$0xff]
      %v1413 = vld [vmem:[%s1256 + $0x71] sm:$0xff]
      %v1414 = vpack.c.bf16 %v1407, %v1406
      %v1415 = vpack.c.bf16 %v1409, %v1408
      %v1416 = vpack.c.bf16 %v1411, %v1410
      %v1417 = vpack.c.bf16 %v1413, %v1412
      %v1418 = vld [vmem:[%s276 + $0x1c0] sm:$0xf]
      %v1419 = vld [vmem:[%s276 + $0x1c4] sm:$0xf]
      %v1420 = vld [vmem:[%s276 + $0x1c8] sm:$0xf]
      %v1421 = vld [vmem:[%s276 + $0x1cc] sm:$0xf]
      %v1422 = vld [vmem:[%s276 + $0x1d0] sm:$0xf]
      %v1423 = vld [vmem:[%s276 + $0x1d4] sm:$0xf]
      %v1424 = vld [vmem:[%s276 + $0x1d8] sm:$0xf]
      %v1425 = vld [vmem:[%s276 + $0x1dc] sm:$0xf]
      %v1426 = vld [vmem:[%s276 + $0x1e0] sm:$0xf]
      %v1427 = vld [vmem:[%s276 + $0x1e4] sm:$0xf]
      %v1428 = vld [vmem:[%s276 + $0x1e8] sm:$0xf]
      %v1429 = vld [vmem:[%s276 + $0x1ec] sm:$0xf]
      %v1430 = vld [vmem:[%s276 + $0x1f0] sm:$0xf]
      %v1431 = vld [vmem:[%s276 + $0x1f4] sm:$0xf]
      %v1432 = vld [vmem:[%s276 + $0x1f8] sm:$0xf]
      %v1433 = vld [vmem:[%s276 + $0x1fc] sm:$0xf]
      %v1450 = vunpack.c.l.b16 %v1418
      %v1451 = vunpack.c.l.b16 %v1419
      %v1452 = vunpack.c.l.b16 %v1420
      %v1453 = vunpack.c.l.b16 %v1421
      %v1454 = vunpack.c.l.b16 %v1422
      %v1455 = vunpack.c.l.b16 %v1423
      %v1456 = vunpack.c.l.b16 %v1424
      %v1457 = vunpack.c.l.b16 %v1425
      %v1458 = vunpack.c.l.b16 %v1426
      %v1459 = vunpack.c.l.b16 %v1427
      %v1460 = vunpack.c.l.b16 %v1428
      %v1461 = vunpack.c.l.b16 %v1429
      %v1462 = vunpack.c.l.b16 %v1430
      %v1463 = vunpack.c.l.b16 %v1431
      %v1464 = vunpack.c.l.b16 %v1432
      %v1465 = vunpack.c.l.b16 %v1433
      %v1466 = vpack.c.b16 %v1451, %v1450
      %v1467 = vpack.c.b16 %v1453, %v1452
      %v1468 = vpack.c.b16 %v1455, %v1454
      %v1469 = vpack.c.b16 %v1457, %v1456
      %v1470 = vpack.c.b16 %v1459, %v1458
      %v1471 = vpack.c.b16 %v1461, %v1460
      %v1472 = vpack.c.b16 %v1463, %v1462
      %v1473 = vpack.c.b16 %v1465, %v1464
      %1482 = vmatprep.subr.bf16.mxu0 0
      %1483 = vmatpush1.bf16.msra.mxu0 %v1473
      %1484 = vmatprep.subr.bf16.mxu0 0
      %1485 = vmatpush1.bf16.msra.mxu0 %v1472
      %1486 = vmatprep.subr.bf16.mxu0 0
      %1487 = vmatpush1.bf16.msra.mxu0 %v1471
      %1488 = vmatprep.subr.bf16.mxu0 0
      %1489 = vmatpush1.bf16.msra.mxu0 %v1470
      %1490 = vmatprep.subr.bf16.mxu0 0
      %1491 = vmatpush1.bf16.msra.mxu0 %v1469
      %1492 = vmatprep.subr.bf16.mxu0 0
      %1493 = vmatpush1.bf16.msra.mxu0 %v1468
      %1494 = vmatprep.subr.bf16.mxu0 0
      %1495 = vmatpush1.bf16.msra.mxu0 %v1467
      %1496 = vmatprep.subr.bf16.mxu0 0
      %1497 = vmatpush1.bf16.msra.mxu0 %v1466
      %1498 = vmatprep.subr.bf16.mxu0 0
      %1499 = vmatpush2.bf16.msra.mxu0 0
      %1500 = vmatprep.subr.bf16.mxu0 0
      %1501 = vmatpush2.bf16.msra.mxu0 0
      %1502 = vmatprep.subr.bf16.mxu0 0
      %1503 = vmatpush2.bf16.msra.mxu0 0
      %1504 = vmatprep.subr.bf16.mxu0 0
      %1505 = vmatpush2.bf16.msra.mxu0 0
      %1506 = vmatprep.subr.bf16.mxu0 0
      %1507 = vmatpush2.bf16.msra.mxu0 0
      %1508 = vmatprep.subr.bf16.mxu0 0
      %1509 = vmatpush2.bf16.msra.mxu0 0
      %1510 = vmatprep.subr.bf16.mxu0 0
      %1511 = vmatpush2.bf16.msra.mxu0 0
      %1512 = vmatprep.subr.bf16.mxu0 0
      %1513 = vmatpush2.bf16.msra.mxu0 0
      %1514 = vmatprep.mubr.bf16.mxu0 0
      %1515 = vmatmul.mubr.bf16.gmra.mxu0 %v1414
      %v1516 = vpop.f32.mrf.mxu0
      %v1517 = vadd.f32 0.0, %v1516
      %v1518 = vpop.f32.mrf.mxu0
      %v1519 = vpop.f32.mrf.mxu0
      %v1520 = vadd.f32 0.0, %v1519
      %v1521 = vpop.f32.mrf.mxu0
      %1522 = vmatprep.mubr.bf16.mxu0 0
      %1523 = vmatmul.mubr.bf16.gmra.mxu0 %v1415
      %v1524 = vpop.f32.mrf.mxu0
      %v1525 = vadd.f32 0.0, %v1524
      %v1526 = vpop.f32.mrf.mxu0
      %v1527 = vpop.f32.mrf.mxu0
      %v1528 = vadd.f32 0.0, %v1527
      %v1529 = vpop.f32.mrf.mxu0
      %1530 = vmatprep.mubr.bf16.mxu0 0
      %1531 = vmatmul.mubr.bf16.gmra.mxu0 %v1416
      %v1532 = vpop.f32.mrf.mxu0
      %v1533 = vadd.f32 0.0, %v1532
      %v1534 = vpop.f32.mrf.mxu0
      %v1535 = vpop.f32.mrf.mxu0
      %v1536 = vadd.f32 0.0, %v1535
      %v1537 = vpop.f32.mrf.mxu0
      %1538 = vmatprep.mubr.bf16.mxu0 0
      %1539 = vmatmul.mubr.bf16.gmra.mxu0 %v1417
      %v1540 = vpop.f32.mrf.mxu0
      %v1541 = vadd.f32 0.0, %v1540
      %v1542 = vpop.f32.mrf.mxu0
      %v1543 = vpop.f32.mrf.mxu0
      %v1544 = vadd.f32 0.0, %v1543
      %v1545 = vpop.f32.mrf.mxu0
      %1546 = vdwg.mxu0
      %v1547 = vadd.f32 %v1398, %v1517
      %v1548 = vadd.f32 %v1399, %v1520
      %v1549 = vadd.f32 %v1400, %v1525
      %v1550 = vadd.f32 %v1401, %v1528
      %v1551 = vadd.f32 %v1402, %v1533
      %v1552 = vadd.f32 %v1403, %v1536
      %v1553 = vadd.f32 %v1404, %v1541
      %v1554 = vadd.f32 %v1405, %v1544
      %v1555 = vld [vmem:[%s1256 + $0x2] sm:$0xff]
      %v1556 = vld [vmem:[%s1256 + $0x12] sm:$0xff]
      %v1557 = vld [vmem:[%s1256 + $0x22] sm:$0xff]
      %v1558 = vld [vmem:[%s1256 + $0x32] sm:$0xff]
      %v1559 = vld [vmem:[%s1256 + $0x42] sm:$0xff]
      %v1560 = vld [vmem:[%s1256 + $0x52] sm:$0xff]
      %v1561 = vld [vmem:[%s1256 + $0x62] sm:$0xff]
      %v1562 = vld [vmem:[%s1256 + $0x72] sm:$0xff]
      %v1563 = vpack.c.bf16 %v1556, %v1555
      %v1564 = vpack.c.bf16 %v1558, %v1557
      %v1565 = vpack.c.bf16 %v1560, %v1559
      %v1566 = vpack.c.bf16 %v1562, %v1561
      %v1567 = vld [vmem:[%s276 + $0x200] sm:$0xf]
      %v1568 = vld [vmem:[%s276 + $0x204] sm:$0xf]
      %v1569 = vld [vmem:[%s276 + $0x208] sm:$0xf]
      %v1570 = vld [vmem:[%s276 + $0x20c] sm:$0xf]
      %v1571 = vld [vmem:[%s276 + $0x210] sm:$0xf]
      %v1572 = vld [vmem:[%s276 + $0x214] sm:$0xf]
      %v1573 = vld [vmem:[%s276 + $0x218] sm:$0xf]
      %v1574 = vld [vmem:[%s276 + $0x21c] sm:$0xf]
      %v1575 = vld [vmem:[%s276 + $0x220] sm:$0xf]
      %v1576 = vld [vmem:[%s276 + $0x224] sm:$0xf]
      %v1577 = vld [vmem:[%s276 + $0x228] sm:$0xf]
      %v1578 = vld [vmem:[%s276 + $0x22c] sm:$0xf]
      %v1579 = vld [vmem:[%s276 + $0x230] sm:$0xf]
      %v1580 = vld [vmem:[%s276 + $0x234] sm:$0xf]
      %v1581 = vld [vmem:[%s276 + $0x238] sm:$0xf]
      %v1582 = vld [vmem:[%s276 + $0x23c] sm:$0xf]
      %v1599 = vunpack.c.l.b16 %v1567
      %v1600 = vunpack.c.l.b16 %v1568
      %v1601 = vunpack.c.l.b16 %v1569
      %v1602 = vunpack.c.l.b16 %v1570
      %v1603 = vunpack.c.l.b16 %v1571
      %v1604 = vunpack.c.l.b16 %v1572
      %v1605 = vunpack.c.l.b16 %v1573
      %v1606 = vunpack.c.l.b16 %v1574
      %v1607 = vunpack.c.l.b16 %v1575
      %v1608 = vunpack.c.l.b16 %v1576
      %v1609 = vunpack.c.l.b16 %v1577
      %v1610 = vunpack.c.l.b16 %v1578
      %v1611 = vunpack.c.l.b16 %v1579
      %v1612 = vunpack.c.l.b16 %v1580
      %v1613 = vunpack.c.l.b16 %v1581
      %v1614 = vunpack.c.l.b16 %v1582
      %v1615 = vpack.c.b16 %v1600, %v1599
      %v1616 = vpack.c.b16 %v1602, %v1601
      %v1617 = vpack.c.b16 %v1604, %v1603
      %v1618 = vpack.c.b16 %v1606, %v1605
      %v1619 = vpack.c.b16 %v1608, %v1607
      %v1620 = vpack.c.b16 %v1610, %v1609
      %v1621 = vpack.c.b16 %v1612, %v1611
      %v1622 = vpack.c.b16 %v1614, %v1613
      %1631 = vmatprep.subr.bf16.mxu0 0
      %1632 = vmatpush1.bf16.msra.mxu0 %v1622
      %1633 = vmatprep.subr.bf16.mxu0 0
      %1634 = vmatpush1.bf16.msra.mxu0 %v1621
      %1635 = vmatprep.subr.bf16.mxu0 0
      %1636 = vmatpush1.bf16.msra.mxu0 %v1620
      %1637 = vmatprep.subr.bf16.mxu0 0
      %1638 = vmatpush1.bf16.msra.mxu0 %v1619
      %1639 = vmatprep.subr.bf16.mxu0 0
      %1640 = vmatpush1.bf16.msra.mxu0 %v1618
      %1641 = vmatprep.subr.bf16.mxu0 0
      %1642 = vmatpush1.bf16.msra.mxu0 %v1617
      %1643 = vmatprep.subr.bf16.mxu0 0
      %1644 = vmatpush1.bf16.msra.mxu0 %v1616
      %1645 = vmatprep.subr.bf16.mxu0 0
      %1646 = vmatpush1.bf16.msra.mxu0 %v1615
      %1647 = vmatprep.subr.bf16.mxu0 0
      %1648 = vmatpush2.bf16.msra.mxu0 0
      %1649 = vmatprep.subr.bf16.mxu0 0
      %1650 = vmatpush2.bf16.msra.mxu0 0
      %1651 = vmatprep.subr.bf16.mxu0 0
      %1652 = vmatpush2.bf16.msra.mxu0 0
      %1653 = vmatprep.subr.bf16.mxu0 0
      %1654 = vmatpush2.bf16.msra.mxu0 0
      %1655 = vmatprep.subr.bf16.mxu0 0
      %1656 = vmatpush2.bf16.msra.mxu0 0
      %1657 = vmatprep.subr.bf16.mxu0 0
      %1658 = vmatpush2.bf16.msra.mxu0 0
      %1659 = vmatprep.subr.bf16.mxu0 0
      %1660 = vmatpush2.bf16.msra.mxu0 0
      %1661 = vmatprep.subr.bf16.mxu0 0
      %1662 = vmatpush2.bf16.msra.mxu0 0
      %1663 = vmatprep.mubr.bf16.mxu0 0
      %1664 = vmatmul.mubr.bf16.gmra.mxu0 %v1563
      %v1665 = vpop.f32.mrf.mxu0
      %v1666 = vadd.f32 0.0, %v1665
      %v1667 = vpop.f32.mrf.mxu0
      %v1668 = vpop.f32.mrf.mxu0
      %v1669 = vadd.f32 0.0, %v1668
      %v1670 = vpop.f32.mrf.mxu0
      %1671 = vmatprep.mubr.bf16.mxu0 0
      %1672 = vmatmul.mubr.bf16.gmra.mxu0 %v1564
      %v1673 = vpop.f32.mrf.mxu0
      %v1674 = vadd.f32 0.0, %v1673
      %v1675 = vpop.f32.mrf.mxu0
      %v1676 = vpop.f32.mrf.mxu0
      %v1677 = vadd.f32 0.0, %v1676
      %v1678 = vpop.f32.mrf.mxu0
      %1679 = vmatprep.mubr.bf16.mxu0 0
      %1680 = vmatmul.mubr.bf16.gmra.mxu0 %v1565
      %v1681 = vpop.f32.mrf.mxu0
      %v1682 = vadd.f32 0.0, %v1681
      %v1683 = vpop.f32.mrf.mxu0
      %v1684 = vpop.f32.mrf.mxu0
      %v1685 = vadd.f32 0.0, %v1684
      %v1686 = vpop.f32.mrf.mxu0
      %1687 = vmatprep.mubr.bf16.mxu0 0
      %1688 = vmatmul.mubr.bf16.gmra.mxu0 %v1566
      %v1689 = vpop.f32.mrf.mxu0
      %v1690 = vadd.f32 0.0, %v1689
      %v1691 = vpop.f32.mrf.mxu0
      %v1692 = vpop.f32.mrf.mxu0
      %v1693 = vadd.f32 0.0, %v1692
      %v1694 = vpop.f32.mrf.mxu0
      %1695 = vdwg.mxu0
      %v1696 = vadd.f32 %v1547, %v1666
      %v1697 = vadd.f32 %v1548, %v1669
      %v1698 = vadd.f32 %v1549, %v1674
      %v1699 = vadd.f32 %v1550, %v1677
      %v1700 = vadd.f32 %v1551, %v1682
      %v1701 = vadd.f32 %v1552, %v1685
      %v1702 = vadd.f32 %v1553, %v1690
      %v1703 = vadd.f32 %v1554, %v1693
      %v1704 = vld [vmem:[%s284] sm:$0xff]
      %v1705 = vld [vmem:[%s284 + $0x8] sm:$0xff]
      %v1706 = vld [vmem:[%s284 + $0x10] sm:$0xff]
      %v1707 = vld [vmem:[%s284 + $0x18] sm:$0xff]
      %v1708 = vld [vmem:[%s284 + $0x20] sm:$0xff]
      %v1709 = vld [vmem:[%s284 + $0x28] sm:$0xff]
      %v1710 = vld [vmem:[%s284 + $0x30] sm:$0xff]
      %v1711 = vld [vmem:[%s284 + $0x38] sm:$0xff]
      %v1712 = vadd.f32 %v1696, %v1704
      %v1713 = vadd.f32 %v1697, %v1705
      %v1714 = vadd.f32 %v1698, %v1706
      %v1715 = vadd.f32 %v1699, %v1707
      %v1716 = vadd.f32 %v1700, %v1708
      %v1717 = vadd.f32 %v1701, %v1709
      %v1718 = vadd.f32 %v1702, %v1710
      %v1719 = vadd.f32 %v1703, %v1711
      %1720 = vst [vmem:[%s292] sm:$0xff] %v1712
      %1721 = vst [vmem:[%s292 + $0x8] sm:$0xff] %v1713
      %1722 = vst [vmem:[%s292 + $0x10] sm:$0xff] %v1714
      %1723 = vst [vmem:[%s292 + $0x18] sm:$0xff] %v1715
      %1724 = vst [vmem:[%s292 + $0x20] sm:$0xff] %v1716
      %1725 = vst [vmem:[%s292 + $0x28] sm:$0xff] %v1717
      %1726 = vst [vmem:[%s292 + $0x30] sm:$0xff] %v1718
      %1727 = vst [vmem:[%s292 + $0x38] sm:$0xff] %v1719
      %p1728 = scmp.lt.s32.totalorder %s21, 1
      %s1729 = scalar_select %p1728, %s21, 1
      %p1730 = scmp.lt.s32.totalorder %s20, 0
      %s1731 = scalar_select %p1730, %s20, 0
      %s1732 = smul.addr %s1729, 8
      %s1733 = sadd.s32 %s1731, %s1732
      %s1734 = smul.addr %s1733, 8
      %s1735 = scalar_lea.vmem %s5, %s1734
      // Predicated region
      $region41: #{basic_block_forward.5} parent=39 // pred_check
        %p1736 = pneg %p170
      $region42: #{basic_block_forward.5} parent=39 // pred_check_branch
        %1738 = sbr.rel (%p1736) target = $region44
      $region43: #{basic_block_forward.5} parent=39 // pred_region
        _
      $region44: #{basic_block_forward.5} parent=39 // pred_fallthru
        _
    $region40: #{basic_block_forward.5} parent=5 // pred_fallthru
      _
    %p1739 = scmp.le.s32.totalorder 2, %s11
    // Predicated region
    $region45: #{basic_block_forward.5} parent=5 // pred_check
      %p1740 = pneg %p1739
    $region46: #{basic_block_forward.5} parent=5 // pred_check_branch
      %1742 = sbr.rel (%p1740) target = $region48
    $region47: #{basic_block_forward.5} parent=5 // pred_region
      %s1743 = ssub.s32 %s11, 2
      // Predicated region
      $region49: #{basic_block_forward.5} parent=47 // pred_check
        %p1744 = pneg %p176
      $region50: #{basic_block_forward.5} parent=47 // pred_check_branch
        %1746 = sbr.rel (%p1744) target = $region52
      $region51: #{basic_block_forward.5} parent=47 // pred_region
        %p1747 = scmp.lt.s32.totalorder %s23, 1
        %s1748 = scalar_select %p1747, %s23, 1
        %p1749 = scmp.lt.s32.totalorder %s22, 0
        %s1750 = scalar_select %p1749, %s22, 0
        %s1751 = smul.addr %s1748, 8
        %s1752 = sadd.s32 %s1750, %s1751
        %s1753 = smul.addr %s1752, 8
        %s1754 = scalar_lea.vmem %s5, %s1753
      $region52: #{basic_block_forward.5} parent=47 // pred_fallthru
        _
    $region48: #{basic_block_forward.5} parent=5 // pred_fallthru
      _
  $region6: #{basic_block_forward.5} parent=0 // loop_footer
    %s15 = sadd.s32 1, %s11
  $region7: #{basic_block_forward.5} parent=0 // loop_footer_branch
    %10 = sbr.rel target = $region3
  $region8: #{basic_block_forward.5} parent=0 // loop_exit
    _

// kernel: basic_block_forward.4
$region0: #{basic_block_forward.4}
  #allocation0 [shape = 'u32[]', space=smem, size = 0x4, offset = 0x4, fixed_abs, tag = 'smem constant byte address 0x4 - core index']
  #allocation1 [shape = 'u32[144,128]{1,0:T(1,128)}', space=vmem, size = 0x12000, scoped, tag = 'internal scratch']
  #allocation2 [shape = 'f32[4,10,10,128]{3,2,1,0:T(8,128)}', space=vmem, size = 0x50000, scoped, tag = 'scratch operand']
  %s0 = inlined_call_operand.vmem [shape: f32[2,4,8,8,128], index: 0, kind: input, shape index: {}]
  %s1 = inlined_call_operand.vmem [shape: f32[1,128], index: 1, kind: input, shape index: {}]
  %s2 = inlined_call_operand.vmem [shape: f32[1,128], index: 2, kind: input, shape index: {}]
  %s3 = inlined_call_operand.vmem [shape: bf16[1152,128], index: 3, kind: input, shape index: {}]
  %s4 = inlined_call_operand.vmem [shape: bf16[128,128], index: 4, kind: input, shape index: {}]
  %s5 = inlined_call_operand.vmem [shape: bf16[2,8,8,128], index: 5, kind: output, shape index: {0}]
  %s6 = inlined_call_operand.vmem [shape: f32[2,8,8,128], index: 6, kind: output, shape index: {1}]
  %s7 = inlined_call_operand.vmem [shape: f32[1,128], index: 7, kind: output, shape index: {2}]
  %s8 = inlined_call_operand.vmem [shape: f32[1,128], index: 8, kind: output, shape index: {3}]
  %9 = xla_tuple %s5, %s6, %s7, %s8
  %s10 = sld [smem:[#allocation0]]
  $region81: #{basic_block_forward.4} parent=0
    _
  %s12 = ssub.s32 1, %s10
  %s13 = scalar_select 0, %s12, %s10
  loop: start=0, step=1, limit=4
  $region2: #{basic_block_forward.4} parent=0 // loop_pre_header
    _
  $region3: #{basic_block_forward.4} parent=0 // loop_header
    %s15 = sphi 0, %s19
    %p16 = scmp.ge.s32.totalorder %s15, 4
    %s22 = sphi 0, %s34
    %s23 = sphi 0, %s30
    %s24 = sphi 0, %s22
    %s25 = sphi 0, %s23
    %s26 = sphi 0, %s24
    %s27 = sphi 0, %s25
    %s37 = sphi 0, %s39
    %s40 = sphi 0, %s37
    %s41 = sphi 0, %s40
    %s57 = sphi 0, %s41
    %s61 = sphi 0, %s61
    %s63 = sphi 0, %s61
    %s64 = sphi 0, %s63
    %s78 = sphi 0, %s64
    %s82 = sphi 0, %s82
    %s84 = sphi 0, %s82
    %s85 = sphi 0, %s84
    %s99 = sphi 0, %s85
    %s105 = sphi 0, %s107
    %s108 = sphi 0, %s105
    %s109 = sphi 0, %s108
    %s125 = sphi 0, %s109
    %s131 = sphi 0, %s133
    %s134 = sphi 0, %s131
    %s135 = sphi 0, %s134
    %s151 = sphi 0, %s135
    %s159 = sphi 0, %s161
    %s162 = sphi 0, %s159
    %s163 = sphi 0, %s162
    %s179 = sphi 0, %s163
    %s187 = sphi 0, %s189
    %s190 = sphi 0, %s187
    %s191 = sphi 0, %s190
    %s207 = sphi 0, %s191
    %s213 = sphi 0, %s215
    %s216 = sphi 0, %s213
    %s217 = sphi 0, %s216
    %s233 = sphi 0, %s217
    %s239 = sphi 0, %s241
    %s242 = sphi 0, %s239
    %s243 = sphi 0, %s242
    %s259 = sphi 0, %s243
  $region4: #{basic_block_forward.4} parent=0 // loop_header_branch
    %18 = sbr.rel (%p16) target = $region8
  $region5: #{basic_block_forward.4} parent=0 // loop_body
    %s20 = ssub.s32 %s15, 1
    %s21 = ssub.s32 %s15, 2
    %s28 = sadd.s32 1, %s23
    %p29 = scmp.ge.s32.totalorder %s28, 2
    %s30 = scalar_select %p29, 0, %s28
    %s31 = sadd.s32 1, %s22
    %s32 = scalar_select %p29, %s31, %s22
    %p33 = scmp.ge.s32.totalorder %s32, 1
    %s34 = scalar_select %p33, 0, %s32
    %s35 = ssub.s32 %s23, %s30
    %p36 = scmp.eq.s32.totalorder %s35, 0
    %s38 = sadd.s32 %s37, 1
    %s39 = scalar_select %p36, %s37, %s38
    %p42 = pneg %p36
    %p43 = scmp.eq.s32.totalorder %s15, 1
    %p44 = por %p42, %p43
    %p45 = scmp.ne.s32.totalorder %s37, %s40
    %p46 = scmp.eq.s32.totalorder %s15, 0
    %p47 = por %p45, %p46
    %p48 = scmp.ne.s32.totalorder %s37, %s40
    %p49 = scmp.eq.s32.totalorder %s20, 1
    %p50 = por %p48, %p49
    %p51 = scmp.ne.s32.totalorder %s40, %s41
    %p52 = scmp.eq.s32.totalorder %s20, 0
    %p53 = por %p51, %p52
    %p54 = scmp.ne.s32.totalorder %s40, %s41
    %p55 = scmp.eq.s32.totalorder %s21, 1
    %p56 = por %p54, %p55
    %p58 = scmp.ne.s32.totalorder %s41, %s57
    %p59 = scmp.eq.s32.totalorder %s21, 0
    %p60 = por %p58, %p59
    %s62 = sadd.s32 %s61, 1
    %p65 = scmp.eq.s32.totalorder %s15, 1
    %p66 = scmp.ne.s32.totalorder %s61, %s63
    %p67 = scmp.eq.s32.totalorder %s15, 0
    %p68 = por %p66, %p67
    %p69 = scmp.ne.s32.totalorder %s61, %s63
    %p70 = scmp.eq.s32.totalorder %s20, 1
    %p71 = por %p69, %p70
    %p72 = scmp.ne.s32.totalorder %s63, %s64
    %p73 = scmp.eq.s32.totalorder %s20, 0
    %p74 = por %p72, %p73
    %p75 = scmp.ne.s32.totalorder %s63, %s64
    %p76 = scmp.eq.s32.totalorder %s21, 1
    %p77 = por %p75, %p76
    %p79 = scmp.ne.s32.totalorder %s64, %s78
    %p80 = scmp.eq.s32.totalorder %s21, 0
    %p81 = por %p79, %p80
    %s83 = sadd.s32 %s82, 1
    %p86 = scmp.eq.s32.totalorder %s15, 1
    %p87 = scmp.ne.s32.totalorder %s82, %s84
    %p88 = scmp.eq.s32.totalorder %s15, 0
    %p89 = por %p87, %p88
    %p90 = scmp.ne.s32.totalorder %s82, %s84
    %p91 = scmp.eq.s32.totalorder %s20, 1
    %p92 = por %p90, %p91
    %p93 = scmp.ne.s32.totalorder %s84, %s85
    %p94 = scmp.eq.s32.totalorder %s20, 0
    %p95 = por %p93, %p94
    %p96 = scmp.ne.s32.totalorder %s84, %s85
    %p97 = scmp.eq.s32.totalorder %s21, 1
    %p98 = por %p96, %p97
    %p100 = scmp.ne.s32.totalorder %s85, %s99
    %p101 = scmp.eq.s32.totalorder %s21, 0
    %p102 = por %p100, %p101
    %s103 = ssub.s32 %s22, %s34
    %p104 = scmp.eq.s32.totalorder %s103, 0
    %s106 = sadd.s32 %s105, 1
    %s107 = scalar_select %p104, %s105, %s106
    %p110 = pneg %p104
    %p111 = scmp.eq.s32.totalorder %s15, 1
    %p112 = por %p110, %p111
    %p113 = scmp.ne.s32.totalorder %s105, %s108
    %p114 = scmp.eq.s32.totalorder %s15, 0
    %p115 = por %p113, %p114
    %p116 = scmp.ne.s32.totalorder %s105, %s108
    %p117 = scmp.eq.s32.totalorder %s20, 1
    %p118 = por %p116, %p117
    %p119 = scmp.ne.s32.totalorder %s108, %s109
    %p120 = scmp.eq.s32.totalorder %s20, 0
    %p121 = por %p119, %p120
    %p122 = scmp.ne.s32.totalorder %s108, %s109
    %p123 = scmp.eq.s32.totalorder %s21, 1
    %p124 = por %p122, %p123
    %p126 = scmp.ne.s32.totalorder %s109, %s125
    %p127 = scmp.eq.s32.totalorder %s21, 0
    %p128 = por %p126, %p127
    %s129 = ssub.s32 %s22, %s34
    %p130 = scmp.eq.s32.totalorder %s129, 0
    %s132 = sadd.s32 %s131, 1
    %s133 = scalar_select %p130, %s131, %s132
    %p136 = pneg %p130
    %p137 = scmp.eq.s32.totalorder %s15, 1
    %p138 = por %p136, %p137
    %p139 = scmp.ne.s32.totalorder %s131, %s134
    %p140 = scmp.eq.s32.totalorder %s15, 0
    %p141 = por %p139, %p140
    %p142 = scmp.ne.s32.totalorder %s131, %s134
    %p143 = scmp.eq.s32.totalorder %s20, 1
    %p144 = por %p142, %p143
    %p145 = scmp.ne.s32.totalorder %s134, %s135
    %p146 = scmp.eq.s32.totalorder %s20, 0
    %p147 = por %p145, %p146
    %p148 = scmp.ne.s32.totalorder %s134, %s135
    %p149 = scmp.eq.s32.totalorder %s21, 1
    %p150 = por %p148, %p149
    %p152 = scmp.ne.s32.totalorder %s135, %s151
    %p153 = scmp.eq.s32.totalorder %s21, 0
    %p154 = por %p152, %p153
    %s155 = ssub.s32 %s23, %s30
    %s156 = ssub.s32 %s22, %s34
    %s157 = sor.u32 %s155, %s156
    %p158 = scmp.eq.s32.totalorder %s157, 0
    %s160 = sadd.s32 %s159, 1
    %s161 = scalar_select %p158, %s159, %s160
    %p164 = pneg %p158
    %p165 = scmp.eq.s32.totalorder %s15, 1
    %p166 = por %p164, %p165
    %p167 = scmp.ne.s32.totalorder %s159, %s162
    %p168 = scmp.eq.s32.totalorder %s15, 0
    %p169 = por %p167, %p168
    %p170 = scmp.ne.s32.totalorder %s159, %s162
    %p171 = scmp.eq.s32.totalorder %s20, 1
    %p172 = por %p170, %p171
    %p173 = scmp.ne.s32.totalorder %s162, %s163
    %p174 = scmp.eq.s32.totalorder %s20, 0
    %p175 = por %p173, %p174
    %p176 = scmp.ne.s32.totalorder %s162, %s163
    %p177 = scmp.eq.s32.totalorder %s21, 1
    %p178 = por %p176, %p177
    %p180 = scmp.ne.s32.totalorder %s163, %s179
    %p181 = scmp.eq.s32.totalorder %s21, 0
    %p182 = por %p180, %p181
    %s183 = ssub.s32 %s23, %s30
    %s184 = ssub.s32 %s22, %s34
    %s185 = sor.u32 %s183, %s184
    %p186 = scmp.eq.s32.totalorder %s185, 0
    %s188 = sadd.s32 %s187, 1
    %s189 = scalar_select %p186, %s187, %s188
    %p192 = pneg %p186
    %p193 = scmp.eq.s32.totalorder %s15, 1
    %p194 = por %p192, %p193
    %p195 = scmp.ne.s32.totalorder %s187, %s190
    %p196 = scmp.eq.s32.totalorder %s15, 0
    %p197 = por %p195, %p196
    %p198 = scmp.ne.s32.totalorder %s187, %s190
    %p199 = scmp.eq.s32.totalorder %s20, 1
    %p200 = por %p198, %p199
    %p201 = scmp.ne.s32.totalorder %s190, %s191
    %p202 = scmp.eq.s32.totalorder %s20, 0
    %p203 = por %p201, %p202
    %p204 = scmp.ne.s32.totalorder %s190, %s191
    %p205 = scmp.eq.s32.totalorder %s21, 1
    %p206 = por %p204, %p205
    %p208 = scmp.ne.s32.totalorder %s191, %s207
    %p209 = scmp.eq.s32.totalorder %s21, 0
    %p210 = por %p208, %p209
    %s211 = ssub.s32 %s22, %s34
    %p212 = scmp.eq.s32.totalorder %s211, 0
    %s214 = sadd.s32 %s213, 1
    %s215 = scalar_select %p212, %s213, %s214
    %p218 = pneg %p212
    %p219 = scmp.eq.s32.totalorder %s15, 1
    %p220 = por %p218, %p219
    %p221 = scmp.ne.s32.totalorder %s213, %s216
    %p222 = scmp.eq.s32.totalorder %s15, 0
    %p223 = por %p221, %p222
    %p224 = scmp.ne.s32.totalorder %s213, %s216
    %p225 = scmp.eq.s32.totalorder %s20, 1
    %p226 = por %p224, %p225
    %p227 = scmp.ne.s32.totalorder %s216, %s217
    %p228 = scmp.eq.s32.totalorder %s20, 0
    %p229 = por %p227, %p228
    %p230 = scmp.ne.s32.totalorder %s216, %s217
    %p231 = scmp.eq.s32.totalorder %s21, 1
    %p232 = por %p230, %p231
    %p234 = scmp.ne.s32.totalorder %s217, %s233
    %p235 = scmp.eq.s32.totalorder %s21, 0
    %p236 = por %p234, %p235
    %s237 = ssub.s32 %s22, %s34
    %p238 = scmp.eq.s32.totalorder %s237, 0
    %s240 = sadd.s32 %s239, 1
    %s241 = scalar_select %p238, %s239, %s240
    %p244 = pneg %p238
    %p245 = scmp.eq.s32.totalorder %s15, 1
    %p246 = por %p244, %p245
    %p247 = scmp.ne.s32.totalorder %s239, %s242
    %p248 = scmp.eq.s32.totalorder %s15, 0
    %p249 = por %p247, %p248
    %p250 = scmp.ne.s32.totalorder %s239, %s242
    %p251 = scmp.eq.s32.totalorder %s20, 1
    %p252 = por %p250, %p251
    %p253 = scmp.ne.s32.totalorder %s242, %s243
    %p254 = scmp.eq.s32.totalorder %s20, 0
    %p255 = por %p253, %p254
    %p256 = scmp.ne.s32.totalorder %s242, %s243
    %p257 = scmp.eq.s32.totalorder %s21, 1
    %p258 = por %p256, %p257
    %p260 = scmp.ne.s32.totalorder %s243, %s259
    %p261 = scmp.eq.s32.totalorder %s21, 0
    %p262 = por %p260, %p261
    %p263 = scmp.le.s32.totalorder 1, %s15
    %p264 = scmp.lt.s32.totalorder %s15, 3
    %p265 = pnand %p263, %p264
    %p266 = pneg %p265
    // Predicated region
    $region9: #{basic_block_forward.4} parent=5 // pred_check
      _
    $region10: #{basic_block_forward.4} parent=5 // pred_check_branch
      %268 = sbr.rel (%p265) target = $region12
    $region11: #{basic_block_forward.4} parent=5 // pred_region
      %s269 = ssub.s32 %s15, 1
      // Predicated region
      $region13: #{basic_block_forward.4} parent=11 // pred_check
        %p270 = pneg %p74
      $region14: #{basic_block_forward.4} parent=11 // pred_check_branch
        %272 = sbr.rel (%p270) target = $region16
      $region15: #{basic_block_forward.4} parent=11 // pred_region
        _
      $region16: #{basic_block_forward.4} parent=11 // pred_fallthru
        _
      // Predicated region
      $region17: #{basic_block_forward.4} parent=11 // pred_check
        %p273 = pneg %p95
      $region18: #{basic_block_forward.4} parent=11 // pred_check_branch
        %275 = sbr.rel (%p273) target = $region20
      $region19: #{basic_block_forward.4} parent=11 // pred_region
        _
      $region20: #{basic_block_forward.4} parent=11 // pred_fallthru
        _
      // Predicated region
      $region21: #{basic_block_forward.4} parent=11 // pred_check
        %p276 = pneg %p121
      $region22: #{basic_block_forward.4} parent=11 // pred_check_branch
        %278 = sbr.rel (%p276) target = $region24
      $region23: #{basic_block_forward.4} parent=11 // pred_region
        %p279 = scmp.lt.s32.totalorder %s24, 0
        %s280 = scalar_select %p279, %s24, 0
        %s281 = smul.addr %s280, 4
        %s282 = scalar_lea.vmem %s3, %s281
      $region24: #{basic_block_forward.4} parent=11 // pred_fallthru
        _
      // Predicated region
      $region25: #{basic_block_forward.4} parent=11 // pred_check
        %p283 = pneg %p147
      $region26: #{basic_block_forward.4} parent=11 // pred_check_branch
        %285 = sbr.rel (%p283) target = $region28
      $region27: #{basic_block_forward.4} parent=11 // pred_region
        %p286 = scmp.lt.s32.totalorder %s24, 0
        %s287 = scalar_select %p286, %s24, 0
        %s288 = smul.addr %s287, 4
        %s289 = scalar_lea.vmem %s4, %s288
      $region28: #{basic_block_forward.4} parent=11 // pred_fallthru
        _
    $region12: #{basic_block_forward.4} parent=5 // pred_fallthru
      _
    %p290 = scmp.lt.s32.totalorder %s15, 2
    // Predicated region
    $region29: #{basic_block_forward.4} parent=5 // pred_check
      %p291 = pneg %p290
    $region30: #{basic_block_forward.4} parent=5 // pred_check_branch
      %293 = sbr.rel (%p291) target = $region32
    $region31: #{basic_block_forward.4} parent=5 // pred_region
      // Predicated region
      $region33: #{basic_block_forward.4} parent=31 // pred_check
        %p294 = pneg %p47
      $region34: #{basic_block_forward.4} parent=31 // pred_check_branch
        %296 = sbr.rel (%p294) target = $region36
      $region35: #{basic_block_forward.4} parent=31 // pred_region
        %p297 = scmp.lt.s32.totalorder %s23, 1
        %s298 = scalar_select %p297, %s23, 1
        %s299 = smul.addr %s298, 32
        %s300 = smul.addr %s299, 8
        %s301 = scalar_lea.vmem %s0, %s300
      $region36: #{basic_block_forward.4} parent=31 // pred_fallthru
        _
    $region32: #{basic_block_forward.4} parent=5 // pred_fallthru
      _
    %p302 = scmp.le.s32.totalorder 1, %s15
    %p303 = scmp.lt.s32.totalorder %s15, 3
    %p304 = pnand %p302, %p303
    %p305 = pneg %p304
    // Predicated region
    $region37: #{basic_block_forward.4} parent=5 // pred_check
      _
    $region38: #{basic_block_forward.4} parent=5 // pred_check_branch
      %307 = sbr.rel (%p304) target = $region40
    $region39: #{basic_block_forward.4} parent=5 // pred_region
      %s308 = ssub.s32 %s15, 1
      %p309 = scmp.lt.s32.totalorder %s25, 1
      %s310 = scalar_select %p309, %s25, 1
      %s311 = smul.addr %s310, 32
      %s312 = smul.addr %s311, 8
      %s313 = scalar_lea.vmem %s0, %s312
      %p314 = pneg %p53
      %p315 = pneg %p50
      %p316 = pneg %p74
      %p317 = pneg %p71
      %p318 = pneg %p95
      %p319 = pneg %p92
      %p320 = scmp.lt.s32.totalorder %s24, 0
      %s321 = scalar_select %p320, %s24, 0
      %s322 = smul.addr %s321, 4
      %s323 = scalar_lea.vmem %s3, %s322
      %p324 = pneg %p121
      %p325 = pneg %p118
      %p326 = scmp.lt.s32.totalorder %s24, 0
      %s327 = scalar_select %p326, %s24, 0
      %s328 = smul.addr %s327, 4
      %s329 = scalar_lea.vmem %s4, %s328
      %p330 = pneg %p147
      %p331 = pneg %p144
      %p332 = pneg %p175
      %p333 = pneg %p172
      %p334 = scmp.lt.s32.totalorder %s25, 1
      %s335 = scalar_select %p334, %s25, 1
      %p336 = scmp.lt.s32.totalorder %s24, 0
      %s337 = scalar_select %p336, %s24, 0
      %s338 = smul.addr %s335, 8
      %s339 = sadd.s32 %s337, %s338
      %s340 = smul.addr %s339, 4
      %s341 = scalar_lea.vmem %s5, %s340
      %p342 = pneg %p203
      %p343 = pneg %p200
      %p344 = scmp.lt.s32.totalorder %s25, 1
      %s345 = scalar_select %p344, %s25, 1
      %p346 = scmp.lt.s32.totalorder %s24, 0
      %s347 = scalar_select %p346, %s24, 0
      %s348 = smul.addr %s345, 8
      %s349 = sadd.s32 %s347, %s348
      %s350 = smul.addr %s349, 8
      %s351 = scalar_lea.vmem %s6, %s350
      %p352 = pneg %p229
      %p353 = pneg %p226
      %p354 = scmp.lt.s32.totalorder %s24, 0
      %s355 = scalar_select %p354, %s24, 0
      %s356 = scalar_lea.vmem %s7, %s355
      %p357 = pneg %p255
      %p358 = pneg %p252
      %p359 = scmp.lt.s32.totalorder %s24, 0
      %s360 = scalar_select %p359, %s24, 0
      %s361 = scalar_lea.vmem %s8, %s360
      %p362 = scmp.lt.s32.totalorder %s25, 1
      %s363 = scalar_select %p362, %s25, 1
      %s364 = smul.addr %s363, 32
      %s365 = smul.addr %s364, 8
      %s366 = scalar_lea.vmem %s0, %s365
      %p367 = scmp.lt.s32.totalorder %s24, 0
      %s368 = scalar_select %p367, %s24, 0
      %s369 = smul.addr %s368, 4
      %s370 = scalar_lea.vmem %s3, %s369
      %p371 = scmp.lt.s32.totalorder %s24, 0
      %s372 = scalar_select %p371, %s24, 0
      %s373 = smul.addr %s372, 4
      %s374 = scalar_lea.vmem %s4, %s373
      %p375 = scmp.lt.s32.totalorder %s25, 1
      %s376 = scalar_select %p375, %s25, 1
      %p377 = scmp.lt.s32.totalorder %s24, 0
      %s378 = scalar_select %p377, %s24, 0
      %s379 = smul.addr %s376, 8
      %s380 = sadd.s32 %s378, %s379
      %s381 = smul.addr %s380, 4
      %s382 = scalar_lea.vmem %s5, %s381
      %p383 = scmp.lt.s32.totalorder %s25, 1
      %s384 = scalar_select %p383, %s25, 1
      %p385 = scmp.lt.s32.totalorder %s24, 0
      %s386 = scalar_select %p385, %s24, 0
      %s387 = smul.addr %s384, 8
      %s388 = sadd.s32 %s386, %s387
      %s389 = smul.addr %s388, 8
      %s390 = scalar_lea.vmem %s6, %s389
      %p391 = scmp.lt.s32.totalorder %s24, 0
      %s392 = scalar_select %p391, %s24, 0
      %s393 = scalar_lea.vmem %s7, %s392
      %p394 = scmp.lt.s32.totalorder %s24, 0
      %s395 = scalar_select %p394, %s24, 0
      %s396 = scalar_lea.vmem %s8, %s395
      %p398 = scmp.eq.s32.totalorder %s25, 0
      // Predicated region
      $region41: #{basic_block_forward.4} parent=39 // pred_check
        %p399 = pneg %p398
      $region42: #{basic_block_forward.4} parent=39 // pred_check_branch
        %401 = sbr.rel (%p399) target = $region44
      $region43: #{basic_block_forward.4} parent=39 // pred_region
        %402 = vst [vmem:[%s393] sm:$0x1] 0.0
        %403 = vst [vmem:[%s396] sm:$0x1] 0.0
      $region44: #{basic_block_forward.4} parent=39 // pred_fallthru
        _
      %v404 = vld [vmem:[%s1] sm:$0x1]
      %v405 = vld [vmem:[%s2] sm:$0x1]
      %406 = vst [vmem:[#allocation2] sm:$0xff] 0.0
      %407 = vst [vmem:[#allocation2 + $0x8] sm:$0x3] 0.0
      %s408 = scalar_lea.vmem [#allocation2], 144
      %409 = vst [vmem:[%s408] sm:$0xff] 0.0
      %410 = vst [vmem:[%s408 + $0x8] sm:$0x3] 0.0
      %s411 = scalar_lea.vmem [#allocation2], 16
      %412 = vst [vmem:[%s411] sm:$0x1] 0.0
      %413 = vst [vmem:[%s411 + $0x10] sm:$0x1] 0.0
      %414 = vst [vmem:[%s411 + $0x20] sm:$0x1] 0.0
      %415 = vst [vmem:[%s411 + $0x30] sm:$0x1] 0.0
      %416 = vst [vmem:[%s411 + $0x40] sm:$0x1] 0.0
      %417 = vst [vmem:[%s411 + $0x50] sm:$0x1] 0.0
      %418 = vst [vmem:[%s411 + $0x60] sm:$0x1] 0.0
      %419 = vst [vmem:[%s411 + $0x70] sm:$0x1] 0.0
      %420 = vst [vmem:[%s411 + $0x9] sm:$0x1] 0.0
      %421 = vst [vmem:[%s411 + $0x19] sm:$0x1] 0.0
      %422 = vst [vmem:[%s411 + $0x29] sm:$0x1] 0.0
      %423 = vst [vmem:[%s411 + $0x39] sm:$0x1] 0.0
      %424 = vst [vmem:[%s411 + $0x49] sm:$0x1] 0.0
      %425 = vst [vmem:[%s411 + $0x59] sm:$0x1] 0.0
      %426 = vst [vmem:[%s411 + $0x69] sm:$0x1] 0.0
      %427 = vst [vmem:[%s411 + $0x79] sm:$0x1] 0.0
      %v428 = vld [vmem:[%s366] sm:$0xff]
      %v429 = vld [vmem:[%s366 + $0x8] sm:$0xff]
      %v430 = vld [vmem:[%s366 + $0x10] sm:$0xff]
      %v431 = vld [vmem:[%s366 + $0x18] sm:$0xff]
      %v432 = vld [vmem:[%s366 + $0x20] sm:$0xff]
      %v433 = vld [vmem:[%s366 + $0x28] sm:$0xff]
      %v434 = vld [vmem:[%s366 + $0x30] sm:$0xff]
      %v435 = vld [vmem:[%s366 + $0x38] sm:$0xff]
      %v437 = vlaneseq
      %v438 = vshrl.u32 %v437, 7
      %v439 = vsub.s32 0, %v438
      %v440 = vrot.slane %v404, %v439
      %v442 = vmul.f32 %v428, %v440
      %v443 = vmul.f32 %v429, %v440
      %v444 = vmul.f32 %v430, %v440
      %v445 = vmul.f32 %v431, %v440
      %v446 = vmul.f32 %v432, %v440
      %v447 = vmul.f32 %v433, %v440
      %v448 = vmul.f32 %v434, %v440
      %v449 = vmul.f32 %v435, %v440
      %v451 = vlaneseq
      %v452 = vshrl.u32 %v451, 7
      %v453 = vsub.s32 0, %v452
      %v454 = vrot.slane %v405, %v453
      %v456 = vadd.f32 %v442, %v454
      %v457 = vadd.f32 %v443, %v454
      %v458 = vadd.f32 %v444, %v454
      %v459 = vadd.f32 %v445, %v454
      %v460 = vadd.f32 %v446, %v454
      %v461 = vadd.f32 %v447, %v454
      %v462 = vadd.f32 %v448, %v454
      %v463 = vadd.f32 %v449, %v454
      %v464 = vmax.f32 %v456, 0.0
      %v465 = vmax.f32 %v457, 0.0
      %v466 = vmax.f32 %v458, 0.0
      %v467 = vmax.f32 %v459, 0.0
      %v468 = vmax.f32 %v460, 0.0
      %v469 = vmax.f32 %v461, 0.0
      %v470 = vmax.f32 %v462, 0.0
      %v471 = vmax.f32 %v463, 0.0
      %472 = vst [vmem:[%s411 + $0x1] sm:$0xff] %v464
      %473 = vst [vmem:[%s411 + $0x11] sm:$0xff] %v465
      %474 = vst [vmem:[%s411 + $0x21] sm:$0xff] %v466
      %475 = vst [vmem:[%s411 + $0x31] sm:$0xff] %v467
      %476 = vst [vmem:[%s411 + $0x41] sm:$0xff] %v468
      %477 = vst [vmem:[%s411 + $0x51] sm:$0xff] %v469
      %478 = vst [vmem:[%s411 + $0x61] sm:$0xff] %v470
      %479 = vst [vmem:[%s411 + $0x71] sm:$0xff] %v471
      %s480 = scalar_lea.vmem [#allocation2], 160
      %481 = vst [vmem:[%s480] sm:$0xff] 0.0
      %482 = vst [vmem:[%s480 + $0x8] sm:$0x3] 0.0
      %s483 = scalar_lea.vmem [#allocation2], 304
      %484 = vst [vmem:[%s483] sm:$0xff] 0.0
      %485 = vst [vmem:[%s483 + $0x8] sm:$0x3] 0.0
      %s486 = scalar_lea.vmem [#allocation2], 176
      %487 = vst [vmem:[%s486] sm:$0x1] 0.0
      %488 = vst [vmem:[%s486 + $0x10] sm:$0x1] 0.0
      %489 = vst [vmem:[%s486 + $0x20] sm:$0x1] 0.0
      %490 = vst [vmem:[%s486 + $0x30] sm:$0x1] 0.0
      %491 = vst [vmem:[%s486 + $0x40] sm:$0x1] 0.0
      %492 = vst [vmem:[%s486 + $0x50] sm:$0x1] 0.0
      %493 = vst [vmem:[%s486 + $0x60] sm:$0x1] 0.0
      %494 = vst [vmem:[%s486 + $0x70] sm:$0x1] 0.0
      %495 = vst [vmem:[%s486 + $0x9] sm:$0x1] 0.0
      %496 = vst [vmem:[%s486 + $0x19] sm:$0x1] 0.0
      %497 = vst [vmem:[%s486 + $0x29] sm:$0x1] 0.0
      %498 = vst [vmem:[%s486 + $0x39] sm:$0x1] 0.0
      %499 = vst [vmem:[%s486 + $0x49] sm:$0x1] 0.0
      %500 = vst [vmem:[%s486 + $0x59] sm:$0x1] 0.0
      %501 = vst [vmem:[%s486 + $0x69] sm:$0x1] 0.0
      %502 = vst [vmem:[%s486 + $0x79] sm:$0x1] 0.0
      %s503 = scalar_lea.vmem %s366, 64
      %v504 = vld [vmem:[%s503] sm:$0xff]
      %v505 = vld [vmem:[%s503 + $0x8] sm:$0xff]
      %v506 = vld [vmem:[%s503 + $0x10] sm:$0xff]
      %v507 = vld [vmem:[%s503 + $0x18] sm:$0xff]
      %v508 = vld [vmem:[%s503 + $0x20] sm:$0xff]
      %v509 = vld [vmem:[%s503 + $0x28] sm:$0xff]
      %v510 = vld [vmem:[%s503 + $0x30] sm:$0xff]
      %v511 = vld [vmem:[%s503 + $0x38] sm:$0xff]
      %v512 = vmul.f32 %v504, %v440
      %v513 = vmul.f32 %v505, %v440
      %v514 = vmul.f32 %v506, %v440
      %v515 = vmul.f32 %v507, %v440
      %v516 = vmul.f32 %v508, %v440
      %v517 = vmul.f32 %v509, %v440
      %v518 = vmul.f32 %v510, %v440
      %v519 = vmul.f32 %v511, %v440
      %v520 = vadd.f32 %v512, %v454
      %v521 = vadd.f32 %v513, %v454
      %v522 = vadd.f32 %v514, %v454
      %v523 = vadd.f32 %v515, %v454
      %v524 = vadd.f32 %v516, %v454
      %v525 = vadd.f32 %v517, %v454
      %v526 = vadd.f32 %v518, %v454
      %v527 = vadd.f32 %v519, %v454
      %v528 = vmax.f32 %v520, 0.0
      %v529 = vmax.f32 %v521, 0.0
      %v530 = vmax.f32 %v522, 0.0
      %v531 = vmax.f32 %v523, 0.0
      %v532 = vmax.f32 %v524, 0.0
      %v533 = vmax.f32 %v525, 0.0
      %v534 = vmax.f32 %v526, 0.0
      %v535 = vmax.f32 %v527, 0.0
      %536 = vst [vmem:[%s486 + $0x1] sm:$0xff] %v528
      %537 = vst [vmem:[%s486 + $0x11] sm:$0xff] %v529
      %538 = vst [vmem:[%s486 + $0x21] sm:$0xff] %v530
      %539 = vst [vmem:[%s486 + $0x31] sm:$0xff] %v531
      %540 = vst [vmem:[%s486 + $0x41] sm:$0xff] %v532
      %541 = vst [vmem:[%s486 + $0x51] sm:$0xff] %v533
      %542 = vst [vmem:[%s486 + $0x61] sm:$0xff] %v534
      %543 = vst [vmem:[%s486 + $0x71] sm:$0xff] %v535
      %s544 = scalar_lea.vmem [#allocation2], 320
      %545 = vst [vmem:[%s544] sm:$0xff] 0.0
      %546 = vst [vmem:[%s544 + $0x8] sm:$0x3] 0.0
      %s547 = scalar_lea.vmem [#allocation2], 464
      %548 = vst [vmem:[%s547] sm:$0xff] 0.0
      %549 = vst [vmem:[%s547 + $0x8] sm:$0x3] 0.0
      %s550 = scalar_lea.vmem [#allocation2], 336
      %551 = vst [vmem:[%s550] sm:$0x1] 0.0
      %552 = vst [vmem:[%s550 + $0x10] sm:$0x1] 0.0
      %553 = vst [vmem:[%s550 + $0x20] sm:$0x1] 0.0
      %554 = vst [vmem:[%s550 + $0x30] sm:$0x1] 0.0
      %555 = vst [vmem:[%s550 + $0x40] sm:$0x1] 0.0
      %556 = vst [vmem:[%s550 + $0x50] sm:$0x1] 0.0
      %557 = vst [vmem:[%s550 + $0x60] sm:$0x1] 0.0
      %558 = vst [vmem:[%s550 + $0x70] sm:$0x1] 0.0
      %559 = vst [vmem:[%s550 + $0x9] sm:$0x1] 0.0
      %560 = vst [vmem:[%s550 + $0x19] sm:$0x1] 0.0
      %561 = vst [vmem:[%s550 + $0x29] sm:$0x1] 0.0
      %562 = vst [vmem:[%s550 + $0x39] sm:$0x1] 0.0
      %563 = vst [vmem:[%s550 + $0x49] sm:$0x1] 0.0
      %564 = vst [vmem:[%s550 + $0x59] sm:$0x1] 0.0
      %565 = vst [vmem:[%s550 + $0x69] sm:$0x1] 0.0
      %566 = vst [vmem:[%s550 + $0x79] sm:$0x1] 0.0
      %s567 = scalar_lea.vmem %s366, 128
      %v568 = vld [vmem:[%s567] sm:$0xff]
      %v569 = vld [vmem:[%s567 + $0x8] sm:$0xff]
      %v570 = vld [vmem:[%s567 + $0x10] sm:$0xff]
      %v571 = vld [vmem:[%s567 + $0x18] sm:$0xff]
      %v572 = vld [vmem:[%s567 + $0x20] sm:$0xff]
      %v573 = vld [vmem:[%s567 + $0x28] sm:$0xff]
      %v574 = vld [vmem:[%s567 + $0x30] sm:$0xff]
      %v575 = vld [vmem:[%s567 + $0x38] sm:$0xff]
      %v576 = vmul.f32 %v568, %v440
      %v577 = vmul.f32 %v569, %v440
      %v578 = vmul.f32 %v570, %v440
      %v579 = vmul.f32 %v571, %v440
      %v580 = vmul.f32 %v572, %v440
      %v581 = vmul.f32 %v573, %v440
      %v582 = vmul.f32 %v574, %v440
      %v583 = vmul.f32 %v575, %v440
      %v584 = vadd.f32 %v576, %v454
      %v585 = vadd.f32 %v577, %v454
      %v586 = vadd.f32 %v578, %v454
      %v587 = vadd.f32 %v579, %v454
      %v588 = vadd.f32 %v580, %v454
      %v589 = vadd.f32 %v581, %v454
      %v590 = vadd.f32 %v582, %v454
      %v591 = vadd.f32 %v583, %v454
      %v592 = vmax.f32 %v584, 0.0
      %v593 = vmax.f32 %v585, 0.0
      %v594 = vmax.f32 %v586, 0.0
      %v595 = vmax.f32 %v587, 0.0
      %v596 = vmax.f32 %v588, 0.0
      %v597 = vmax.f32 %v589, 0.0
      %v598 = vmax.f32 %v590, 0.0
      %v599 = vmax.f32 %v591, 0.0
      %600 = vst [vmem:[%s550 + $0x1] sm:$0xff] %v592
      %601 = vst [vmem:[%s550 + $0x11] sm:$0xff] %v593
      %602 = vst [vmem:[%s550 + $0x21] sm:$0xff] %v594
      %603 = vst [vmem:[%s550 + $0x31] sm:$0xff] %v595
      %604 = vst [vmem:[%s550 + $0x41] sm:$0xff] %v596
      %605 = vst [vmem:[%s550 + $0x51] sm:$0xff] %v597
      %606 = vst [vmem:[%s550 + $0x61] sm:$0xff] %v598
      %607 = vst [vmem:[%s550 + $0x71] sm:$0xff] %v599
      %s608 = scalar_lea.vmem [#allocation2], 480
      %609 = vst [vmem:[%s608] sm:$0xff] 0.0
      %610 = vst [vmem:[%s608 + $0x8] sm:$0x3] 0.0
      %s611 = scalar_lea.vmem [#allocation2], 624
      %612 = vst [vmem:[%s611] sm:$0xff] 0.0
      %613 = vst [vmem:[%s611 + $0x8] sm:$0x3] 0.0
      %s614 = scalar_lea.vmem [#allocation2], 496
      %615 = vst [vmem:[%s614] sm:$0x1] 0.0
      %616 = vst [vmem:[%s614 + $0x10] sm:$0x1] 0.0
      %617 = vst [vmem:[%s614 + $0x20] sm:$0x1] 0.0
      %618 = vst [vmem:[%s614 + $0x30] sm:$0x1] 0.0
      %619 = vst [vmem:[%s614 + $0x40] sm:$0x1] 0.0
      %620 = vst [vmem:[%s614 + $0x50] sm:$0x1] 0.0
      %621 = vst [vmem:[%s614 + $0x60] sm:$0x1] 0.0
      %622 = vst [vmem:[%s614 + $0x70] sm:$0x1] 0.0
      %623 = vst [vmem:[%s614 + $0x9] sm:$0x1] 0.0
      %624 = vst [vmem:[%s614 + $0x19] sm:$0x1] 0.0
      %625 = vst [vmem:[%s614 + $0x29] sm:$0x1] 0.0
      %626 = vst [vmem:[%s614 + $0x39] sm:$0x1] 0.0
      %627 = vst [vmem:[%s614 + $0x49] sm:$0x1] 0.0
      %628 = vst [vmem:[%s614 + $0x59] sm:$0x1] 0.0
      %629 = vst [vmem:[%s614 + $0x69] sm:$0x1] 0.0
      %630 = vst [vmem:[%s614 + $0x79] sm:$0x1] 0.0
      %s631 = scalar_lea.vmem %s366, 192
      %v632 = vld [vmem:[%s631] sm:$0xff]
      %v633 = vld [vmem:[%s631 + $0x8] sm:$0xff]
      %v634 = vld [vmem:[%s631 + $0x10] sm:$0xff]
      %v635 = vld [vmem:[%s631 + $0x18] sm:$0xff]
      %v636 = vld [vmem:[%s631 + $0x20] sm:$0xff]
      %v637 = vld [vmem:[%s631 + $0x28] sm:$0xff]
      %v638 = vld [vmem:[%s631 + $0x30] sm:$0xff]
      %v639 = vld [vmem:[%s631 + $0x38] sm:$0xff]
      %v640 = vmul.f32 %v632, %v440
      %v641 = vmul.f32 %v633, %v440
      %v642 = vmul.f32 %v634, %v440
      %v643 = vmul.f32 %v635, %v440
      %v644 = vmul.f32 %v636, %v440
      %v645 = vmul.f32 %v637, %v440
      %v646 = vmul.f32 %v638, %v440
      %v647 = vmul.f32 %v639, %v440
      %v648 = vadd.f32 %v640, %v454
      %v649 = vadd.f32 %v641, %v454
      %v650 = vadd.f32 %v642, %v454
      %v651 = vadd.f32 %v643, %v454
      %v652 = vadd.f32 %v644, %v454
      %v653 = vadd.f32 %v645, %v454
      %v654 = vadd.f32 %v646, %v454
      %v655 = vadd.f32 %v647, %v454
      %v656 = vmax.f32 %v648, 0.0
      %v657 = vmax.f32 %v649, 0.0
      %v658 = vmax.f32 %v650, 0.0
      %v659 = vmax.f32 %v651, 0.0
      %v660 = vmax.f32 %v652, 0.0
      %v661 = vmax.f32 %v653, 0.0
      %v662 = vmax.f32 %v654, 0.0
      %v663 = vmax.f32 %v655, 0.0
      %664 = vst [vmem:[%s614 + $0x1] sm:$0xff] %v656
      %665 = vst [vmem:[%s614 + $0x11] sm:$0xff] %v657
      %666 = vst [vmem:[%s614 + $0x21] sm:$0xff] %v658
      %667 = vst [vmem:[%s614 + $0x31] sm:$0xff] %v659
      %668 = vst [vmem:[%s614 + $0x41] sm:$0xff] %v660
      %669 = vst [vmem:[%s614 + $0x51] sm:$0xff] %v661
      %670 = vst [vmem:[%s614 + $0x61] sm:$0xff] %v662
      %671 = vst [vmem:[%s614 + $0x71] sm:$0xff] %v663
      %v672 = vld [vmem:[%s608] sm:$0xff]
      %v673 = vld [vmem:[%s608 + $0x10] sm:$0xff]
      %v674 = vld [vmem:[%s608 + $0x20] sm:$0xff]
      %v675 = vld [vmem:[%s608 + $0x30] sm:$0xff]
      %v676 = vld [vmem:[%s608 + $0x40] sm:$0xff]
      %v677 = vld [vmem:[%s608 + $0x50] sm:$0xff]
      %v678 = vld [vmem:[%s608 + $0x60] sm:$0xff]
      %v679 = vld [vmem:[%s608 + $0x70] sm:$0xff]
      %v680 = vpack.c.bf16 %v673, %v672
      %v681 = vpack.c.bf16 %v675, %v674
      %v682 = vpack.c.bf16 %v677, %v676
      %v683 = vpack.c.bf16 %v679, %v678
      %v684 = vld [vmem:[%s370] sm:$0xf]
      %v685 = vld [vmem:[%s370 + $0x4] sm:$0xf]
      %v686 = vld [vmem:[%s370 + $0x8] sm:$0xf]
      %v687 = vld [vmem:[%s370 + $0xc] sm:$0xf]
      %v688 = vld [vmem:[%s370 + $0x10] sm:$0xf]
      %v689 = vld [vmem:[%s370 + $0x14] sm:$0xf]
      %v690 = vld [vmem:[%s370 + $0x18] sm:$0xf]
      %v691 = vld [vmem:[%s370 + $0x1c] sm:$0xf]
      %v692 = vld [vmem:[%s370 + $0x20] sm:$0xf]
      %v693 = vld [vmem:[%s370 + $0x24] sm:$0xf]
      %v694 = vld [vmem:[%s370 + $0x28] sm:$0xf]
      %v695 = vld [vmem:[%s370 + $0x2c] sm:$0xf]
      %v696 = vld [vmem:[%s370 + $0x30] sm:$0xf]
      %v697 = vld [vmem:[%s370 + $0x34] sm:$0xf]
      %v698 = vld [vmem:[%s370 + $0x38] sm:$0xf]
      %v699 = vld [vmem:[%s370 + $0x3c] sm:$0xf]
      %v700 = vld [vmem:[%s544 + $0x1] sm:$0xff]
      %v701 = vld [vmem:[%s544 + $0x11] sm:$0xff]
      %v702 = vld [vmem:[%s544 + $0x21] sm:$0xff]
      %v703 = vld [vmem:[%s544 + $0x31] sm:$0xff]
      %v704 = vld [vmem:[%s544 + $0x41] sm:$0xff]
      %v705 = vld [vmem:[%s544 + $0x51] sm:$0xff]
      %v706 = vld [vmem:[%s544 + $0x61] sm:$0xff]
      %v707 = vld [vmem:[%s544 + $0x71] sm:$0xff]
      %v708 = vpack.c.bf16 %v701, %v700
      %v709 = vpack.c.bf16 %v703, %v702
      %v710 = vpack.c.bf16 %v705, %v704
      %v711 = vpack.c.bf16 %v707, %v706
      %v712 = vld [vmem:[%s370 + $0x40] sm:$0xf]
      %v713 = vld [vmem:[%s370 + $0x44] sm:$0xf]
      %v714 = vld [vmem:[%s370 + $0x48] sm:$0xf]
      %v715 = vld [vmem:[%s370 + $0x4c] sm:$0xf]
      %v716 = vld [vmem:[%s370 + $0x50] sm:$0xf]
      %v717 = vld [vmem:[%s370 + $0x54] sm:$0xf]
      %v718 = vld [vmem:[%s370 + $0x58] sm:$0xf]
      %v719 = vld [vmem:[%s370 + $0x5c] sm:$0xf]
      %v720 = vld [vmem:[%s370 + $0x60] sm:$0xf]
      %v721 = vld [vmem:[%s370 + $0x64] sm:$0xf]
      %v722 = vld [vmem:[%s370 + $0x68] sm:$0xf]
      %v723 = vld [vmem:[%s370 + $0x6c] sm:$0xf]
      %v724 = vld [vmem:[%s370 + $0x70] sm:$0xf]
      %v725 = vld [vmem:[%s370 + $0x74] sm:$0xf]
      %v726 = vld [vmem:[%s370 + $0x78] sm:$0xf]
      %v727 = vld [vmem:[%s370 + $0x7c] sm:$0xf]
      %v744 = vunpack.c.l.b16 %v712
      %v745 = vunpack.c.l.b16 %v713
      %v746 = vunpack.c.l.b16 %v714
      %v747 = vunpack.c.l.b16 %v715
      %v748 = vunpack.c.l.b16 %v716
      %v749 = vunpack.c.l.b16 %v717
      %v750 = vunpack.c.l.b16 %v718
      %v751 = vunpack.c.l.b16 %v719
      %v752 = vunpack.c.l.b16 %v720
      %v753 = vunpack.c.l.b16 %v721
      %v754 = vunpack.c.l.b16 %v722
      %v755 = vunpack.c.l.b16 %v723
      %v756 = vunpack.c.l.b16 %v724
      %v757 = vunpack.c.l.b16 %v725
      %v758 = vunpack.c.l.b16 %v726
      %v759 = vunpack.c.l.b16 %v727
      %v760 = vpack.c.b16 %v745, %v744
      %v761 = vpack.c.b16 %v747, %v746
      %v762 = vpack.c.b16 %v749, %v748
      %v763 = vpack.c.b16 %v751, %v750
      %v764 = vpack.c.b16 %v753, %v752
      %v765 = vpack.c.b16 %v755, %v754
      %v766 = vpack.c.b16 %v757, %v756
      %v767 = vpack.c.b16 %v759, %v758
      %776 = vmatprep.subr.bf16.mxu0 0
      %777 = vmatpush1.bf16.msra.mxu0 %v767
      %778 = vmatprep.subr.bf16.mxu0 0
      %779 = vmatpush1.bf16.msra.mxu0 %v766
      %780 = vmatprep.subr.bf16.mxu0 0
      %781 = vmatpush1.bf16.msra.mxu0 %v765
      %782 = vmatprep.subr.bf16.mxu0 0
      %783 = vmatpush1.bf16.msra.mxu0 %v764
      %784 = vmatprep.subr.bf16.mxu0 0
      %785 = vmatpush1.bf16.msra.mxu0 %v763
      %786 = vmatprep.subr.bf16.mxu0 0
      %787 = vmatpush1.bf16.msra.mxu0 %v762
      %788 = vmatprep.subr.bf16.mxu0 0
      %789 = vmatpush1.bf16.msra.mxu0 %v761
      %790 = vmatprep.subr.bf16.mxu0 0
      %791 = vmatpush1.bf16.msra.mxu0 %v760
      %792 = vmatprep.subr.bf16.mxu0 0
      %793 = vmatpush2.bf16.msra.mxu0 0
      %794 = vmatprep.subr.bf16.mxu0 0
      %795 = vmatpush2.bf16.msra.mxu0 0
      %796 = vmatprep.subr.bf16.mxu0 0
      %797 = vmatpush2.bf16.msra.mxu0 0
      %798 = vmatprep.subr.bf16.mxu0 0
      %799 = vmatpush2.bf16.msra.mxu0 0
      %800 = vmatprep.subr.bf16.mxu0 0
      %801 = vmatpush2.bf16.msra.mxu0 0
      %802 = vmatprep.subr.bf16.mxu0 0
      %803 = vmatpush2.bf16.msra.mxu0 0
      %804 = vmatprep.subr.bf16.mxu0 0
      %805 = vmatpush2.bf16.msra.mxu0 0
      %806 = vmatprep.subr.bf16.mxu0 0
      %807 = vmatpush2.bf16.msra.mxu0 0
      %808 = vmatprep.mubr.bf16.mxu0 0
      %809 = vmatmul.mubr.bf16.gmra.mxu0 %v708
      %v810 = vpop.f32.mrf.mxu0
      %v811 = vadd.f32 0.0, %v810
      %v812 = vpop.f32.mrf.mxu0
      %v813 = vpop.f32.mrf.mxu0
      %v814 = vadd.f32 0.0, %v813
      %v815 = vpop.f32.mrf.mxu0
      %816 = vmatprep.mubr.bf16.mxu0 0
      %817 = vmatmul.mubr.bf16.gmra.mxu0 %v709
      %v818 = vpop.f32.mrf.mxu0
      %v819 = vadd.f32 0.0, %v818
      %v820 = vpop.f32.mrf.mxu0
      %v821 = vpop.f32.mrf.mxu0
      %v822 = vadd.f32 0.0, %v821
      %v823 = vpop.f32.mrf.mxu0
      %824 = vmatprep.mubr.bf16.mxu0 0
      %825 = vmatmul.mubr.bf16.gmra.mxu0 %v710
      %v826 = vpop.f32.mrf.mxu0
      %v827 = vadd.f32 0.0, %v826
      %v828 = vpop.f32.mrf.mxu0
      %v829 = vpop.f32.mrf.mxu0
      %v830 = vadd.f32 0.0, %v829
      %v831 = vpop.f32.mrf.mxu0
      %832 = vmatprep.mubr.bf16.mxu0 0
      %833 = vmatmul.mubr.bf16.gmra.mxu0 %v711
      %v834 = vpop.f32.mrf.mxu0
      %v835 = vadd.f32 0.0, %v834
      %v836 = vpop.f32.mrf.mxu0
      %v837 = vpop.f32.mrf.mxu0
      %v838 = vadd.f32 0.0, %v837
      %v839 = vpop.f32.mrf.mxu0
      %840 = vdwg.mxu0
      %v857 = vunpack.c.l.b16 %v684
      %v858 = vunpack.c.l.b16 %v685
      %v859 = vunpack.c.l.b16 %v686
      %v860 = vunpack.c.l.b16 %v687
      %v861 = vunpack.c.l.b16 %v688
      %v862 = vunpack.c.l.b16 %v689
      %v863 = vunpack.c.l.b16 %v690
      %v864 = vunpack.c.l.b16 %v691
      %v865 = vunpack.c.l.b16 %v692
      %v866 = vunpack.c.l.b16 %v693
      %v867 = vunpack.c.l.b16 %v694
      %v868 = vunpack.c.l.b16 %v695
      %v869 = vunpack.c.l.b16 %v696
      %v870 = vunpack.c.l.b16 %v697
      %v871 = vunpack.c.l.b16 %v698
      %v872 = vunpack.c.l.b16 %v699
      %v873 = vpack.c.b16 %v858, %v857
      %v874 = vpack.c.b16 %v860, %v859
      %v875 = vpack.c.b16 %v862, %v861
      %v876 = vpack.c.b16 %v864, %v863
      %v877 = vpack.c.b16 %v866, %v865
      %v878 = vpack.c.b16 %v868, %v867
      %v879 = vpack.c.b16 %v870, %v869
      %v880 = vpack.c.b16 %v872, %v871
      %889 = vmatprep.subr.bf16.mxu0 0
      %890 = vmatpush1.bf16.msra.mxu0 %v880
      %891 = vmatprep.subr.bf16.mxu0 0
      %892 = vmatpush1.bf16.msra.mxu0 %v879
      %893 = vmatprep.subr.bf16.mxu0 0
      %894 = vmatpush1.bf16.msra.mxu0 %v878
      %895 = vmatprep.subr.bf16.mxu0 0
      %896 = vmatpush1.bf16.msra.mxu0 %v877
      %897 = vmatprep.subr.bf16.mxu0 0
      %898 = vmatpush1.bf16.msra.mxu0 %v876
      %899 = vmatprep.subr.bf16.mxu0 0
      %900 = vmatpush1.bf16.msra.mxu0 %v875
      %901 = vmatprep.subr.bf16.mxu0 0
      %902 = vmatpush1.bf16.msra.mxu0 %v874
      %903 = vmatprep.subr.bf16.mxu0 0
      %904 = vmatpush1.bf16.msra.mxu0 %v873
      %905 = vmatprep.subr.bf16.mxu0 0
      %906 = vmatpush2.bf16.msra.mxu0 0
      %907 = vmatprep.subr.bf16.mxu0 0
      %908 = vmatpush2.bf16.msra.mxu0 0
      %909 = vmatprep.subr.bf16.mxu0 0
      %910 = vmatpush2.bf16.msra.mxu0 0
      %911 = vmatprep.subr.bf16.mxu0 0
      %912 = vmatpush2.bf16.msra.mxu0 0
      %913 = vmatprep.subr.bf16.mxu0 0
      %914 = vmatpush2.bf16.msra.mxu0 0
      %915 = vmatprep.subr.bf16.mxu0 0
      %916 = vmatpush2.bf16.msra.mxu0 0
      %917 = vmatprep.subr.bf16.mxu0 0
      %918 = vmatpush2.bf16.msra.mxu0 0
      %919 = vmatprep.subr.bf16.mxu0 0
      %920 = vmatpush2.bf16.msra.mxu0 0
      %921 = vmatprep.mubr.bf16.mxu0 0
      %922 = vmatmul.mubr.bf16.gmra.mxu0 %v680
      %v923 = vpop.f32.mrf.mxu0
      %v924 = vadd.f32 %v811, %v923
      %v925 = vpop.f32.mrf.mxu0
      %v926 = vpop.f32.mrf.mxu0
      %v927 = vadd.f32 %v814, %v926
      %v928 = vpop.f32.mrf.mxu0
      %929 = vmatprep.mubr.bf16.mxu0 0
      %930 = vmatmul.mubr.bf16.gmra.mxu0 %v681
      %v931 = vpop.f32.mrf.mxu0
      %v932 = vadd.f32 %v819, %v931
      %v933 = vpop.f32.mrf.mxu0
      %v934 = vpop.f32.mrf.mxu0
      %v935 = vadd.f32 %v822, %v934
      %v936 = vpop.f32.mrf.mxu0
      %937 = vmatprep.mubr.bf16.mxu0 0
      %938 = vmatmul.mubr.bf16.gmra.mxu0 %v682
      %v939 = vpop.f32.mrf.mxu0
      %v940 = vadd.f32 %v827, %v939
      %v941 = vpop.f32.mrf.mxu0
      %v942 = vpop.f32.mrf.mxu0
      %v943 = vadd.f32 %v830, %v942
      %v944 = vpop.f32.mrf.mxu0
      %945 = vmatprep.mubr.bf16.mxu0 0
      %946 = vmatmul.mubr.bf16.gmra.mxu0 %v683
      %v947 = vpop.f32.mrf.mxu0
      %v948 = vadd.f32 %v835, %v947
      %v949 = vpop.f32.mrf.mxu0
      %v950 = vpop.f32.mrf.mxu0
      %v951 = vadd.f32 %v838, %v950
      %v952 = vpop.f32.mrf.mxu0
      %953 = vdwg.mxu0
      %v954 = vld [vmem:[%s608 + $0x1] sm:$0xff]
      %v955 = vld [vmem:[%s608 + $0x11] sm:$0xff]
      %v956 = vld [vmem:[%s608 + $0x21] sm:$0xff]
      %v957 = vld [vmem:[%s608 + $0x31] sm:$0xff]
      %v958 = vld [vmem:[%s608 + $0x41] sm:$0xff]
      %v959 = vld [vmem:[%s608 + $0x51] sm:$0xff]
      %v960 = vld [vmem:[%s608 + $0x61] sm:$0xff]
      %v961 = vld [vmem:[%s608 + $0x71] sm:$0xff]
      %v962 = vpack.c.bf16 %v955, %v954
      %v963 = vpack.c.bf16 %v957, %v956
      %v964 = vpack.c.bf16 %v959, %v958
      %v965 = vpack.c.bf16 %v961, %v960
      %v966 = vld [vmem:[%s370 + $0x80] sm:$0xf]
      %v967 = vld [vmem:[%s370 + $0x84] sm:$0xf]
      %v968 = vld [vmem:[%s370 + $0x88] sm:$0xf]
      %v969 = vld [vmem:[%s370 + $0x8c] sm:$0xf]
      %v970 = vld [vmem:[%s370 + $0x90] sm:$0xf]
      %v971 = vld [vmem:[%s370 + $0x94] sm:$0xf]
      %v972 = vld [vmem:[%s370 + $0x98] sm:$0xf]
      %v973 = vld [vmem:[%s370 + $0x9c] sm:$0xf]
      %v974 = vld [vmem:[%s370 + $0xa0] sm:$0xf]
      %v975 = vld [vmem:[%s370 + $0xa4] sm:$0xf]
      %v976 = vld [vmem:[%s370 + $0xa8] sm:$0xf]
      %v977 = vld [vmem:[%s370 + $0xac] sm:$0xf]
      %v978 = vld [vmem:[%s370 + $0xb0] sm:$0xf]
      %v979 = vld [vmem:[%s370 + $0xb4] sm:$0xf]
      %v980 = vld [vmem:[%s370 + $0xb8] sm:$0xf]
      %v981 = vld [vmem:[%s370 + $0xbc] sm:$0xf]
      %v998 = vunpack.c.l.b16 %v966
      %v999 = vunpack.c.l.b16 %v967
      %v1000 = vunpack.c.l.b16 %v968
      %v1001 = vunpack.c.l.b16 %v969
      %v1002 = vunpack.c.l.b16 %v970
      %v1003 = vunpack.c.l.b16 %v971
      %v1004 = vunpack.c.l.b16 %v972
      %v1005 = vunpack.c.l.b16 %v973
      %v1006 = vunpack.c.l.b16 %v974
      %v1007 = vunpack.c.l.b16 %v975
      %v1008 = vunpack.c.l.b16 %v976
      %v1009 = vunpack.c.l.b16 %v977
      %v1010 = vunpack.c.l.b16 %v978
      %v1011 = vunpack.c.l.b16 %v979
      %v1012 = vunpack.c.l.b16 %v980
      %v1013 = vunpack.c.l.b16 %v981
      %v1014 = vpack.c.b16 %v999, %v998
      %v1015 = vpack.c.b16 %v1001, %v1000
      %v1016 = vpack.c.b16 %v1003, %v1002
      %v1017 = vpack.c.b16 %v1005, %v1004
      %v1018 = vpack.c.b16 %v1007, %v1006
      %v1019 = vpack.c.b16 %v1009, %v1008
      %v1020 = vpack.c.b16 %v1011, %v1010
      %v1021 = vpack.c.b16 %v1013, %v1012
      %1030 = vmatprep.subr.bf16.mxu0 0
      %1031 = vmatpush1.bf16.msra.mxu0 %v1021
      %1032 = vmatprep.subr.bf16.mxu0 0
      %1033 = vmatpush1.bf16.msra.mxu0 %v1020
      %1034 = vmatprep.subr.bf16.mxu0 0
      %1035 = vmatpush1.bf16.msra.mxu0 %v1019
      %1036 = vmatprep.subr.bf16.mxu0 0
      %1037 = vmatpush1.bf16.msra.mxu0 %v1018
      %1038 = vmatprep.subr.bf16.mxu0 0
      %1039 = vmatpush1.bf16.msra.mxu0 %v1017
      %1040 = vmatprep.subr.bf16.mxu0 0
      %1041 = vmatpush1.bf16.msra.mxu0 %v1016
      %1042 = vmatprep.subr.bf16.mxu0 0
      %1043 = vmatpush1.bf16.msra.mxu0 %v1015
      %1044 = vmatprep.subr.bf16.mxu0 0
      %1045 = vmatpush1.bf16.msra.mxu0 %v1014
      %1046 = vmatprep.subr.bf16.mxu0 0
      %1047 = vmatpush2.bf16.msra.mxu0 0
      %1048 = vmatprep.subr.bf16.mxu0 0
      %1049 = vmatpush2.bf16.msra.mxu0 0
      %1050 = vmatprep.subr.bf16.mxu0 0
      %1051 = vmatpush2.bf16.msra.mxu0 0
      %1052 = vmatprep.subr.bf16.mxu0 0
      %1053 = vmatpush2.bf16.msra.mxu0 0
      %1054 = vmatprep.subr.bf16.mxu0 0
      %1055 = vmatpush2.bf16.msra.mxu0 0
      %1056 = vmatprep.subr.bf16.mxu0 0
      %1057 = vmatpush2.bf16.msra.mxu0 0
      %1058 = vmatprep.subr.bf16.mxu0 0
      %1059 = vmatpush2.bf16.msra.mxu0 0
      %1060 = vmatprep.subr.bf16.mxu0 0
      %1061 = vmatpush2.bf16.msra.mxu0 0
      %1062 = vmatprep.mubr.bf16.mxu0 0
      %1063 = vmatmul.mubr.bf16.gmra.mxu0 %v962
      %v1064 = vpop.f32.mrf.mxu0
      %v1065 = vadd.f32 0.0, %v1064
      %v1066 = vpop.f32.mrf.mxu0
      %v1067 = vpop.f32.mrf.mxu0
      %v1068 = vadd.f32 0.0, %v1067
      %v1069 = vpop.f32.mrf.mxu0
      %1070 = vmatprep.mubr.bf16.mxu0 0
      %1071 = vmatmul.mubr.bf16.gmra.mxu0 %v963
      %v1072 = vpop.f32.mrf.mxu0
      %v1073 = vadd.f32 0.0, %v1072
      %v1074 = vpop.f32.mrf.mxu0
      %v1075 = vpop.f32.mrf.mxu0
      %v1076 = vadd.f32 0.0, %v1075
      %v1077 = vpop.f32.mrf.mxu0
      %1078 = vmatprep.mubr.bf16.mxu0 0
      %1079 = vmatmul.mubr.bf16.gmra.mxu0 %v964
      %v1080 = vpop.f32.mrf.mxu0
      %v1081 = vadd.f32 0.0, %v1080
      %v1082 = vpop.f32.mrf.mxu0
      %v1083 = vpop.f32.mrf.mxu0
      %v1084 = vadd.f32 0.0, %v1083
      %v1085 = vpop.f32.mrf.mxu0
      %1086 = vmatprep.mubr.bf16.mxu0 0
      %1087 = vmatmul.mubr.bf16.gmra.mxu0 %v965
      %v1088 = vpop.f32.mrf.mxu0
      %v1089 = vadd.f32 0.0, %v1088
      %v1090 = vpop.f32.mrf.mxu0
      %v1091 = vpop.f32.mrf.mxu0
      %v1092 = vadd.f32 0.0, %v1091
      %v1093 = vpop.f32.mrf.mxu0
      %1094 = vdwg.mxu0
      %v1095 = vadd.f32 %v924, %v1065
      %v1096 = vadd.f32 %v927, %v1068
      %v1097 = vadd.f32 %v932, %v1073
      %v1098 = vadd.f32 %v935, %v1076
      %v1099 = vadd.f32 %v940, %v1081
      %v1100 = vadd.f32 %v943, %v1084
      %v1101 = vadd.f32 %v948, %v1089
      %v1102 = vadd.f32 %v951, %v1092
      %v1103 = vld [vmem:[%s486] sm:$0xff]
      %v1104 = vld [vmem:[%s486 + $0x10] sm:$0xff]
      %v1105 = vld [vmem:[%s486 + $0x20] sm:$0xff]
      %v1106 = vld [vmem:[%s486 + $0x30] sm:$0xff]
      %v1107 = vld [vmem:[%s486 + $0x40] sm:$0xff]
      %v1108 = vld [vmem:[%s486 + $0x50] sm:$0xff]
      %v1109 = vld [vmem:[%s486 + $0x60] sm:$0xff]
      %v1110 = vld [vmem:[%s486 + $0x70] sm:$0xff]
      %v1111 = vpack.c.bf16 %v1104, %v1103
      %v1112 = vpack.c.bf16 %v1106, %v1105
      %v1113 = vpack.c.bf16 %v1108, %v1107
      %v1114 = vpack.c.bf16 %v1110, %v1109
      %v1115 = vld [vmem:[%s370 + $0xc0] sm:$0xf]
      %v1116 = vld [vmem:[%s370 + $0xc4] sm:$0xf]
      %v1117 = vld [vmem:[%s370 + $0xc8] sm:$0xf]
      %v1118 = vld [vmem:[%s370 + $0xcc] sm:$0xf]
      %v1119 = vld [vmem:[%s370 + $0xd0] sm:$0xf]
      %v1120 = vld [vmem:[%s370 + $0xd4] sm:$0xf]
      %v1121 = vld [vmem:[%s370 + $0xd8] sm:$0xf]
      %v1122 = vld [vmem:[%s370 + $0xdc] sm:$0xf]
      %v1123 = vld [vmem:[%s370 + $0xe0] sm:$0xf]
      %v1124 = vld [vmem:[%s370 + $0xe4] sm:$0xf]
      %v1125 = vld [vmem:[%s370 + $0xe8] sm:$0xf]
      %v1126 = vld [vmem:[%s370 + $0xec] sm:$0xf]
      %v1127 = vld [vmem:[%s370 + $0xf0] sm:$0xf]
      %v1128 = vld [vmem:[%s370 + $0xf4] sm:$0xf]
      %v1129 = vld [vmem:[%s370 + $0xf8] sm:$0xf]
      %v1130 = vld [vmem:[%s370 + $0xfc] sm:$0xf]
      %v1147 = vunpack.c.l.b16 %v1115
      %v1148 = vunpack.c.l.b16 %v1116
      %v1149 = vunpack.c.l.b16 %v1117
      %v1150 = vunpack.c.l.b16 %v1118
      %v1151 = vunpack.c.l.b16 %v1119
      %v1152 = vunpack.c.l.b16 %v1120
      %v1153 = vunpack.c.l.b16 %v1121
      %v1154 = vunpack.c.l.b16 %v1122
      %v1155 = vunpack.c.l.b16 %v1123
      %v1156 = vunpack.c.l.b16 %v1124
      %v1157 = vunpack.c.l.b16 %v1125
      %v1158 = vunpack.c.l.b16 %v1126
      %v1159 = vunpack.c.l.b16 %v1127
      %v1160 = vunpack.c.l.b16 %v1128
      %v1161 = vunpack.c.l.b16 %v1129
      %v1162 = vunpack.c.l.b16 %v1130
      %v1163 = vpack.c.b16 %v1148, %v1147
      %v1164 = vpack.c.b16 %v1150, %v1149
      %v1165 = vpack.c.b16 %v1152, %v1151
      %v1166 = vpack.c.b16 %v1154, %v1153
      %v1167 = vpack.c.b16 %v1156, %v1155
      %v1168 = vpack.c.b16 %v1158, %v1157
      %v1169 = vpack.c.b16 %v1160, %v1159
      %v1170 = vpack.c.b16 %v1162, %v1161
      %1179 = vmatprep.subr.bf16.mxu0 0
      %1180 = vmatpush1.bf16.msra.mxu0 %v1170
      %1181 = vmatprep.subr.bf16.mxu0 0
      %1182 = vmatpush1.bf16.msra.mxu0 %v1169
      %1183 = vmatprep.subr.bf16.mxu0 0
      %1184 = vmatpush1.bf16.msra.mxu0 %v1168
      %1185 = vmatprep.subr.bf16.mxu0 0
      %1186 = vmatpush1.bf16.msra.mxu0 %v1167
      %1187 = vmatprep.subr.bf16.mxu0 0
      %1188 = vmatpush1.bf16.msra.mxu0 %v1166
      %1189 = vmatprep.subr.bf16.mxu0 0
      %1190 = vmatpush1.bf16.msra.mxu0 %v1165
      %1191 = vmatprep.subr.bf16.mxu0 0
      %1192 = vmatpush1.bf16.msra.mxu0 %v1164
      %1193 = vmatprep.subr.bf16.mxu0 0
      %1194 = vmatpush1.bf16.msra.mxu0 %v1163
      %1195 = vmatprep.subr.bf16.mxu0 0
      %1196 = vmatpush2.bf16.msra.mxu0 0
      %1197 = vmatprep.subr.bf16.mxu0 0
      %1198 = vmatpush2.bf16.msra.mxu0 0
      %1199 = vmatprep.subr.bf16.mxu0 0
      %1200 = vmatpush2.bf16.msra.mxu0 0
      %1201 = vmatprep.subr.bf16.mxu0 0
      %1202 = vmatpush2.bf16.msra.mxu0 0
      %1203 = vmatprep.subr.bf16.mxu0 0
      %1204 = vmatpush2.bf16.msra.mxu0 0
      %1205 = vmatprep.subr.bf16.mxu0 0
      %1206 = vmatpush2.bf16.msra.mxu0 0
      %1207 = vmatprep.subr.bf16.mxu0 0
      %1208 = vmatpush2.bf16.msra.mxu0 0
      %1209 = vmatprep.subr.bf16.mxu0 0
      %1210 = vmatpush2.bf16.msra.mxu0 0
      %1211 = vmatprep.mubr.bf16.mxu0 0
      %1212 = vmatmul.mubr.bf16.gmra.mxu0 %v1111
      %v1213 = vpop.f32.mrf.mxu0
      %v1214 = vadd.f32 0.0, %v1213
      %v1215 = vpop.f32.mrf.mxu0
      %v1216 = vpop.f32.mrf.mxu0
      %v1217 = vadd.f32 0.0, %v1216
      %v1218 = vpop.f32.mrf.mxu0
      %1219 = vmatprep.mubr.bf16.mxu0 0
      %1220 = vmatmul.mubr.bf16.gmra.mxu0 %v1112
      %v1221 = vpop.f32.mrf.mxu0
      %v1222 = vadd.f32 0.0, %v1221
      %v1223 = vpop.f32.mrf.mxu0
      %v1224 = vpop.f32.mrf.mxu0
      %v1225 = vadd.f32 0.0, %v1224
      %v1226 = vpop.f32.mrf.mxu0
      %1227 = vmatprep.mubr.bf16.mxu0 0
      %1228 = vmatmul.mubr.bf16.gmra.mxu0 %v1113
      %v1229 = vpop.f32.mrf.mxu0
      %v1230 = vadd.f32 0.0, %v1229
      %v1231 = vpop.f32.mrf.mxu0
      %v1232 = vpop.f32.mrf.mxu0
      %v1233 = vadd.f32 0.0, %v1232
      %v1234 = vpop.f32.mrf.mxu0
      %1235 = vmatprep.mubr.bf16.mxu0 0
      %1236 = vmatmul.mubr.bf16.gmra.mxu0 %v1114
      %v1237 = vpop.f32.mrf.mxu0
      %v1238 = vadd.f32 0.0, %v1237
      %v1239 = vpop.f32.mrf.mxu0
      %v1240 = vpop.f32.mrf.mxu0
      %v1241 = vadd.f32 0.0, %v1240
      %v1242 = vpop.f32.mrf.mxu0
      %1243 = vdwg.mxu0
      %v1244 = vadd.f32 %v1095, %v1214
      %v1245 = vadd.f32 %v1096, %v1217
      %v1246 = vadd.f32 %v1097, %v1222
      %v1247 = vadd.f32 %v1098, %v1225
      %v1248 = vadd.f32 %v1099, %v1230
      %v1249 = vadd.f32 %v1100, %v1233
      %v1250 = vadd.f32 %v1101, %v1238
      %v1251 = vadd.f32 %v1102, %v1241
      %v1252 = vld [vmem:[%s411 + $0x1] sm:$0xff]
      %v1253 = vld [vmem:[%s411 + $0x11] sm:$0xff]
      %v1254 = vld [vmem:[%s411 + $0x21] sm:$0xff]
      %v1255 = vld [vmem:[%s411 + $0x31] sm:$0xff]
      %v1256 = vld [vmem:[%s411 + $0x41] sm:$0xff]
      %v1257 = vld [vmem:[%s411 + $0x51] sm:$0xff]
      %v1258 = vld [vmem:[%s411 + $0x61] sm:$0xff]
      %v1259 = vld [vmem:[%s411 + $0x71] sm:$0xff]
      %v1260 = vpack.c.bf16 %v1253, %v1252
      %v1261 = vpack.c.bf16 %v1255, %v1254
      %v1262 = vpack.c.bf16 %v1257, %v1256
      %v1263 = vpack.c.bf16 %v1259, %v1258
      %v1264 = vld [vmem:[%s370 + $0x100] sm:$0xf]
      %v1265 = vld [vmem:[%s370 + $0x104] sm:$0xf]
      %v1266 = vld [vmem:[%s370 + $0x108] sm:$0xf]
      %v1267 = vld [vmem:[%s370 + $0x10c] sm:$0xf]
      %v1268 = vld [vmem:[%s370 + $0x110] sm:$0xf]
      %v1269 = vld [vmem:[%s370 + $0x114] sm:$0xf]
      %v1270 = vld [vmem:[%s370 + $0x118] sm:$0xf]
      %v1271 = vld [vmem:[%s370 + $0x11c] sm:$0xf]
      %v1272 = vld [vmem:[%s370 + $0x120] sm:$0xf]
      %v1273 = vld [vmem:[%s370 + $0x124] sm:$0xf]
      %v1274 = vld [vmem:[%s370 + $0x128] sm:$0xf]
      %v1275 = vld [vmem:[%s370 + $0x12c] sm:$0xf]
      %v1276 = vld [vmem:[%s370 + $0x130] sm:$0xf]
      %v1277 = vld [vmem:[%s370 + $0x134] sm:$0xf]
      %v1278 = vld [vmem:[%s370 + $0x138] sm:$0xf]
      %v1279 = vld [vmem:[%s370 + $0x13c] sm:$0xf]
      %v1296 = vunpack.c.l.b16 %v1264
      %v1297 = vunpack.c.l.b16 %v1265
      %v1298 = vunpack.c.l.b16 %v1266
      %v1299 = vunpack.c.l.b16 %v1267
      %v1300 = vunpack.c.l.b16 %v1268
      %v1301 = vunpack.c.l.b16 %v1269
      %v1302 = vunpack.c.l.b16 %v1270
      %v1303 = vunpack.c.l.b16 %v1271
      %v1304 = vunpack.c.l.b16 %v1272
      %v1305 = vunpack.c.l.b16 %v1273
      %v1306 = vunpack.c.l.b16 %v1274
      %v1307 = vunpack.c.l.b16 %v1275
      %v1308 = vunpack.c.l.b16 %v1276
      %v1309 = vunpack.c.l.b16 %v1277
      %v1310 = vunpack.c.l.b16 %v1278
      %v1311 = vunpack.c.l.b16 %v1279
      %v1312 = vpack.c.b16 %v1297, %v1296
      %v1313 = vpack.c.b16 %v1299, %v1298
      %v1314 = vpack.c.b16 %v1301, %v1300
      %v1315 = vpack.c.b16 %v1303, %v1302
      %v1316 = vpack.c.b16 %v1305, %v1304
      %v1317 = vpack.c.b16 %v1307, %v1306
      %v1318 = vpack.c.b16 %v1309, %v1308
      %v1319 = vpack.c.b16 %v1311, %v1310
      %1328 = vmatprep.subr.bf16.mxu0 0
      %1329 = vmatpush1.bf16.msra.mxu0 %v1319
      %1330 = vmatprep.subr.bf16.mxu0 0
      %1331 = vmatpush1.bf16.msra.mxu0 %v1318
      %1332 = vmatprep.subr.bf16.mxu0 0
      %1333 = vmatpush1.bf16.msra.mxu0 %v1317
      %1334 = vmatprep.subr.bf16.mxu0 0
      %1335 = vmatpush1.bf16.msra.mxu0 %v1316
      %1336 = vmatprep.subr.bf16.mxu0 0
      %1337 = vmatpush1.bf16.msra.mxu0 %v1315
      %1338 = vmatprep.subr.bf16.mxu0 0
      %1339 = vmatpush1.bf16.msra.mxu0 %v1314
      %1340 = vmatprep.subr.bf16.mxu0 0
      %1341 = vmatpush1.bf16.msra.mxu0 %v1313
      %1342 = vmatprep.subr.bf16.mxu0 0
      %1343 = vmatpush1.bf16.msra.mxu0 %v1312
      %1344 = vmatprep.subr.bf16.mxu0 0
      %1345 = vmatpush2.bf16.msra.mxu0 0
      %1346 = vmatprep.subr.bf16.mxu0 0
      %1347 = vmatpush2.bf16.msra.mxu0 0
      %1348 = vmatprep.subr.bf16.mxu0 0
      %1349 = vmatpush2.bf16.msra.mxu0 0
      %1350 = vmatprep.subr.bf16.mxu0 0
      %1351 = vmatpush2.bf16.msra.mxu0 0
      %1352 = vmatprep.subr.bf16.mxu0 0
      %1353 = vmatpush2.bf16.msra.mxu0 0
      %1354 = vmatprep.subr.bf16.mxu0 0
      %1355 = vmatpush2.bf16.msra.mxu0 0
      %1356 = vmatprep.subr.bf16.mxu0 0
      %1357 = vmatpush2.bf16.msra.mxu0 0
      %1358 = vmatprep.subr.bf16.mxu0 0
      %1359 = vmatpush2.bf16.msra.mxu0 0
      %1360 = vmatprep.mubr.bf16.mxu0 0
      %1361 = vmatmul.mubr.bf16.gmra.mxu0 %v1260
      %v1362 = vpop.f32.mrf.mxu0
      %v1363 = vadd.f32 0.0, %v1362
      %v1364 = vpop.f32.mrf.mxu0
      %v1365 = vpop.f32.mrf.mxu0
      %v1366 = vadd.f32 0.0, %v1365
      %v1367 = vpop.f32.mrf.mxu0
      %1368 = vmatprep.mubr.bf16.mxu0 0
      %1369 = vmatmul.mubr.bf16.gmra.mxu0 %v1261
      %v1370 = vpop.f32.mrf.mxu0
      %v1371 = vadd.f32 0.0, %v1370
      %v1372 = vpop.f32.mrf.mxu0
      %v1373 = vpop.f32.mrf.mxu0
      %v1374 = vadd.f32 0.0, %v1373
      %v1375 = vpop.f32.mrf.mxu0
      %1376 = vmatprep.mubr.bf16.mxu0 0
      %1377 = vmatmul.mubr.bf16.gmra.mxu0 %v1262
      %v1378 = vpop.f32.mrf.mxu0
      %v1379 = vadd.f32 0.0, %v1378
      %v1380 = vpop.f32.mrf.mxu0
      %v1381 = vpop.f32.mrf.mxu0
      %v1382 = vadd.f32 0.0, %v1381
      %v1383 = vpop.f32.mrf.mxu0
      %1384 = vmatprep.mubr.bf16.mxu0 0
      %1385 = vmatmul.mubr.bf16.gmra.mxu0 %v1263
      %v1386 = vpop.f32.mrf.mxu0
      %v1387 = vadd.f32 0.0, %v1386
      %v1388 = vpop.f32.mrf.mxu0
      %v1389 = vpop.f32.mrf.mxu0
      %v1390 = vadd.f32 0.0, %v1389
      %v1391 = vpop.f32.mrf.mxu0
      %1392 = vdwg.mxu0
      %v1393 = vadd.f32 %v1244, %v1363
      %v1394 = vadd.f32 %v1245, %v1366
      %v1395 = vadd.f32 %v1246, %v1371
      %v1396 = vadd.f32 %v1247, %v1374
      %v1397 = vadd.f32 %v1248, %v1379
      %v1398 = vadd.f32 %v1249, %v1382
      %v1399 = vadd.f32 %v1250, %v1387
      %v1400 = vadd.f32 %v1251, %v1390
      %v1401 = vld [vmem:[%s374] sm:$0xf]
      %v1402 = vld [vmem:[%s374 + $0x4] sm:$0xf]
      %v1403 = vld [vmem:[%s374 + $0x8] sm:$0xf]
      %v1404 = vld [vmem:[%s374 + $0xc] sm:$0xf]
      %v1405 = vld [vmem:[%s374 + $0x10] sm:$0xf]
      %v1406 = vld [vmem:[%s374 + $0x14] sm:$0xf]
      %v1407 = vld [vmem:[%s374 + $0x18] sm:$0xf]
      %v1408 = vld [vmem:[%s374 + $0x1c] sm:$0xf]
      %v1409 = vld [vmem:[%s374 + $0x20] sm:$0xf]
      %v1410 = vld [vmem:[%s374 + $0x24] sm:$0xf]
      %v1411 = vld [vmem:[%s374 + $0x28] sm:$0xf]
      %v1412 = vld [vmem:[%s374 + $0x2c] sm:$0xf]
      %v1413 = vld [vmem:[%s374 + $0x30] sm:$0xf]
      %v1414 = vld [vmem:[%s374 + $0x34] sm:$0xf]
      %v1415 = vld [vmem:[%s374 + $0x38] sm:$0xf]
      %v1416 = vld [vmem:[%s374 + $0x3c] sm:$0xf]
      %v1433 = vunpack.c.l.b16 %v1401
      %v1434 = vunpack.c.l.b16 %v1402
      %v1435 = vunpack.c.l.b16 %v1403
      %v1436 = vunpack.c.l.b16 %v1404
      %v1437 = vunpack.c.l.b16 %v1405
      %v1438 = vunpack.c.l.b16 %v1406
      %v1439 = vunpack.c.l.b16 %v1407
      %v1440 = vunpack.c.l.b16 %v1408
      %v1441 = vunpack.c.l.b16 %v1409
      %v1442 = vunpack.c.l.b16 %v1410
      %v1443 = vunpack.c.l.b16 %v1411
      %v1444 = vunpack.c.l.b16 %v1412
      %v1445 = vunpack.c.l.b16 %v1413
      %v1446 = vunpack.c.l.b16 %v1414
      %v1447 = vunpack.c.l.b16 %v1415
      %v1448 = vunpack.c.l.b16 %v1416
      %v1449 = vpack.c.b16 %v1434, %v1433
      %v1450 = vpack.c.b16 %v1436, %v1435
      %v1451 = vpack.c.b16 %v1438, %v1437
      %v1452 = vpack.c.b16 %v1440, %v1439
      %v1453 = vpack.c.b16 %v1442, %v1441
      %v1454 = vpack.c.b16 %v1444, %v1443
      %v1455 = vpack.c.b16 %v1446, %v1445
      %v1456 = vpack.c.b16 %v1448, %v1447
      %1465 = vmatprep.subr.bf16.mxu0 0
      %1466 = vmatpush1.bf16.msra.mxu0 %v1456
      %1467 = vmatprep.subr.bf16.mxu0 0
      %1468 = vmatpush1.bf16.msra.mxu0 %v1455
      %1469 = vmatprep.subr.bf16.mxu0 0
      %1470 = vmatpush1.bf16.msra.mxu0 %v1454
      %1471 = vmatprep.subr.bf16.mxu0 0
      %1472 = vmatpush1.bf16.msra.mxu0 %v1453
      %1473 = vmatprep.subr.bf16.mxu0 0
      %1474 = vmatpush1.bf16.msra.mxu0 %v1452
      %1475 = vmatprep.subr.bf16.mxu0 0
      %1476 = vmatpush1.bf16.msra.mxu0 %v1451
      %1477 = vmatprep.subr.bf16.mxu0 0
      %1478 = vmatpush1.bf16.msra.mxu0 %v1450
      %1479 = vmatprep.subr.bf16.mxu0 0
      %1480 = vmatpush1.bf16.msra.mxu0 %v1449
      %1481 = vmatprep.subr.bf16.mxu0 0
      %1482 = vmatpush2.bf16.msra.mxu0 0
      %1483 = vmatprep.subr.bf16.mxu0 0
      %1484 = vmatpush2.bf16.msra.mxu0 0
      %1485 = vmatprep.subr.bf16.mxu0 0
      %1486 = vmatpush2.bf16.msra.mxu0 0
      %1487 = vmatprep.subr.bf16.mxu0 0
      %1488 = vmatpush2.bf16.msra.mxu0 0
      %1489 = vmatprep.subr.bf16.mxu0 0
      %1490 = vmatpush2.bf16.msra.mxu0 0
      %1491 = vmatprep.subr.bf16.mxu0 0
      %1492 = vmatpush2.bf16.msra.mxu0 0
      %1493 = vmatprep.subr.bf16.mxu0 0
      %1494 = vmatpush2.bf16.msra.mxu0 0
      %1495 = vmatprep.subr.bf16.mxu0 0
      %1496 = vmatpush2.bf16.msra.mxu0 0
      %1497 = vmatprep.mubr.bf16.mxu0 0
      %1498 = vmatmul.mubr.bf16.gmra.mxu0 %v1260
      %v1499 = vpop.f32.mrf.mxu0
      %v1500 = vadd.f32 0.0, %v1499
      %v1501 = vpop.f32.mrf.mxu0
      %v1502 = vpop.f32.mrf.mxu0
      %v1503 = vadd.f32 0.0, %v1502
      %v1504 = vpop.f32.mrf.mxu0
      %1505 = vmatprep.mubr.bf16.mxu0 0
      %1506 = vmatmul.mubr.bf16.gmra.mxu0 %v1261
      %v1507 = vpop.f32.mrf.mxu0
      %v1508 = vadd.f32 0.0, %v1507
      %v1509 = vpop.f32.mrf.mxu0
      %v1510 = vpop.f32.mrf.mxu0
      %v1511 = vadd.f32 0.0, %v1510
      %v1512 = vpop.f32.mrf.mxu0
      %1513 = vmatprep.mubr.bf16.mxu0 0
      %1514 = vmatmul.mubr.bf16.gmra.mxu0 %v1262
      %v1515 = vpop.f32.mrf.mxu0
      %v1516 = vadd.f32 0.0, %v1515
      %v1517 = vpop.f32.mrf.mxu0
      %v1518 = vpop.f32.mrf.mxu0
      %v1519 = vadd.f32 0.0, %v1518
      %v1520 = vpop.f32.mrf.mxu0
      %1521 = vmatprep.mubr.bf16.mxu0 0
      %1522 = vmatmul.mubr.bf16.gmra.mxu0 %v1263
      %v1523 = vpop.f32.mrf.mxu0
      %v1524 = vadd.f32 0.0, %v1523
      %v1525 = vpop.f32.mrf.mxu0
      %v1526 = vpop.f32.mrf.mxu0
      %v1527 = vadd.f32 0.0, %v1526
      %v1528 = vpop.f32.mrf.mxu0
      %1529 = vdwg.mxu0
      %1530 = vst [vmem:[%s390] sm:$0xff] %v1500
      %1531 = vst [vmem:[%s390 + $0x8] sm:$0xff] %v1503
      %1532 = vst [vmem:[%s390 + $0x10] sm:$0xff] %v1508
      %1533 = vst [vmem:[%s390 + $0x18] sm:$0xff] %v1511
      %1534 = vst [vmem:[%s390 + $0x20] sm:$0xff] %v1516
      %1535 = vst [vmem:[%s390 + $0x28] sm:$0xff] %v1519
      %1536 = vst [vmem:[%s390 + $0x30] sm:$0xff] %v1524
      %1537 = vst [vmem:[%s390 + $0x38] sm:$0xff] %v1527
      %v1538 = vld [vmem:[%s486 + $0x1] sm:$0xff]
      %v1539 = vld [vmem:[%s486 + $0x11] sm:$0xff]
      %v1540 = vld [vmem:[%s486 + $0x21] sm:$0xff]
      %v1541 = vld [vmem:[%s486 + $0x31] sm:$0xff]
      %v1542 = vld [vmem:[%s486 + $0x41] sm:$0xff]
      %v1543 = vld [vmem:[%s486 + $0x51] sm:$0xff]
      %v1544 = vld [vmem:[%s486 + $0x61] sm:$0xff]
      %v1545 = vld [vmem:[%s486 + $0x71] sm:$0xff]
      %v1546 = vpack.c.bf16 %v1539, %v1538
      %v1547 = vpack.c.bf16 %v1541, %v1540
      %v1548 = vpack.c.bf16 %v1543, %v1542
      %v1549 = vpack.c.bf16 %v1545, %v1544
      %v1550 = vld [vmem:[%s370 + $0x140] sm:$0xf]
      %v1551 = vld [vmem:[%s370 + $0x144] sm:$0xf]
      %v1552 = vld [vmem:[%s370 + $0x148] sm:$0xf]
      %v1553 = vld [vmem:[%s370 + $0x14c] sm:$0xf]
      %v1554 = vld [vmem:[%s370 + $0x150] sm:$0xf]
      %v1555 = vld [vmem:[%s370 + $0x154] sm:$0xf]
      %v1556 = vld [vmem:[%s370 + $0x158] sm:$0xf]
      %v1557 = vld [vmem:[%s370 + $0x15c] sm:$0xf]
      %v1558 = vld [vmem:[%s370 + $0x160] sm:$0xf]
      %v1559 = vld [vmem:[%s370 + $0x164] sm:$0xf]
      %v1560 = vld [vmem:[%s370 + $0x168] sm:$0xf]
      %v1561 = vld [vmem:[%s370 + $0x16c] sm:$0xf]
      %v1562 = vld [vmem:[%s370 + $0x170] sm:$0xf]
      %v1563 = vld [vmem:[%s370 + $0x174] sm:$0xf]
      %v1564 = vld [vmem:[%s370 + $0x178] sm:$0xf]
      %v1565 = vld [vmem:[%s370 + $0x17c] sm:$0xf]
      %v1582 = vunpack.c.l.b16 %v1550
      %v1583 = vunpack.c.l.b16 %v1551
      %v1584 = vunpack.c.l.b16 %v1552
      %v1585 = vunpack.c.l.b16 %v1553
      %v1586 = vunpack.c.l.b16 %v1554
      %v1587 = vunpack.c.l.b16 %v1555
      %v1588 = vunpack.c.l.b16 %v1556
      %v1589 = vunpack.c.l.b16 %v1557
      %v1590 = vunpack.c.l.b16 %v1558
      %v1591 = vunpack.c.l.b16 %v1559
      %v1592 = vunpack.c.l.b16 %v1560
      %v1593 = vunpack.c.l.b16 %v1561
      %v1594 = vunpack.c.l.b16 %v1562
      %v1595 = vunpack.c.l.b16 %v1563
      %v1596 = vunpack.c.l.b16 %v1564
      %v1597 = vunpack.c.l.b16 %v1565
      %v1598 = vpack.c.b16 %v1583, %v1582
      %v1599 = vpack.c.b16 %v1585, %v1584
      %v1600 = vpack.c.b16 %v1587, %v1586
      %v1601 = vpack.c.b16 %v1589, %v1588
      %v1602 = vpack.c.b16 %v1591, %v1590
      %v1603 = vpack.c.b16 %v1593, %v1592
      %v1604 = vpack.c.b16 %v1595, %v1594
      %v1605 = vpack.c.b16 %v1597, %v1596
      %1614 = vmatprep.subr.bf16.mxu0 0
      %1615 = vmatpush1.bf16.msra.mxu0 %v1605
      %1616 = vmatprep.subr.bf16.mxu0 0
      %1617 = vmatpush1.bf16.msra.mxu0 %v1604
      %1618 = vmatprep.subr.bf16.mxu0 0
      %1619 = vmatpush1.bf16.msra.mxu0 %v1603
      %1620 = vmatprep.subr.bf16.mxu0 0
      %1621 = vmatpush1.bf16.msra.mxu0 %v1602
      %1622 = vmatprep.subr.bf16.mxu0 0
      %1623 = vmatpush1.bf16.msra.mxu0 %v1601
      %1624 = vmatprep.subr.bf16.mxu0 0
      %1625 = vmatpush1.bf16.msra.mxu0 %v1600
      %1626 = vmatprep.subr.bf16.mxu0 0
      %1627 = vmatpush1.bf16.msra.mxu0 %v1599
      %1628 = vmatprep.subr.bf16.mxu0 0
      %1629 = vmatpush1.bf16.msra.mxu0 %v1598
      %1630 = vmatprep.subr.bf16.mxu0 0
      %1631 = vmatpush2.bf16.msra.mxu0 0
      %1632 = vmatprep.subr.bf16.mxu0 0
      %1633 = vmatpush2.bf16.msra.mxu0 0
      %1634 = vmatprep.subr.bf16.mxu0 0
      %1635 = vmatpush2.bf16.msra.mxu0 0
      %1636 = vmatprep.subr.bf16.mxu0 0
      %1637 = vmatpush2.bf16.msra.mxu0 0
      %1638 = vmatprep.subr.bf16.mxu0 0
      %1639 = vmatpush2.bf16.msra.mxu0 0
      %1640 = vmatprep.subr.bf16.mxu0 0
      %1641 = vmatpush2.bf16.msra.mxu0 0
      %1642 = vmatprep.subr.bf16.mxu0 0
      %1643 = vmatpush2.bf16.msra.mxu0 0
      %1644 = vmatprep.subr.bf16.mxu0 0
      %1645 = vmatpush2.bf16.msra.mxu0 0
      %1646 = vmatprep.mubr.bf16.mxu0 0
      %1647 = vmatmul.mubr.bf16.gmra.mxu0 %v1546
      %v1648 = vpop.f32.mrf.mxu0
      %v1649 = vadd.f32 0.0, %v1648
      %v1650 = vpop.f32.mrf.mxu0
      %v1651 = vpop.f32.mrf.mxu0
      %v1652 = vadd.f32 0.0, %v1651
      %v1653 = vpop.f32.mrf.mxu0
      %1654 = vmatprep.mubr.bf16.mxu0 0
      %1655 = vmatmul.mubr.bf16.gmra.mxu0 %v1547
      %v1656 = vpop.f32.mrf.mxu0
      %v1657 = vadd.f32 0.0, %v1656
      %v1658 = vpop.f32.mrf.mxu0
      %v1659 = vpop.f32.mrf.mxu0
      %v1660 = vadd.f32 0.0, %v1659
      %v1661 = vpop.f32.mrf.mxu0
      %1662 = vmatprep.mubr.bf16.mxu0 0
      %1663 = vmatmul.mubr.bf16.gmra.mxu0 %v1548
      %v1664 = vpop.f32.mrf.mxu0
      %v1665 = vadd.f32 0.0, %v1664
      %v1666 = vpop.f32.mrf.mxu0
      %v1667 = vpop.f32.mrf.mxu0
      %v1668 = vadd.f32 0.0, %v1667
      %v1669 = vpop.f32.mrf.mxu0
      %1670 = vmatprep.mubr.bf16.mxu0 0
      %1671 = vmatmul.mubr.bf16.gmra.mxu0 %v1549
      %v1672 = vpop.f32.mrf.mxu0
      %v1673 = vadd.f32 0.0, %v1672
      %v1674 = vpop.f32.mrf.mxu0
      %v1675 = vpop.f32.mrf.mxu0
      %v1676 = vadd.f32 0.0, %v1675
      %v1677 = vpop.f32.mrf.mxu0
      %1678 = vdwg.mxu0
      %v1679 = vadd.f32 %v1393, %v1649
      %v1680 = vadd.f32 %v1394, %v1652
      %v1681 = vadd.f32 %v1395, %v1657
      %v1682 = vadd.f32 %v1396, %v1660
      %v1683 = vadd.f32 %v1397, %v1665
      %v1684 = vadd.f32 %v1398, %v1668
      %v1685 = vadd.f32 %v1399, %v1673
      %v1686 = vadd.f32 %v1400, %v1676
      %v1687 = vld [vmem:[%s614] sm:$0xff]
      %v1688 = vld [vmem:[%s614 + $0x10] sm:$0xff]
      %v1689 = vld [vmem:[%s614 + $0x20] sm:$0xff]
      %v1690 = vld [vmem:[%s614 + $0x30] sm:$0xff]
      %v1691 = vld [vmem:[%s614 + $0x40] sm:$0xff]
      %v1692 = vld [vmem:[%s614 + $0x50] sm:$0xff]
      %v1693 = vld [vmem:[%s614 + $0x60] sm:$0xff]
      %v1694 = vld [vmem:[%s614 + $0x70] sm:$0xff]
      %v1695 = vpack.c.bf16 %v1688, %v1687
      %v1696 = vpack.c.bf16 %v1690, %v1689
      %v1697 = vpack.c.bf16 %v1692, %v1691
      %v1698 = vpack.c.bf16 %v1694, %v1693
      %v1699 = vld [vmem:[%s370 + $0x180] sm:$0xf]
      %v1700 = vld [vmem:[%s370 + $0x184] sm:$0xf]
      %v1701 = vld [vmem:[%s370 + $0x188] sm:$0xf]
      %v1702 = vld [vmem:[%s370 + $0x18c] sm:$0xf]
      %v1703 = vld [vmem:[%s370 + $0x190] sm:$0xf]
      %v1704 = vld [vmem:[%s370 + $0x194] sm:$0xf]
      %v1705 = vld [vmem:[%s370 + $0x198] sm:$0xf]
      %v1706 = vld [vmem:[%s370 + $0x19c] sm:$0xf]
      %v1707 = vld [vmem:[%s370 + $0x1a0] sm:$0xf]
      %v1708 = vld [vmem:[%s370 + $0x1a4] sm:$0xf]
      %v1709 = vld [vmem:[%s370 + $0x1a8] sm:$0xf]
      %v1710 = vld [vmem:[%s370 + $0x1ac] sm:$0xf]
      %v1711 = vld [vmem:[%s370 + $0x1b0] sm:$0xf]
      %v1712 = vld [vmem:[%s370 + $0x1b4] sm:$0xf]
      %v1713 = vld [vmem:[%s370 + $0x1b8] sm:$0xf]
      %v1714 = vld [vmem:[%s370 + $0x1bc] sm:$0xf]
      %v1731 = vunpack.c.l.b16 %v1699
      %v1732 = vunpack.c.l.b16 %v1700
      %v1733 = vunpack.c.l.b16 %v1701
      %v1734 = vunpack.c.l.b16 %v1702
      %v1735 = vunpack.c.l.b16 %v1703
      %v1736 = vunpack.c.l.b16 %v1704
      %v1737 = vunpack.c.l.b16 %v1705
      %v1738 = vunpack.c.l.b16 %v1706
      %v1739 = vunpack.c.l.b16 %v1707
      %v1740 = vunpack.c.l.b16 %v1708
      %v1741 = vunpack.c.l.b16 %v1709
      %v1742 = vunpack.c.l.b16 %v1710
      %v1743 = vunpack.c.l.b16 %v1711
      %v1744 = vunpack.c.l.b16 %v1712
      %v1745 = vunpack.c.l.b16 %v1713
      %v1746 = vunpack.c.l.b16 %v1714
      %v1747 = vpack.c.b16 %v1732, %v1731
      %v1748 = vpack.c.b16 %v1734, %v1733
      %v1749 = vpack.c.b16 %v1736, %v1735
      %v1750 = vpack.c.b16 %v1738, %v1737
      %v1751 = vpack.c.b16 %v1740, %v1739
      %v1752 = vpack.c.b16 %v1742, %v1741
      %v1753 = vpack.c.b16 %v1744, %v1743
      %v1754 = vpack.c.b16 %v1746, %v1745
      %1763 = vmatprep.subr.bf16.mxu0 0
      %1764 = vmatpush1.bf16.msra.mxu0 %v1754
      %1765 = vmatprep.subr.bf16.mxu0 0
      %1766 = vmatpush1.bf16.msra.mxu0 %v1753
      %1767 = vmatprep.subr.bf16.mxu0 0
      %1768 = vmatpush1.bf16.msra.mxu0 %v1752
      %1769 = vmatprep.subr.bf16.mxu0 0
      %1770 = vmatpush1.bf16.msra.mxu0 %v1751
      %1771 = vmatprep.subr.bf16.mxu0 0
      %1772 = vmatpush1.bf16.msra.mxu0 %v1750
      %1773 = vmatprep.subr.bf16.mxu0 0
      %1774 = vmatpush1.bf16.msra.mxu0 %v1749
      %1775 = vmatprep.subr.bf16.mxu0 0
      %1776 = vmatpush1.bf16.msra.mxu0 %v1748
      %1777 = vmatprep.subr.bf16.mxu0 0
      %1778 = vmatpush1.bf16.msra.mxu0 %v1747
      %1779 = vmatprep.subr.bf16.mxu0 0
      %1780 = vmatpush2.bf16.msra.mxu0 0
      %1781 = vmatprep.subr.bf16.mxu0 0
      %1782 = vmatpush2.bf16.msra.mxu0 0
      %1783 = vmatprep.subr.bf16.mxu0 0
      %1784 = vmatpush2.bf16.msra.mxu0 0
      %1785 = vmatprep.subr.bf16.mxu0 0
      %1786 = vmatpush2.bf16.msra.mxu0 0
      %1787 = vmatprep.subr.bf16.mxu0 0
      %1788 = vmatpush2.bf16.msra.mxu0 0
      %1789 = vmatprep.subr.bf16.mxu0 0
      %1790 = vmatpush2.bf16.msra.mxu0 0
      %1791 = vmatprep.subr.bf16.mxu0 0
      %1792 = vmatpush2.bf16.msra.mxu0 0
      %1793 = vmatprep.subr.bf16.mxu0 0
      %1794 = vmatpush2.bf16.msra.mxu0 0
      %1795 = vmatprep.mubr.bf16.mxu0 0
      %1796 = vmatmul.mubr.bf16.gmra.mxu0 %v1695
      %v1797 = vpop.f32.mrf.mxu0
      %v1798 = vadd.f32 0.0, %v1797
      %v1799 = vpop.f32.mrf.mxu0
      %v1800 = vpop.f32.mrf.mxu0
      %v1801 = vadd.f32 0.0, %v1800
      %v1802 = vpop.f32.mrf.mxu0
      %1803 = vmatprep.mubr.bf16.mxu0 0
      %1804 = vmatmul.mubr.bf16.gmra.mxu0 %v1696
      %v1805 = vpop.f32.mrf.mxu0
      %v1806 = vadd.f32 0.0, %v1805
      %v1807 = vpop.f32.mrf.mxu0
      %v1808 = vpop.f32.mrf.mxu0
      %v1809 = vadd.f32 0.0, %v1808
      %v1810 = vpop.f32.mrf.mxu0
      %1811 = vmatprep.mubr.bf16.mxu0 0
      %1812 = vmatmul.mubr.bf16.gmra.mxu0 %v1697
      %v1813 = vpop.f32.mrf.mxu0
      %v1814 = vadd.f32 0.0, %v1813
      %v1815 = vpop.f32.mrf.mxu0
      %v1816 = vpop.f32.mrf.mxu0
      %v1817 = vadd.f32 0.0, %v1816
      %v1818 = vpop.f32.mrf.mxu0
      %1819 = vmatprep.mubr.bf16.mxu0 0
      %1820 = vmatmul.mubr.bf16.gmra.mxu0 %v1698
      %v1821 = vpop.f32.mrf.mxu0
      %v1822 = vadd.f32 0.0, %v1821
      %v1823 = vpop.f32.mrf.mxu0
      %v1824 = vpop.f32.mrf.mxu0
      %v1825 = vadd.f32 0.0, %v1824
      %v1826 = vpop.f32.mrf.mxu0
      %1827 = vdwg.mxu0
      %v1828 = vadd.f32 %v1679, %v1798
      %v1829 = vadd.f32 %v1680, %v1801
      %v1830 = vadd.f32 %v1681, %v1806
      %v1831 = vadd.f32 %v1682, %v1809
      %v1832 = vadd.f32 %v1683, %v1814
      %v1833 = vadd.f32 %v1684, %v1817
      %v1834 = vadd.f32 %v1685, %v1822
      %v1835 = vadd.f32 %v1686, %v1825
      %v1836 = vld [vmem:[%s550 + $0x1] sm:$0xff]
      %v1837 = vld [vmem:[%s550 + $0x11] sm:$0xff]
      %v1838 = vld [vmem:[%s550 + $0x21] sm:$0xff]
      %v1839 = vld [vmem:[%s550 + $0x31] sm:$0xff]
      %v1840 = vld [vmem:[%s550 + $0x41] sm:$0xff]
      %v1841 = vld [vmem:[%s550 + $0x51] sm:$0xff]
      %v1842 = vld [vmem:[%s550 + $0x61] sm:$0xff]
      %v1843 = vld [vmem:[%s550 + $0x71] sm:$0xff]
      %v1844 = vpack.c.bf16 %v1837, %v1836
      %v1845 = vpack.c.bf16 %v1839, %v1838
      %v1846 = vpack.c.bf16 %v1841, %v1840
      %v1847 = vpack.c.bf16 %v1843, %v1842
      %v1848 = vld [vmem:[%s370 + $0x1c0] sm:$0xf]
      %v1849 = vld [vmem:[%s370 + $0x1c4] sm:$0xf]
      %v1850 = vld [vmem:[%s370 + $0x1c8] sm:$0xf]
      %v1851 = vld [vmem:[%s370 + $0x1cc] sm:$0xf]
      %v1852 = vld [vmem:[%s370 + $0x1d0] sm:$0xf]
      %v1853 = vld [vmem:[%s370 + $0x1d4] sm:$0xf]
      %v1854 = vld [vmem:[%s370 + $0x1d8] sm:$0xf]
      %v1855 = vld [vmem:[%s370 + $0x1dc] sm:$0xf]
      %v1856 = vld [vmem:[%s370 + $0x1e0] sm:$0xf]
      %v1857 = vld [vmem:[%s370 + $0x1e4] sm:$0xf]
      %v1858 = vld [vmem:[%s370 + $0x1e8] sm:$0xf]
      %v1859 = vld [vmem:[%s370 + $0x1ec] sm:$0xf]
      %v1860 = vld [vmem:[%s370 + $0x1f0] sm:$0xf]
      %v1861 = vld [vmem:[%s370 + $0x1f4] sm:$0xf]
      %v1862 = vld [vmem:[%s370 + $0x1f8] sm:$0xf]
      %v1863 = vld [vmem:[%s370 + $0x1fc] sm:$0xf]
      %v1880 = vunpack.c.l.b16 %v1848
      %v1881 = vunpack.c.l.b16 %v1849
      %v1882 = vunpack.c.l.b16 %v1850
      %v1883 = vunpack.c.l.b16 %v1851
      %v1884 = vunpack.c.l.b16 %v1852
      %v1885 = vunpack.c.l.b16 %v1853
      %v1886 = vunpack.c.l.b16 %v1854
      %v1887 = vunpack.c.l.b16 %v1855
      %v1888 = vunpack.c.l.b16 %v1856
      %v1889 = vunpack.c.l.b16 %v1857
      %v1890 = vunpack.c.l.b16 %v1858
      %v1891 = vunpack.c.l.b16 %v1859
      %v1892 = vunpack.c.l.b16 %v1860
      %v1893 = vunpack.c.l.b16 %v1861
      %v1894 = vunpack.c.l.b16 %v1862
      %v1895 = vunpack.c.l.b16 %v1863
      %v1896 = vpack.c.b16 %v1881, %v1880
      %v1897 = vpack.c.b16 %v1883, %v1882
      %v1898 = vpack.c.b16 %v1885, %v1884
      %v1899 = vpack.c.b16 %v1887, %v1886
      %v1900 = vpack.c.b16 %v1889, %v1888
      %v1901 = vpack.c.b16 %v1891, %v1890
      %v1902 = vpack.c.b16 %v1893, %v1892
      %v1903 = vpack.c.b16 %v1895, %v1894
      %1912 = vmatprep.subr.bf16.mxu0 0
      %1913 = vmatpush1.bf16.msra.mxu0 %v1903
      %1914 = vmatprep.subr.bf16.mxu0 0
      %1915 = vmatpush1.bf16.msra.mxu0 %v1902
      %1916 = vmatprep.subr.bf16.mxu0 0
      %1917 = vmatpush1.bf16.msra.mxu0 %v1901
      %1918 = vmatprep.subr.bf16.mxu0 0
      %1919 = vmatpush1.bf16.msra.mxu0 %v1900
      %1920 = vmatprep.subr.bf16.mxu0 0
      %1921 = vmatpush1.bf16.msra.mxu0 %v1899
      %1922 = vmatprep.subr.bf16.mxu0 0
      %1923 = vmatpush1.bf16.msra.mxu0 %v1898
      %1924 = vmatprep.subr.bf16.mxu0 0
      %1925 = vmatpush1.bf16.msra.mxu0 %v1897
      %1926 = vmatprep.subr.bf16.mxu0 0
      %1927 = vmatpush1.bf16.msra.mxu0 %v1896
      %1928 = vmatprep.subr.bf16.mxu0 0
      %1929 = vmatpush2.bf16.msra.mxu0 0
      %1930 = vmatprep.subr.bf16.mxu0 0
      %1931 = vmatpush2.bf16.msra.mxu0 0
      %1932 = vmatprep.subr.bf16.mxu0 0
      %1933 = vmatpush2.bf16.msra.mxu0 0
      %1934 = vmatprep.subr.bf16.mxu0 0
      %1935 = vmatpush2.bf16.msra.mxu0 0
      %1936 = vmatprep.subr.bf16.mxu0 0
      %1937 = vmatpush2.bf16.msra.mxu0 0
      %1938 = vmatprep.subr.bf16.mxu0 0
      %1939 = vmatpush2.bf16.msra.mxu0 0
      %1940 = vmatprep.subr.bf16.mxu0 0
      %1941 = vmatpush2.bf16.msra.mxu0 0
      %1942 = vmatprep.subr.bf16.mxu0 0
      %1943 = vmatpush2.bf16.msra.mxu0 0
      %1944 = vmatprep.mubr.bf16.mxu0 0
      %1945 = vmatmul.mubr.bf16.gmra.mxu0 %v1844
      %v1946 = vpop.f32.mrf.mxu0
      %v1947 = vadd.f32 0.0, %v1946
      %v1948 = vpop.f32.mrf.mxu0
      %v1949 = vpop.f32.mrf.mxu0
      %v1950 = vadd.f32 0.0, %v1949
      %v1951 = vpop.f32.mrf.mxu0
      %1952 = vmatprep.mubr.bf16.mxu0 0
      %1953 = vmatmul.mubr.bf16.gmra.mxu0 %v1845
      %v1954 = vpop.f32.mrf.mxu0
      %v1955 = vadd.f32 0.0, %v1954
      %v1956 = vpop.f32.mrf.mxu0
      %v1957 = vpop.f32.mrf.mxu0
      %v1958 = vadd.f32 0.0, %v1957
      %v1959 = vpop.f32.mrf.mxu0
      %1960 = vmatprep.mubr.bf16.mxu0 0
      %1961 = vmatmul.mubr.bf16.gmra.mxu0 %v1846
      %v1962 = vpop.f32.mrf.mxu0
      %v1963 = vadd.f32 0.0, %v1962
      %v1964 = vpop.f32.mrf.mxu0
      %v1965 = vpop.f32.mrf.mxu0
      %v1966 = vadd.f32 0.0, %v1965
      %v1967 = vpop.f32.mrf.mxu0
      %1968 = vmatprep.mubr.bf16.mxu0 0
      %1969 = vmatmul.mubr.bf16.gmra.mxu0 %v1847
      %v1970 = vpop.f32.mrf.mxu0
      %v1971 = vadd.f32 0.0, %v1970
      %v1972 = vpop.f32.mrf.mxu0
      %v1973 = vpop.f32.mrf.mxu0
      %v1974 = vadd.f32 0.0, %v1973
      %v1975 = vpop.f32.mrf.mxu0
      %1976 = vdwg.mxu0
      %v1977 = vadd.f32 %v1828, %v1947
      %v1978 = vadd.f32 %v1829, %v1950
      %v1979 = vadd.f32 %v1830, %v1955
      %v1980 = vadd.f32 %v1831, %v1958
      %v1981 = vadd.f32 %v1832, %v1963
      %v1982 = vadd.f32 %v1833, %v1966
      %v1983 = vadd.f32 %v1834, %v1971
      %v1984 = vadd.f32 %v1835, %v1974
      %v1985 = vld [vmem:[%s614 + $0x1] sm:$0xff]
      %v1986 = vld [vmem:[%s614 + $0x11] sm:$0xff]
      %v1987 = vld [vmem:[%s614 + $0x21] sm:$0xff]
      %v1988 = vld [vmem:[%s614 + $0x31] sm:$0xff]
      %v1989 = vld [vmem:[%s614 + $0x41] sm:$0xff]
      %v1990 = vld [vmem:[%s614 + $0x51] sm:$0xff]
      %v1991 = vld [vmem:[%s614 + $0x61] sm:$0xff]
      %v1992 = vld [vmem:[%s614 + $0x71] sm:$0xff]
      %v1993 = vpack.c.bf16 %v1986, %v1985
      %v1994 = vpack.c.bf16 %v1988, %v1987
      %v1995 = vpack.c.bf16 %v1990, %v1989
      %v1996 = vpack.c.bf16 %v1992, %v1991
      %v1997 = vld [vmem:[%s370 + $0x200] sm:$0xf]
      %v1998 = vld [vmem:[%s370 + $0x204] sm:$0xf]
      %v1999 = vld [vmem:[%s370 + $0x208] sm:$0xf]
      %v2000 = vld [vmem:[%s370 + $0x20c] sm:$0xf]
      %v2001 = vld [vmem:[%s370 + $0x210] sm:$0xf]
      %v2002 = vld [vmem:[%s370 + $0x214] sm:$0xf]
      %v2003 = vld [vmem:[%s370 + $0x218] sm:$0xf]
      %v2004 = vld [vmem:[%s370 + $0x21c] sm:$0xf]
      %v2005 = vld [vmem:[%s370 + $0x220] sm:$0xf]
      %v2006 = vld [vmem:[%s370 + $0x224] sm:$0xf]
      %v2007 = vld [vmem:[%s370 + $0x228] sm:$0xf]
      %v2008 = vld [vmem:[%s370 + $0x22c] sm:$0xf]
      %v2009 = vld [vmem:[%s370 + $0x230] sm:$0xf]
      %v2010 = vld [vmem:[%s370 + $0x234] sm:$0xf]
      %v2011 = vld [vmem:[%s370 + $0x238] sm:$0xf]
      %v2012 = vld [vmem:[%s370 + $0x23c] sm:$0xf]
      %v2029 = vunpack.c.l.b16 %v1997
      %v2030 = vunpack.c.l.b16 %v1998
      %v2031 = vunpack.c.l.b16 %v1999
      %v2032 = vunpack.c.l.b16 %v2000
      %v2033 = vunpack.c.l.b16 %v2001
      %v2034 = vunpack.c.l.b16 %v2002
      %v2035 = vunpack.c.l.b16 %v2003
      %v2036 = vunpack.c.l.b16 %v2004
      %v2037 = vunpack.c.l.b16 %v2005
      %v2038 = vunpack.c.l.b16 %v2006
      %v2039 = vunpack.c.l.b16 %v2007
      %v2040 = vunpack.c.l.b16 %v2008
      %v2041 = vunpack.c.l.b16 %v2009
      %v2042 = vunpack.c.l.b16 %v2010
      %v2043 = vunpack.c.l.b16 %v2011
      %v2044 = vunpack.c.l.b16 %v2012
      %v2045 = vpack.c.b16 %v2030, %v2029
      %v2046 = vpack.c.b16 %v2032, %v2031
      %v2047 = vpack.c.b16 %v2034, %v2033
      %v2048 = vpack.c.b16 %v2036, %v2035
      %v2049 = vpack.c.b16 %v2038, %v2037
      %v2050 = vpack.c.b16 %v2040, %v2039
      %v2051 = vpack.c.b16 %v2042, %v2041
      %v2052 = vpack.c.b16 %v2044, %v2043
      %2061 = vmatprep.subr.bf16.mxu0 0
      %2062 = vmatpush1.bf16.msra.mxu0 %v2052
      %2063 = vmatprep.subr.bf16.mxu0 0
      %2064 = vmatpush1.bf16.msra.mxu0 %v2051
      %2065 = vmatprep.subr.bf16.mxu0 0
      %2066 = vmatpush1.bf16.msra.mxu0 %v2050
      %2067 = vmatprep.subr.bf16.mxu0 0
      %2068 = vmatpush1.bf16.msra.mxu0 %v2049
      %2069 = vmatprep.subr.bf16.mxu0 0
      %2070 = vmatpush1.bf16.msra.mxu0 %v2048
      %2071 = vmatprep.subr.bf16.mxu0 0
      %2072 = vmatpush1.bf16.msra.mxu0 %v2047
      %2073 = vmatprep.subr.bf16.mxu0 0
      %2074 = vmatpush1.bf16.msra.mxu0 %v2046
      %2075 = vmatprep.subr.bf16.mxu0 0
      %2076 = vmatpush1.bf16.msra.mxu0 %v2045
      %2077 = vmatprep.subr.bf16.mxu0 0
      %2078 = vmatpush2.bf16.msra.mxu0 0
      %2079 = vmatprep.subr.bf16.mxu0 0
      %2080 = vmatpush2.bf16.msra.mxu0 0
      %2081 = vmatprep.subr.bf16.mxu0 0
      %2082 = vmatpush2.bf16.msra.mxu0 0
      %2083 = vmatprep.subr.bf16.mxu0 0
      %2084 = vmatpush2.bf16.msra.mxu0 0
      %2085 = vmatprep.subr.bf16.mxu0 0
      %2086 = vmatpush2.bf16.msra.mxu0 0
      %2087 = vmatprep.subr.bf16.mxu0 0
      %2088 = vmatpush2.bf16.msra.mxu0 0
      %2089 = vmatprep.subr.bf16.mxu0 0
      %2090 = vmatpush2.bf16.msra.mxu0 0
      %2091 = vmatprep.subr.bf16.mxu0 0
      %2092 = vmatpush2.bf16.msra.mxu0 0
      %2093 = vmatprep.mubr.bf16.mxu0 0
      %2094 = vmatmul.mubr.bf16.gmra.mxu0 %v1993
      %v2095 = vpop.f32.mrf.mxu0
      %v2096 = vadd.f32 0.0, %v2095
      %v2097 = vpop.f32.mrf.mxu0
      %v2098 = vpop.f32.mrf.mxu0
      %v2099 = vadd.f32 0.0, %v2098
      %v2100 = vpop.f32.mrf.mxu0
      %2101 = vmatprep.mubr.bf16.mxu0 0
      %2102 = vmatmul.mubr.bf16.gmra.mxu0 %v1994
      %v2103 = vpop.f32.mrf.mxu0
      %v2104 = vadd.f32 0.0, %v2103
      %v2105 = vpop.f32.mrf.mxu0
      %v2106 = vpop.f32.mrf.mxu0
      %v2107 = vadd.f32 0.0, %v2106
      %v2108 = vpop.f32.mrf.mxu0
      %2109 = vmatprep.mubr.bf16.mxu0 0
      %2110 = vmatmul.mubr.bf16.gmra.mxu0 %v1995
      %v2111 = vpop.f32.mrf.mxu0
      %v2112 = vadd.f32 0.0, %v2111
      %v2113 = vpop.f32.mrf.mxu0
      %v2114 = vpop.f32.mrf.mxu0
      %v2115 = vadd.f32 0.0, %v2114
      %v2116 = vpop.f32.mrf.mxu0
      %2117 = vmatprep.mubr.bf16.mxu0 0
      %2118 = vmatmul.mubr.bf16.gmra.mxu0 %v1996
      %v2119 = vpop.f32.mrf.mxu0
      %v2120 = vadd.f32 0.0, %v2119
      %v2121 = vpop.f32.mrf.mxu0
      %v2122 = vpop.f32.mrf.mxu0
      %v2123 = vadd.f32 0.0, %v2122
      %v2124 = vpop.f32.mrf.mxu0
      %2125 = vdwg.mxu0
      %v2126 = vadd.f32 %v1977, %v2096
      %v2127 = vadd.f32 %v1978, %v2099
      %v2128 = vadd.f32 %v1979, %v2104
      %v2129 = vadd.f32 %v1980, %v2107
      %v2130 = vadd.f32 %v1981, %v2112
      %v2131 = vadd.f32 %v1982, %v2115
      %v2132 = vadd.f32 %v1983, %v2120
      %v2133 = vadd.f32 %v1984, %v2123
      %v2134 = vld [vmem:[%s393] sm:$0x1]
      %v2135 = vadd.f32 %v2126, %v2127
      %v2136 = vadd.f32 %v2135, %v2128
      %v2137 = vadd.f32 %v2136, %v2129
      %v2138 = vadd.f32 %v2137, %v2130
      %v2139 = vadd.f32 %v2138, %v2131
      %v2140 = vadd.f32 %v2139, %v2132
      %v2141 = vadd.f32 %v2140, %v2133
      %v2142 = vrot.slane %v2141, 4
      %v2143 = vadd.f32 %v2141, %v2142
      %v2144 = vrot.slane %v2143, 2
      %v2145 = vadd.f32 %v2143, %v2144
      %v2146 = vrot.slane %v2145, 1
      %v2147 = vadd.f32 %v2145, %v2146
      %v2148 = vadd.f32 %v2134, %v2147
      %2149 = vst [vmem:[%s393] sm:$0x1] %v2148
      %v2150 = vld [vmem:[%s396] sm:$0x1]
      %v2151 = vmul.f32 %v2126, %v2126
      %v2152 = vmul.f32 %v2127, %v2127
      %v2153 = vmul.f32 %v2128, %v2128
      %v2154 = vmul.f32 %v2129, %v2129
      %v2155 = vmul.f32 %v2130, %v2130
      %v2156 = vmul.f32 %v2131, %v2131
      %v2157 = vmul.f32 %v2132, %v2132
      %v2158 = vmul.f32 %v2133, %v2133
      %v2159 = vadd.f32 %v2151, %v2152
      %v2160 = vadd.f32 %v2159, %v2153
      %v2161 = vadd.f32 %v2160, %v2154
      %v2162 = vadd.f32 %v2161, %v2155
      %v2163 = vadd.f32 %v2162, %v2156
      %v2164 = vadd.f32 %v2163, %v2157
      %v2165 = vadd.f32 %v2164, %v2158
      %v2166 = vrot.slane %v2165, 4
      %v2167 = vadd.f32 %v2165, %v2166
      %v2168 = vrot.slane %v2167, 2
      %v2169 = vadd.f32 %v2167, %v2168
      %v2170 = vrot.slane %v2169, 1
      %v2171 = vadd.f32 %v2169, %v2170
      %v2172 = vadd.f32 %v2150, %v2171
      %2173 = vst [vmem:[%s396] sm:$0x1] %v2172
      %v2174 = vpack.c.bf16 %v2126, %v2126
      %v2175 = vpack.c.bf16 %v2127, %v2127
      %v2176 = vpack.c.bf16 %v2128, %v2128
      %v2177 = vpack.c.bf16 %v2129, %v2129
      %v2178 = vpack.c.bf16 %v2130, %v2130
      %v2179 = vpack.c.bf16 %v2131, %v2131
      %v2180 = vpack.c.bf16 %v2132, %v2132
      %v2181 = vpack.c.bf16 %v2133, %v2133
      %2182 = vst [vmem:[%s382] sm:$0xf] %v2174
      %2183 = vst [vmem:[%s382 + $0x4] sm:$0xf] %v2175
      %2184 = vst [vmem:[%s382 + $0x8] sm:$0xf] %v2176
      %2185 = vst [vmem:[%s382 + $0xc] sm:$0xf] %v2177
      %2186 = vst [vmem:[%s382 + $0x10] sm:$0xf] %v2178
      %2187 = vst [vmem:[%s382 + $0x14] sm:$0xf] %v2179
      %2188 = vst [vmem:[%s382 + $0x18] sm:$0xf] %v2180
      %2189 = vst [vmem:[%s382 + $0x1c] sm:$0xf] %v2181
      %p2190 = scmp.lt.s32.totalorder %s25, 1
      %s2191 = scalar_select %p2190, %s25, 1
      %p2192 = scmp.lt.s32.totalorder %s24, 0
      %s2193 = scalar_select %p2192, %s24, 0
      %s2194 = smul.addr %s2191, 8
      %s2195 = sadd.s32 %s2193, %s2194
      %s2196 = smul.addr %s2195, 4
      %s2197 = scalar_lea.vmem %s5, %s2196
      %p2198 = scmp.lt.s32.totalorder %s25, 1
      %s2199 = scalar_select %p2198, %s25, 1
      %p2200 = scmp.lt.s32.totalorder %s24, 0
      %s2201 = scalar_select %p2200, %s24, 0
      %s2202 = smul.addr %s2199, 8
      %s2203 = sadd.s32 %s2201, %s2202
      %s2204 = smul.addr %s2203, 8
      %s2205 = scalar_lea.vmem %s6, %s2204
      %p2206 = scmp.lt.s32.totalorder %s24, 0
      %s2207 = scalar_select %p2206, %s24, 0
      %s2208 = scalar_lea.vmem %s7, %s2207
      %p2209 = scmp.lt.s32.totalorder %s24, 0
      %s2210 = scalar_select %p2209, %s24, 0
      %s2211 = scalar_lea.vmem %s8, %s2210
      // Predicated region
      $region45: #{basic_block_forward.4} parent=39 // pred_check
        %p2212 = pneg %p172
      $region46: #{basic_block_forward.4} parent=39 // pred_check_branch
        %2214 = sbr.rel (%p2212) target = $region48
      $region47: #{basic_block_forward.4} parent=39 // pred_region
        _
      $region48: #{basic_block_forward.4} parent=39 // pred_fallthru
        _
      // Predicated region
      $region49: #{basic_block_forward.4} parent=39 // pred_check
        %p2215 = pneg %p200
      $region50: #{basic_block_forward.4} parent=39 // pred_check_branch
        %2217 = sbr.rel (%p2215) target = $region52
      $region51: #{basic_block_forward.4} parent=39 // pred_region
        _
      $region52: #{basic_block_forward.4} parent=39 // pred_fallthru
        _
      // Predicated region
      $region53: #{basic_block_forward.4} parent=39 // pred_check
        %p2218 = pneg %p226
      $region54: #{basic_block_forward.4} parent=39 // pred_check_branch
        %2220 = sbr.rel (%p2218) target = $region56
      $region55: #{basic_block_forward.4} parent=39 // pred_region
        _
      $region56: #{basic_block_forward.4} parent=39 // pred_fallthru
        _
      // Predicated region
      $region57: #{basic_block_forward.4} parent=39 // pred_check
        %p2221 = pneg %p252
      $region58: #{basic_block_forward.4} parent=39 // pred_check_branch
        %2223 = sbr.rel (%p2221) target = $region60
      $region59: #{basic_block_forward.4} parent=39 // pred_region
        _
      $region60: #{basic_block_forward.4} parent=39 // pred_fallthru
        _
      // Predicated region
      $region61: #{basic_block_forward.4} parent=39 // pred_check
        %p2224 = pneg %p226
      $region62: #{basic_block_forward.4} parent=39 // pred_check_branch
        %2226 = sbr.rel (%p2224) target = $region64
      $region63: #{basic_block_forward.4} parent=39 // pred_region
        %p2227 = scmp.lt.s32.totalorder %s24, 0
        %s2228 = scalar_select %p2227, %s24, 0
        %s2229 = scalar_lea.vmem %s7, %s2228
      $region64: #{basic_block_forward.4} parent=39 // pred_fallthru
        _
      // Predicated region
      $region65: #{basic_block_forward.4} parent=39 // pred_check
        %p2230 = pneg %p252
      $region66: #{basic_block_forward.4} parent=39 // pred_check_branch
        %2232 = sbr.rel (%p2230) target = $region68
      $region67: #{basic_block_forward.4} parent=39 // pred_region
        %p2233 = scmp.lt.s32.totalorder %s24, 0
        %s2234 = scalar_select %p2233, %s24, 0
        %s2235 = scalar_lea.vmem %s8, %s2234
      $region68: #{basic_block_forward.4} parent=39 // pred_fallthru
        _
    $region40: #{basic_block_forward.4} parent=5 // pred_fallthru
      _
    %p2236 = scmp.le.s32.totalorder 2, %s15
    // Predicated region
    $region69: #{basic_block_forward.4} parent=5 // pred_check
      %p2237 = pneg %p2236
    $region70: #{basic_block_forward.4} parent=5 // pred_check_branch
      %2239 = sbr.rel (%p2237) target = $region72
    $region71: #{basic_block_forward.4} parent=5 // pred_region
      %s2240 = ssub.s32 %s15, 2
      // Predicated region
      $region73: #{basic_block_forward.4} parent=71 // pred_check
        %p2241 = pneg %p178
      $region74: #{basic_block_forward.4} parent=71 // pred_check_branch
        %2243 = sbr.rel (%p2241) target = $region76
      $region75: #{basic_block_forward.4} parent=71 // pred_region
        %p2244 = scmp.lt.s32.totalorder %s27, 1
        %s2245 = scalar_select %p2244, %s27, 1
        %p2246 = scmp.lt.s32.totalorder %s26, 0
        %s2247 = scalar_select %p2246, %s26, 0
        %s2248 = smul.addr %s2245, 8
        %s2249 = sadd.s32 %s2247, %s2248
        %s2250 = smul.addr %s2249, 4
        %s2251 = scalar_lea.vmem %s5, %s2250
      $region76: #{basic_block_forward.4} parent=71 // pred_fallthru
        _
      // Predicated region
      $region77: #{basic_block_forward.4} parent=71 // pred_check
        %p2252 = pneg %p206
      $region78: #{basic_block_forward.4} parent=71 // pred_check_branch
        %2254 = sbr.rel (%p2252) target = $region80
      $region79: #{basic_block_forward.4} parent=71 // pred_region
        %p2255 = scmp.lt.s32.totalorder %s27, 1
        %s2256 = scalar_select %p2255, %s27, 1
        %p2257 = scmp.lt.s32.totalorder %s26, 0
        %s2258 = scalar_select %p2257, %s26, 0
        %s2259 = smul.addr %s2256, 8
        %s2260 = sadd.s32 %s2258, %s2259
        %s2261 = smul.addr %s2260, 8
        %s2262 = scalar_lea.vmem %s6, %s2261
      $region80: #{basic_block_forward.4} parent=71 // pred_fallthru
        _
    $region72: #{basic_block_forward.4} parent=5 // pred_fallthru
      _
  $region6: #{basic_block_forward.4} parent=0 // loop_footer
    %s19 = sadd.s32 1, %s15
  $region7: #{basic_block_forward.4} parent=0 // loop_footer_branch
    %14 = sbr.rel target = $region3
  $region8: #{basic_block_forward.4} parent=0 // loop_exit
    _

</llo_original>
